<compile_context>
chip_gen: v5e
topology: v5e:2x2
jax: 0.10.0
libtpu: 0.0.40
codegen_flags: <defaults>
</compile_context>

<pallas_src>
import functools

import jax
import jax.numpy as jnp
import numpy as np
from jax import lax
from jax.experimental import pallas as pl
from jax.experimental.pallas import tpu as pltpu


def _hnp_kernel(pts_ref, bank_ref, sim_ref, hn_ref, rmax_ref,
                norm_sc, topk_sc, *, t, k):
    """grid = (N//tn, M//tm); the M axis ("arbitrary") carries the running top-k."""
    mi = pl.program_id(1)

    # ---- first M step for this N tile: normalize points (f32), init carry ----
    @pl.when(mi == 0)
    def _init():
        pts = pts_ref[...].astype(jnp.float32)                        # (tn, D)
        normed = pts * lax.rsqrt(jnp.sum(pts * pts, axis=1, keepdims=True))
        norm_sc[...] = normed.astype(norm_sc.dtype)                   # bf16 MXU operand
        topk_sc[...] = jnp.full(topk_sc.shape, -jnp.inf, jnp.float32)

    # ---- (tn, tm) similarity tile on the MXU: bf16 x bf16 -> f32 accumulate ----
    bank = bank_ref[...]
    if bank.dtype != norm_sc.dtype:                                   # no cast if bank is bf16
        bank = bank.astype(norm_sc.dtype)
    sim = lax.dot_general(
        norm_sc[...], bank,
        dimension_numbers=(((1,), (1,)), ((), ())),                   # contract D
        preferred_element_type=jnp.float32)                           # (tn, tm) f32
    sim_ref[...] = sim.astype(sim_ref.dtype)                          # lane-dense store

    # ---- merge running top-k carry with this tile ----
    neg_inf = jnp.float32(-jnp.inf)
    carry = topk_sc[...]                                              # (tn, k) sorted desc
    thresh = carry[:, k - 1:k]                                        # running k-th largest
    # Pre-screen: values <= the current k-th largest can never change the top-k sum.
    work = jnp.where(sim > thresh, sim, neg_inf)                      # (tn, tm)
    # Fold the carry into the candidate set once (work is lane-aligned so the
    # concat offsets stay 128-aligned); each round is then one max + one mask.
    cand = jnp.concatenate([work, carry], axis=1)                     # (tn, tm + k)
    cols = []
    for j in range(k):
        m = jnp.max(cand, axis=1, keepdims=True)                      # (tn, 1)
        cols.append(m)
        if j + 1 < k:
            # NOTE: exact float duplicates of the max collapse into one slot
            # (diverges from torch.topk only for repeated similarity values).
            cand = jnp.where(cand == m, neg_inf, cand)
    # One store of the new sorted carry (no K masked single-column stores).
    lane = lax.broadcasted_iota(jnp.int32, topk_sc.shape, 1)
    new_carry = jnp.full(topk_sc.shape, neg_inf, jnp.float32)
    for j in range(k):
        new_carry = jnp.where(lane == j, cols[j], new_carry)
    topk_sc[...] = new_carry

    # ---- last M step: row-max-shifted hard-negative partition function ----
    @pl.when(mi == pl.num_programs(1) - 1)
    def _finalize():
        topk = topk_sc[...]                                           # (tn, k) desc
        rmax = topk[:, 0:1]                                           # global row max
        hn_ref[...] = jnp.sum(jnp.exp((topk - rmax) * (1.0 / t)),
                              axis=1, keepdims=True)                  # (tn, 1)
        rmax_ref[...] = rmax


def hard_negative_point_loss(points, point_indices, memory_bank, *,
                             t, n_background, tn=None, tm=256,
                             mxu_dtype=jnp.bfloat16, sim_dtype=jnp.float32):
    """points (N, D) f32, point_indices (N,) int, memory_bank (M, D) f32/bf16.

    Returns (loss, similarities) with the same semantics as the PyTorch module.
    Pass sim_dtype=jnp.bfloat16 to halve the sim writeback stream (useful on v5e).
    Pick tn so that N // tn >= 2 to shard the parallel axis across v7x's 2 cores.
    """
    N, D = points.shape
    M, Db = memory_bank.shape
    assert D == Db
    k = int(n_background)
    assert 1 <= k <= M
    if tn is None:
        tn = min(N, 256)          # bounded tile: flat VMEM + real pipelining
    tm = min(tm, M)
    assert N % tn == 0, "N must be divisible by the N tile size"
    assert M % tm == 0, "M must be divisible by the M tile size"

    kernel = functools.partial(_hnp_kernel, t=float(t), k=k)

    sim, hn, rmax = pl.pallas_call(
        kernel,
        out_shape=(
            jax.ShapeDtypeStruct((N, M), sim_dtype),   # raw similarities
            jax.ShapeDtypeStruct((N, 1), jnp.float32), # sum exp((topk - rmax)/t)
            jax.ShapeDtypeStruct((N, 1), jnp.float32), # per-row max similarity
        ),
        grid_spec=pltpu.PrefetchScalarGridSpec(
            num_scalar_prefetch=0,
            grid=(N // tn, M // tm),
            in_specs=[
                pl.BlockSpec((tn, D), lambda ni, mi: (ni, 0)),   # points
                # Bank tiles streamed from HBM; if the merge ever gets cheap
                # enough to expose this DMA, add pipeline_mode=pl.Buffered(3).
                pl.BlockSpec((tm, D), lambda ni, mi: (mi, 0)),   # memory bank
            ],
            out_specs=(
                pl.BlockSpec((tn, tm), lambda ni, mi: (ni, mi)), # similarities
                pl.BlockSpec((tn, 1), lambda ni, mi: (ni, 0)),   # hn partition fn
                pl.BlockSpec((tn, 1), lambda ni, mi: (ni, 0)),   # row max
            ),
            scratch_shapes=[
                pltpu.VMEM((tn, D), mxu_dtype),     # normalized points (MXU operand)
                pltpu.VMEM((tn, k), jnp.float32),   # running top-k carry (f32)
            ],
        ),
        compiler_params=pltpu.CompilerParams(
            dimension_semantics=("parallel", "arbitrary"),
            # 48 MiB stays under v7x's 64 MiB physical VMEM; raise toward
            # ~100 MiB on v5e/v6e if using bigger tiles or a resident bank.
            vmem_limit_bytes=48 * 1024 * 1024),
    )(points, memory_bank)

    # O(N) XLA epilogue: gather positives from the materialized sim and finish
    # the loss (mathematically identical to exp(pos/t)/sum(exp(topk/t))).
    idx = point_indices.astype(jnp.int32)
    pos = jnp.take_along_axis(sim.astype(jnp.float32), idx[:, None], axis=1)  # (N,1)
    ratio = jnp.exp((pos - rmax) / t) / hn
    loss = -jnp.mean(jnp.log(ratio + 1e-7))
    return loss, sim


def _reference(points, point_indices, memory_bank, *, t, n_background,
               matmul_dtype=jnp.float32):
    """Pure-JAX reference. matmul_dtype=bf16 gives a precision-matched reference."""
    norm = points / jnp.sqrt(jnp.sum(points ** 2, axis=1, keepdims=True))
    a = norm.astype(matmul_dtype).astype(jnp.float32)
    b = memory_bank.astype(matmul_dtype).astype(jnp.float32)
    sim = a @ b.T
    psim = jnp.exp(sim / t)
    pos = psim[jnp.arange(points.shape[0]), point_indices]
    top_vals, _ = lax.top_k(psim, n_background)
    loss = -jnp.mean(jnp.log(pos / jnp.sum(top_vals, axis=1) + 1e-7))
    return loss, sim


if __name__ == "__main__":
    # Small deterministic problem that still exercises a (2, 2) grid:
    # N=256 query points, D=64 features, M=512 bank entries, top-k K=8, t=0.07.
    N, D, M = 256, 64, 512
    T = 0.07
    K = 8          # scaled-down n_background for the small bank

    key = jax.random.PRNGKey(0)
    k1, k2, k3 = jax.random.split(key, 3)

    points = jax.random.normal(k1, (N, D), dtype=jnp.float32)
    bank = jax.random.normal(k2, (M, D), dtype=jnp.float32)
    memory_bank = bank / jnp.sqrt(jnp.sum(bank ** 2, axis=1, keepdims=True))
    point_indices = jax.random.randint(k3, (N,), 0, M, dtype=jnp.int32)

    # Stream the bank as bf16 (halves the bank HBM traffic; MXU runs bf16xbf16->f32).
    bank_bf16 = memory_bank.astype(jnp.bfloat16)

    loss, sim = hard_negative_point_loss(
        points, point_indices, bank_bf16, t=T, n_background=K, tn=128, tm=256)
    loss, sim = jax.block_until_ready((loss, sim))

    # Precision-matched reference (bf16-rounded matmul operands, f32 elsewhere).
    ref_loss, ref_sim = _reference(points, point_indices, memory_bank,
                                   t=T, n_background=K, matmul_dtype=jnp.bfloat16)
    assert np.allclose(np.asarray(sim), np.asarray(ref_sim), rtol=1e-4, atol=1e-4)
    assert np.allclose(np.asarray(loss), np.asarray(ref_loss), rtol=1e-4, atol=1e-4)

    # Sanity check against the pure-f32 PyTorch-equivalent reference.
    f32_loss, _ = _reference(points, point_indices, memory_bank,
                             t=T, n_background=K, matmul_dtype=jnp.float32)
    assert np.allclose(np.asarray(loss), np.asarray(f32_loss), rtol=2e-2, atol=5e-2)

    print("KERNEL_OK")
</pallas_src>

<mosaic_0001>
module attributes {stable_mosaic.version = 11 : i64} {
  func.func @_hnp_kernel(%arg0: i32, %arg1: i32, %arg2: memref<128x64xf32, #tpu.memory_space<vmem>>, %arg3: memref<256x64xbf16, #tpu.memory_space<vmem>>, %arg4: memref<128x256xf32, #tpu.memory_space<vmem>>, %arg5: memref<128x1xf32, #tpu.memory_space<vmem>>, %arg6: memref<128x1xf32, #tpu.memory_space<vmem>>, %arg7: memref<128x64xbf16, #tpu.memory_space<vmem>>, %arg8: memref<128x8xf32, #tpu.memory_space<vmem>>) attributes {dimension_semantics = [#tpu.dimension_semantics<parallel>, #tpu.dimension_semantics<arbitrary>], iteration_bounds = array<i64: 2, 2>, scalar_prefetch = 0 : i64, scratch_operands = 2 : i64, tpu.core_type = #tpu.core_type<tc>, window_params = [{transform_indices = @transform_0, window_bounds = array<i64: 128, 64>}, {transform_indices = @transform_1, window_bounds = array<i64: 256, 64>}, {transform_indices = @transform_2, window_bounds = array<i64: 128, 256>}, {transform_indices = @transform_3, window_bounds = array<i64: 128, 1>}, {transform_indices = @transform_4, window_bounds = array<i64: 128, 1>}]} {
    %c0_i32 = arith.constant 0 : i32
    %0 = arith.cmpi eq, %arg1, %c0_i32 : i32
    %1 = arith.extui %0 : i1 to i32
    %c0_i32_0 = arith.constant 0 : i32
    %2 = arith.cmpi ne, %1, %c0_i32_0 : i32
    scf.if %2 {
      %c0_30 = arith.constant 0 : index
      %c0_31 = arith.constant 0 : index
      %104 = vector.load %arg2[%c0_30, %c0_31] : memref<128x64xf32, #tpu.memory_space<vmem>>, vector<128x64xf32>
      %105 = arith.mulf %104, %104 : vector<128x64xf32>
      %cst_32 = arith.constant dense<0.000000e+00> : vector<128xf32>
      %106 = vector.multi_reduction <add>, %105, %cst_32 [1] : vector<128x64xf32> to vector<128xf32>
      %107 = vector.shape_cast %106 : vector<128xf32> to vector<128x1xf32>
      %108 = math.rsqrt %107 : vector<128x1xf32>
      %109 = vector.broadcast %108 : vector<128x1xf32> to vector<128x64xf32>
      %110 = arith.mulf %104, %109 : vector<128x64xf32>
      %111 = arith.truncf %110 : vector<128x64xf32> to vector<128x64xbf16>
      %c0_33 = arith.constant 0 : index
      %c0_34 = arith.constant 0 : index
      %112 = vector.load %arg7[%c0_33, %c0_34] : memref<128x64xbf16, #tpu.memory_space<vmem>>, vector<128x64xbf16>
      tpu.vector_store %arg7[%c0_33, %c0_34], %111 {strides = array<i32>} : memref<128x64xbf16, #tpu.memory_space<vmem>>, vector<128x64xbf16>,
      %cst_35 = arith.constant 0xFF800000 : f32
      %113 = vector.broadcast %cst_35 : f32 to vector<128x8xf32>
      %c0_36 = arith.constant 0 : index
      %c0_37 = arith.constant 0 : index
      %114 = vector.load %arg8[%c0_36, %c0_37] : memref<128x8xf32, #tpu.memory_space<vmem>>, vector<128x8xf32>
      tpu.vector_store %arg8[%c0_36, %c0_37], %113 {strides = array<i32>} : memref<128x8xf32, #tpu.memory_space<vmem>>, vector<128x8xf32>,
    } else {
    }
    %c0 = arith.constant 0 : index
    %c0_1 = arith.constant 0 : index
    %3 = vector.load %arg3[%c0, %c0_1] : memref<256x64xbf16, #tpu.memory_space<vmem>>, vector<256x64xbf16>
    %c0_2 = arith.constant 0 : index
    %c0_3 = arith.constant 0 : index
    %4 = vector.load %arg7[%c0_2, %c0_3] : memref<128x64xbf16, #tpu.memory_space<vmem>>, vector<128x64xbf16>
    %cst = arith.constant dense<0.000000e+00> : vector<128x256xf32>
    %5 = tpu.matmul %4, %3, %cst {dimension_numbers = #tpu.dot_dimension_numbers<[1], [1], [0], [0], [0, 0, 1, 0], [], []>} : vector<128x64xbf16>, vector<256x64xbf16>, vector<128x256xf32> -> vector<128x256xf32>
    %c0_4 = arith.constant 0 : index
    %c0_5 = arith.constant 0 : index
    %6 = vector.load %arg4[%c0_4, %c0_5] : memref<128x256xf32, #tpu.memory_space<vmem>>, vector<128x256xf32>
    tpu.vector_store %arg4[%c0_4, %c0_5], %5 {strides = array<i32>} : memref<128x256xf32, #tpu.memory_space<vmem>>, vector<128x256xf32>,
    %c0_6 = arith.constant 0 : index
    %c0_7 = arith.constant 0 : index
    %7 = vector.load %arg8[%c0_6, %c0_7] : memref<128x8xf32, #tpu.memory_space<vmem>>, vector<128x8xf32>
    %8 = vector.extract_strided_slice %7 {offsets = [0, 7], sizes = [128, 1], strides = [1, 1]} : vector<128x8xf32> to vector<128x1xf32>
    %9 = vector.broadcast %8 : vector<128x1xf32> to vector<128x256xf32>
    %10 = arith.cmpf ogt, %5, %9 : vector<128x256xf32>
    %cst_8 = arith.constant 0xFF800000 : f32
    %11 = vector.broadcast %cst_8 : f32 to vector<128x256xf32>
    %12 = arith.select %10, %5, %11 : vector<128x256xi1>, vector<128x256xf32>
    %13 = tpu.concatenate %12, %7 in 1 : vector<128x256xf32>, vector<128x8xf32> -> vector<128x264xf32>
    %cst_9 = arith.constant dense<0xFF800000> : vector<128xf32>
    %14 = vector.multi_reduction <maximumf>, %13, %cst_9 [1] : vector<128x264xf32> to vector<128xf32>
    %15 = vector.shape_cast %14 : vector<128xf32> to vector<128x1xf32>
    %16 = vector.broadcast %15 : vector<128x1xf32> to vector<128x264xf32>
    %17 = arith.cmpf oeq, %13, %16 : vector<128x264xf32>
    %cst_10 = arith.constant 0xFF800000 : f32
    %18 = vector.broadcast %cst_10 : f32 to vector<128x264xf32>
    %19 = arith.select %17, %18, %13 : vector<128x264xi1>, vector<128x264xf32>
    %cst_11 = arith.constant dense<0xFF800000> : vector<128xf32>
    %20 = vector.multi_reduction <maximumf>, %19, %cst_11 [1] : vector<128x264xf32> to vector<128xf32>
    %21 = vector.shape_cast %20 : vector<128xf32> to vector<128x1xf32>
    %22 = vector.broadcast %21 : vector<128x1xf32> to vector<128x264xf32>
    %23 = arith.cmpf oeq, %19, %22 : vector<128x264xf32>
    %cst_12 = arith.constant 0xFF800000 : f32
    %24 = vector.broadcast %cst_12 : f32 to vector<128x264xf32>
    %25 = arith.select %23, %24, %19 : vector<128x264xi1>, vector<128x264xf32>
    %cst_13 = arith.constant dense<0xFF800000> : vector<128xf32>
    %26 = vector.multi_reduction <maximumf>, %25, %cst_13 [1] : vector<128x264xf32> to vector<128xf32>
    %27 = vector.shape_cast %26 : vector<128xf32> to vector<128x1xf32>
    %28 = vector.broadcast %27 : vector<128x1xf32> to vector<128x264xf32>
    %29 = arith.cmpf oeq, %25, %28 : vector<128x264xf32>
    %cst_14 = arith.constant 0xFF800000 : f32
    %30 = vector.broadcast %cst_14 : f32 to vector<128x264xf32>
    %31 = arith.select %29, %30, %25 : vector<128x264xi1>, vector<128x264xf32>
    %cst_15 = arith.constant dense<0xFF800000> : vector<128xf32>
    %32 = vector.multi_reduction <maximumf>, %31, %cst_15 [1] : vector<128x264xf32> to vector<128xf32>
    %33 = vector.shape_cast %32 : vector<128xf32> to vector<128x1xf32>
    %34 = vector.broadcast %33 : vector<128x1xf32> to vector<128x264xf32>
    %35 = arith.cmpf oeq, %31, %34 : vector<128x264xf32>
    %cst_16 = arith.constant 0xFF800000 : f32
    %36 = vector.broadcast %cst_16 : f32 to vector<128x264xf32>
    %37 = arith.select %35, %36, %31 : vector<128x264xi1>, vector<128x264xf32>
    %cst_17 = arith.constant dense<0xFF800000> : vector<128xf32>
    %38 = vector.multi_reduction <maximumf>, %37, %cst_17 [1] : vector<128x264xf32> to vector<128xf32>
    %39 = vector.shape_cast %38 : vector<128xf32> to vector<128x1xf32>
    %40 = vector.broadcast %39 : vector<128x1xf32> to vector<128x264xf32>
    %41 = arith.cmpf oeq, %37, %40 : vector<128x264xf32>
    %cst_18 = arith.constant 0xFF800000 : f32
    %42 = vector.broadcast %cst_18 : f32 to vector<128x264xf32>
    %43 = arith.select %41, %42, %37 : vector<128x264xi1>, vector<128x264xf32>
    %cst_19 = arith.constant dense<0xFF800000> : vector<128xf32>
    %44 = vector.multi_reduction <maximumf>, %43, %cst_19 [1] : vector<128x264xf32> to vector<128xf32>
    %45 = vector.shape_cast %44 : vector<128xf32> to vector<128x1xf32>
    %46 = vector.broadcast %45 : vector<128x1xf32> to vector<128x264xf32>
    %47 = arith.cmpf oeq, %43, %46 : vector<128x264xf32>
    %cst_20 = arith.constant 0xFF800000 : f32
    %48 = vector.broadcast %cst_20 : f32 to vector<128x264xf32>
    %49 = arith.select %47, %48, %43 : vector<128x264xi1>, vector<128x264xf32>
    %cst_21 = arith.constant dense<0xFF800000> : vector<128xf32>
    %50 = vector.multi_reduction <maximumf>, %49, %cst_21 [1] : vector<128x264xf32> to vector<128xf32>
    %51 = vector.shape_cast %50 : vector<128xf32> to vector<128x1xf32>
    %52 = vector.broadcast %51 : vector<128x1xf32> to vector<128x264xf32>
    %53 = arith.cmpf oeq, %49, %52 : vector<128x264xf32>
    %cst_22 = arith.constant 0xFF800000 : f32
    %54 = vector.broadcast %cst_22 : f32 to vector<128x264xf32>
    %55 = arith.select %53, %54, %49 : vector<128x264xi1>, vector<128x264xf32>
    %cst_23 = arith.constant dense<0xFF800000> : vector<128xf32>
    %56 = vector.multi_reduction <maximumf>, %55, %cst_23 [1] : vector<128x264xf32> to vector<128xf32>
    %57 = vector.shape_cast %56 : vector<128xf32> to vector<128x1xf32>
    %58 = tpu.iota {dimensions = array<i32: 1>} : vector<128x8xi32>
    %cst_24 = arith.constant 0xFF800000 : f32
    %59 = vector.broadcast %cst_24 : f32 to vector<128x8xf32>
    %c0_i32_25 = arith.constant 0 : i32
    %60 = vector.broadcast %c0_i32_25 : i32 to vector<128x8xi32>
    %61 = arith.cmpi eq, %58, %60 : vector<128x8xi32>
    %62 = vector.shape_cast %15 : vector<128x1xf32> to vector<128x1xf32>
    %63 = vector.broadcast %62 : vector<128x1xf32> to vector<128x8xf32>
    %64 = arith.select %61, %63, %59 : vector<128x8xi1>, vector<128x8xf32>
    %c1_i32 = arith.constant 1 : i32
    %65 = vector.broadcast %c1_i32 : i32 to vector<128x8xi32>
    %66 = arith.cmpi eq, %58, %65 : vector<128x8xi32>
    %67 = vector.shape_cast %21 : vector<128x1xf32> to vector<128x1xf32>
    %68 = vector.broadcast %67 : vector<128x1xf32> to vector<128x8xf32>
    %69 = arith.select %66, %68, %64 : vector<128x8xi1>, vector<128x8xf32>
    %c2_i32 = arith.constant 2 : i32
    %70 = vector.broadcast %c2_i32 : i32 to vector<128x8xi32>
    %71 = arith.cmpi eq, %58, %70 : vector<128x8xi32>
    %72 = vector.shape_cast %27 : vector<128x1xf32> to vector<128x1xf32>
    %73 = vector.broadcast %72 : vector<128x1xf32> to vector<128x8xf32>
    %74 = arith.select %71, %73, %69 : vector<128x8xi1>, vector<128x8xf32>
    %c3_i32 = arith.constant 3 : i32
    %75 = vector.broadcast %c3_i32 : i32 to vector<128x8xi32>
    %76 = arith.cmpi eq, %58, %75 : vector<128x8xi32>
    %77 = vector.shape_cast %33 : vector<128x1xf32> to vector<128x1xf32>
    %78 = vector.broadcast %77 : vector<128x1xf32> to vector<128x8xf32>
    %79 = arith.select %76, %78, %74 : vector<128x8xi1>, vector<128x8xf32>
    %c4_i32 = arith.constant 4 : i32
    %80 = vector.broadcast %c4_i32 : i32 to vector<128x8xi32>
    %81 = arith.cmpi eq, %58, %80 : vector<128x8xi32>
    %82 = vector.shape_cast %39 : vector<128x1xf32> to vector<128x1xf32>
    %83 = vector.broadcast %82 : vector<128x1xf32> to vector<128x8xf32>
    %84 = arith.select %81, %83, %79 : vector<128x8xi1>, vector<128x8xf32>
    %c5_i32 = arith.constant 5 : i32
    %85 = vector.broadcast %c5_i32 : i32 to vector<128x8xi32>
    %86 = arith.cmpi eq, %58, %85 : vector<128x8xi32>
    %87 = vector.shape_cast %45 : vector<128x1xf32> to vector<128x1xf32>
    %88 = vector.broadcast %87 : vector<128x1xf32> to vector<128x8xf32>
    %89 = arith.select %86, %88, %84 : vector<128x8xi1>, vector<128x8xf32>
    %c6_i32 = arith.constant 6 : i32
    %90 = vector.broadcast %c6_i32 : i32 to vector<128x8xi32>
    %91 = arith.cmpi eq, %58, %90 : vector<128x8xi32>
    %92 = vector.shape_cast %51 : vector<128x1xf32> to vector<128x1xf32>
    %93 = vector.broadcast %92 : vector<128x1xf32> to vector<128x8xf32>
    %94 = arith.select %91, %93, %89 : vector<128x8xi1>, vector<128x8xf32>
    %c7_i32 = arith.constant 7 : i32
    %95 = vector.broadcast %c7_i32 : i32 to vector<128x8xi32>
    %96 = arith.cmpi eq, %58, %95 : vector<128x8xi32>
    %97 = vector.shape_cast %57 : vector<128x1xf32> to vector<128x1xf32>
    %98 = vector.broadcast %97 : vector<128x1xf32> to vector<128x8xf32>
    %99 = arith.select %96, %98, %94 : vector<128x8xi1>, vector<128x8xf32>
    %c0_26 = arith.constant 0 : index
    %c0_27 = arith.constant 0 : index
    %100 = vector.load %arg8[%c0_26, %c0_27] : memref<128x8xf32, #tpu.memory_space<vmem>>, vector<128x8xf32>
    tpu.vector_store %arg8[%c0_26, %c0_27], %99 {strides = array<i32>} : memref<128x8xf32, #tpu.memory_space<vmem>>, vector<128x8xf32>,
    %c1_i32_28 = arith.constant 1 : i32
    %101 = arith.cmpi eq, %arg1, %c1_i32_28 : i32
    %102 = arith.extui %101 : i1 to i32
    %c0_i32_29 = arith.constant 0 : i32
    %103 = arith.cmpi ne, %102, %c0_i32_29 : i32
    scf.if %103 {
      %c0_30 = arith.constant 0 : index
      %c0_31 = arith.constant 0 : index
      %104 = vector.load %arg8[%c0_30, %c0_31] : memref<128x8xf32, #tpu.memory_space<vmem>>, vector<128x8xf32>
      %105 = vector.extract_strided_slice %104 {offsets = [0, 0], sizes = [128, 1], strides = [1, 1]} : vector<128x8xf32> to vector<128x1xf32>
      %106 = vector.broadcast %105 : vector<128x1xf32> to vector<128x8xf32>
      %107 = arith.subf %104, %106 : vector<128x8xf32>
      %cst_32 = arith.constant 14.2857141 : f32
      %108 = vector.broadcast %cst_32 : f32 to vector<128x8xf32>
      %109 = arith.mulf %107, %108 : vector<128x8xf32>
      %110 = math.exp %109 : vector<128x8xf32>
      %cst_33 = arith.constant dense<0.000000e+00> : vector<128xf32>
      %111 = vector.multi_reduction <add>, %110, %cst_33 [1] : vector<128x8xf32> to vector<128xf32>
      %112 = vector.shape_cast %111 : vector<128xf32> to vector<128x1xf32>
      %c0_34 = arith.constant 0 : index
      %c0_35 = arith.constant 0 : index
      %113 = vector.load %arg5[%c0_34, %c0_35] : memref<128x1xf32, #tpu.memory_space<vmem>>, vector<128x1xf32>
      tpu.vector_store %arg5[%c0_34, %c0_35], %112 {strides = array<i32>} : memref<128x1xf32, #tpu.memory_space<vmem>>, vector<128x1xf32>,
      %c0_36 = arith.constant 0 : index
      %c0_37 = arith.constant 0 : index
      %114 = vector.load %arg6[%c0_36, %c0_37] : memref<128x1xf32, #tpu.memory_space<vmem>>, vector<128x1xf32>
      tpu.vector_store %arg6[%c0_36, %c0_37], %105 {strides = array<i32>} : memref<128x1xf32, #tpu.memory_space<vmem>>, vector<128x1xf32>,
    } else {
    }
    return
  }
  func.func @transform_0(%arg0: i32, %arg1: i32) -> (i32, i32) {
    %c0_i32 = arith.constant 0 : i32
    %c0_i32_0 = arith.constant 0 : i32
    return %arg0, %c0_i32 : i32, i32
  }
  func.func @transform_1(%arg0: i32, %arg1: i32) -> (i32, i32) {
    %c0_i32 = arith.constant 0 : i32
    %c0_i32_0 = arith.constant 0 : i32
    return %arg1, %c0_i32 : i32, i32
  }
  func.func @transform_2(%arg0: i32, %arg1: i32) -> (i32, i32) {
    %c0_i32 = arith.constant 0 : i32
    return %arg0, %arg1 : i32, i32
  }
  func.func @transform_3(%arg0: i32, %arg1: i32) -> (i32, i32) {
    %c0_i32 = arith.constant 0 : i32
    %c0_i32_0 = arith.constant 0 : i32
    return %arg0, %c0_i32 : i32, i32
  }
  func.func @transform_4(%arg0: i32, %arg1: i32) -> (i32, i32) {
    %c0_i32 = arith.constant 0 : i32
    %c0_i32_0 = arith.constant 0 : i32
    return %arg0, %c0_i32 : i32, i32
  }
}

</mosaic_0001>

<llo_original>
// kernel: tpu_custom_call.1
$region0: #{tpu_custom_call.1}
  #allocation0 [shape = 'u32[]', space=smem, size = 0x4, offset = 0x4, fixed_abs, tag = 'smem constant byte address 0x4 - core index']
  #allocation1 [shape = 'u32[72,128]{1,0:T(1,128)}', space=vmem, size = 0x9000, scoped, tag = 'internal scratch']
  #allocation2 [shape = 'bf16[128,64]{1,0:T(8,128)(2,1)}', space=vmem, size = 0x8000, scoped, tag = 'scratch operand']
  #allocation3 [shape = 'f32[128,8]{1,0:T(8,128)}', space=vmem, size = 0x10000, scoped, tag = 'scratch operand']
  %s0 = inlined_call_operand.vmem [shape: f32[256,64], index: 0, kind: input, shape index: {}]
  %s1 = inlined_call_operand.vmem [shape: bf16[512,64], index: 1, kind: input, shape index: {}]
  %s2 = inlined_call_operand.hbm [shape: f32[256,512], index: 2, kind: output, shape index: {0}]
  %s3 = inlined_call_operand.vmem [shape: f32[256,1], index: 3, kind: output, shape index: {1}]
  %s4 = inlined_call_operand.vmem [shape: f32[256,1], index: 4, kind: output, shape index: {2}]
  %5 = xla_tuple %s2, %s3, %s4
  %s6 = sld [smem:[#allocation0]]
  $region65: #{tpu_custom_call.1} parent=0
    _
  %s8 = ssub.s32 1, %s6
  %s9 = scalar_select 0, %s8, %s6
  $region1: #{tpu_custom_call.1} parent=0
    #allocation4 [shape = 'u8[262144]{0}', space=vmem, size = 0x40000, scoped, tag = 'output window, operand 0']
    #allocation5 [shape = 's32[2]{0}', space=sflag, size = 0x8, scoped, tag = 'scoped memory for tpu_custom_call.1']
    %10 = vsyncpa [#allocation5], 0
    %s11 = scalar_lea.sflag [#allocation5], 1
    %12 = vsyncpa %s11, 0
    loop: start=0, step=1, limit=6
    $region2: #{tpu_custom_call.1} parent=1 // loop_pre_header
      _
    $region3: #{tpu_custom_call.1} parent=1 // loop_header
      %s14 = sphi 0, %s18
      %p15 = scmp.ge.s32.totalorder %s14, 6
      %s21 = sphi 0, %s33
      %s22 = sphi 0, %s29
      %s23 = sphi 0, %s21
      %s24 = sphi 0, %s22
      %s25 = sphi 0, %s23
      %s26 = sphi 0, %s24
      %s36 = sphi 0, %s38
      %s39 = sphi 0, %s36
      %s40 = sphi 0, %s39
      %s56 = sphi 0, %s40
      %s62 = sphi 0, %s64
      %s65 = sphi 0, %s62
      %s66 = sphi 0, %s65
      %s82 = sphi 0, %s66
      %s90 = sphi 0, %s92
      %s93 = sphi 0, %s90
      %s94 = sphi 0, %s93
      %s110 = sphi 0, %s94
      %s116 = sphi 0, %s118
      %s119 = sphi 0, %s116
      %s120 = sphi 0, %s119
      %s136 = sphi 0, %s120
      %s142 = sphi 0, %s144
      %s145 = sphi 0, %s142
      %s146 = sphi 0, %s145
      %s162 = sphi 0, %s146
    $region4: #{tpu_custom_call.1} parent=1 // loop_header_branch
      %17 = sbr.rel (%p15) target = $region8
    $region5: #{tpu_custom_call.1} parent=1 // loop_body
      %s19 = ssub.s32 %s14, 1
      %s20 = ssub.s32 %s14, 2
      %s27 = sadd.s32 1, %s22
      %p28 = scmp.ge.s32.totalorder %s27, 2
      %s29 = scalar_select %p28, 0, %s27
      %s30 = sadd.s32 1, %s21
      %s31 = scalar_select %p28, %s30, %s21
      %p32 = scmp.ge.s32.totalorder %s31, 2
      %s33 = scalar_select %p32, 0, %s31
      %s34 = ssub.s32 %s21, %s33
      %p35 = scmp.eq.s32.totalorder %s34, 0
      %s37 = sadd.s32 %s36, 1
      %s38 = scalar_select %p35, %s36, %s37
      %p41 = pneg %p35
      %p42 = scmp.eq.s32.totalorder %s14, 3
      %p43 = por %p41, %p42
      %p44 = scmp.ne.s32.totalorder %s36, %s39
      %p45 = scmp.eq.s32.totalorder %s14, 0
      %p46 = por %p44, %p45
      %p47 = scmp.ne.s32.totalorder %s36, %s39
      %p48 = scmp.eq.s32.totalorder %s19, 3
      %p49 = por %p47, %p48
      %p50 = scmp.ne.s32.totalorder %s39, %s40
      %p51 = scmp.eq.s32.totalorder %s19, 0
      %p52 = por %p50, %p51
      %p53 = scmp.ne.s32.totalorder %s39, %s40
      %p54 = scmp.eq.s32.totalorder %s20, 3
      %p55 = por %p53, %p54
      %p57 = scmp.ne.s32.totalorder %s40, %s56
      %p58 = scmp.eq.s32.totalorder %s20, 0
      %p59 = por %p57, %p58
      %s60 = ssub.s32 %s22, %s29
      %p61 = scmp.eq.s32.totalorder %s60, 0
      %s63 = sadd.s32 %s62, 1
      %s64 = scalar_select %p61, %s62, %s63
      %p67 = pneg %p61
      %p68 = scmp.eq.s32.totalorder %s14, 3
      %p69 = por %p67, %p68
      %p70 = scmp.ne.s32.totalorder %s62, %s65
      %p71 = scmp.eq.s32.totalorder %s14, 0
      %p72 = por %p70, %p71
      %p73 = scmp.ne.s32.totalorder %s62, %s65
      %p74 = scmp.eq.s32.totalorder %s19, 3
      %p75 = por %p73, %p74
      %p76 = scmp.ne.s32.totalorder %s65, %s66
      %p77 = scmp.eq.s32.totalorder %s19, 0
      %p78 = por %p76, %p77
      %p79 = scmp.ne.s32.totalorder %s65, %s66
      %p80 = scmp.eq.s32.totalorder %s20, 3
      %p81 = por %p79, %p80
      %p83 = scmp.ne.s32.totalorder %s66, %s82
      %p84 = scmp.eq.s32.totalorder %s20, 0
      %p85 = por %p83, %p84
      %s86 = ssub.s32 %s21, %s33
      %s87 = ssub.s32 %s22, %s29
      %s88 = sor.u32 %s86, %s87
      %p89 = scmp.eq.s32.totalorder %s88, 0
      %s91 = sadd.s32 %s90, 1
      %s92 = scalar_select %p89, %s90, %s91
      %p95 = pneg %p89
      %p96 = scmp.eq.s32.totalorder %s14, 3
      %p97 = por %p95, %p96
      %p98 = scmp.ne.s32.totalorder %s90, %s93
      %p99 = scmp.eq.s32.totalorder %s14, 0
      %p100 = por %p98, %p99
      %p101 = scmp.ne.s32.totalorder %s90, %s93
      %p102 = scmp.eq.s32.totalorder %s19, 3
      %p103 = por %p101, %p102
      %p104 = scmp.ne.s32.totalorder %s93, %s94
      %p105 = scmp.eq.s32.totalorder %s19, 0
      %p106 = por %p104, %p105
      %p107 = scmp.ne.s32.totalorder %s93, %s94
      %p108 = scmp.eq.s32.totalorder %s20, 3
      %p109 = por %p107, %p108
      %p111 = scmp.ne.s32.totalorder %s94, %s110
      %p112 = scmp.eq.s32.totalorder %s20, 0
      %p113 = por %p111, %p112
      %s114 = ssub.s32 %s21, %s33
      %p115 = scmp.eq.s32.totalorder %s114, 0
      %s117 = sadd.s32 %s116, 1
      %s118 = scalar_select %p115, %s116, %s117
      %p121 = pneg %p115
      %p122 = scmp.eq.s32.totalorder %s14, 3
      %p123 = por %p121, %p122
      %p124 = scmp.ne.s32.totalorder %s116, %s119
      %p125 = scmp.eq.s32.totalorder %s14, 0
      %p126 = por %p124, %p125
      %p127 = scmp.ne.s32.totalorder %s116, %s119
      %p128 = scmp.eq.s32.totalorder %s19, 3
      %p129 = por %p127, %p128
      %p130 = scmp.ne.s32.totalorder %s119, %s120
      %p131 = scmp.eq.s32.totalorder %s19, 0
      %p132 = por %p130, %p131
      %p133 = scmp.ne.s32.totalorder %s119, %s120
      %p134 = scmp.eq.s32.totalorder %s20, 3
      %p135 = por %p133, %p134
      %p137 = scmp.ne.s32.totalorder %s120, %s136
      %p138 = scmp.eq.s32.totalorder %s20, 0
      %p139 = por %p137, %p138
      %s140 = ssub.s32 %s21, %s33
      %p141 = scmp.eq.s32.totalorder %s140, 0
      %s143 = sadd.s32 %s142, 1
      %s144 = scalar_select %p141, %s142, %s143
      %p147 = pneg %p141
      %p148 = scmp.eq.s32.totalorder %s14, 3
      %p149 = por %p147, %p148
      %p150 = scmp.ne.s32.totalorder %s142, %s145
      %p151 = scmp.eq.s32.totalorder %s14, 0
      %p152 = por %p150, %p151
      %p153 = scmp.ne.s32.totalorder %s142, %s145
      %p154 = scmp.eq.s32.totalorder %s19, 3
      %p155 = por %p153, %p154
      %p156 = scmp.ne.s32.totalorder %s145, %s146
      %p157 = scmp.eq.s32.totalorder %s19, 0
      %p158 = por %p156, %p157
      %p159 = scmp.ne.s32.totalorder %s145, %s146
      %p160 = scmp.eq.s32.totalorder %s20, 3
      %p161 = por %p159, %p160
      %p163 = scmp.ne.s32.totalorder %s146, %s162
      %p164 = scmp.eq.s32.totalorder %s20, 0
      %p165 = por %p163, %p164
      %p166 = scmp.le.s32.totalorder 1, %s14
      %p167 = scmp.lt.s32.totalorder %s14, 5
      %p168 = pnand %p166, %p167
      %p169 = pneg %p168
      // Predicated region
      $region9: #{tpu_custom_call.1} parent=5 // pred_check
        _
      $region10: #{tpu_custom_call.1} parent=5 // pred_check_branch
        %171 = sbr.rel (%p168) target = $region12
      $region11: #{tpu_custom_call.1} parent=5 // pred_region
        %s172 = ssub.s32 %s14, 1
      $region12: #{tpu_custom_call.1} parent=5 // pred_fallthru
        _
      %p173 = scmp.lt.s32.totalorder %s14, 4
      // Predicated region
      $region13: #{tpu_custom_call.1} parent=5 // pred_check
        %p174 = pneg %p173
      $region14: #{tpu_custom_call.1} parent=5 // pred_check_branch
        %176 = sbr.rel (%p174) target = $region16
      $region15: #{tpu_custom_call.1} parent=5 // pred_region
        // Predicated region
        $region17: #{tpu_custom_call.1} parent=15 // pred_check
          %p177 = pneg %p46
        $region18: #{tpu_custom_call.1} parent=15 // pred_check_branch
          %179 = sbr.rel (%p177) target = $region20
        $region19: #{tpu_custom_call.1} parent=15 // pred_region
          %s180 = smul.u32 16, %s21
          %p181 = scmp.lt.s32.totalorder %s180, 31
          %s182 = scalar_select %p181, %s180, 31
          %s183 = smul.addr %s182, 8
          %s184 = scalar_lea.vmem %s0, %s183
          %s185 = smul.u32 16, %s21
        $region20: #{tpu_custom_call.1} parent=15 // pred_fallthru
          _
        // Predicated region
        $region21: #{tpu_custom_call.1} parent=15 // pred_check
          %p186 = pneg %p72
        $region22: #{tpu_custom_call.1} parent=15 // pred_check_branch
          %188 = sbr.rel (%p186) target = $region24
        $region23: #{tpu_custom_call.1} parent=15 // pred_region
          %s189 = smul.u32 32, %s22
          %p190 = scmp.lt.s32.totalorder %s189, 63
          %s191 = scalar_select %p190, %s189, 63
          %s192 = smul.addr %s191, 4
          %s193 = scalar_lea.vmem %s1, %s192
          %s194 = smul.u32 32, %s22
        $region24: #{tpu_custom_call.1} parent=15 // pred_fallthru
          _
      $region16: #{tpu_custom_call.1} parent=5 // pred_fallthru
        _
      %p195 = scmp.le.s32.totalorder 1, %s14
      %p196 = scmp.lt.s32.totalorder %s14, 5
      %p197 = pnand %p195, %p196
      %p198 = pneg %p197
      // Predicated region
      $region25: #{tpu_custom_call.1} parent=5 // pred_check
        _
      $region26: #{tpu_custom_call.1} parent=5 // pred_check_branch
        %200 = sbr.rel (%p197) target = $region28
      $region27: #{tpu_custom_call.1} parent=5 // pred_region
        %s201 = ssub.s32 %s14, 1
        %s202 = smul.u32 16, %s23
        %p203 = scmp.lt.s32.totalorder %s202, 31
        %s204 = scalar_select %p203, %s202, 31
        %s205 = smul.addr %s204, 8
        %s206 = scalar_lea.vmem %s0, %s205
        %p207 = pneg %p52
        %p208 = pneg %p49
        %s209 = smul.u32 32, %s24
        %p210 = scmp.lt.s32.totalorder %s209, 63
        %s211 = scalar_select %p210, %s209, 63
        %s212 = smul.addr %s211, 4
        %s213 = scalar_lea.vmem %s1, %s212
        %p214 = pneg %p78
        %p215 = pneg %p75
        %p216 = pneg %p106
        %p217 = pneg %p103
        %s218 = sand.u32 %s93, 1
        %s219 = scalar_lea.sflag [#allocation5], %s218
        %s220 = sand.u32 %s93, 1
        %s221 = smul.addr %s220, 256
        %s222 = scalar_lea.vmem [#allocation4], %s221
        %p223 = pneg %p132
        %p224 = pneg %p129
        %s225 = smul.u32 16, %s23
        %p226 = scmp.lt.s32.totalorder %s225, 31
        %s227 = scalar_select %p226, %s225, 31
        %s228 = smul.addr %s227, 8
        %s229 = scalar_lea.vmem %s3, %s228
        %p230 = pneg %p158
        %p231 = pneg %p155
        %s232 = smul.u32 16, %s23
        %p233 = scmp.lt.s32.totalorder %s232, 31
        %s234 = scalar_select %p233, %s232, 31
        %s235 = smul.addr %s234, 8
        %s236 = scalar_lea.vmem %s4, %s235
        %s237 = smul.u32 16, %s23
        %p238 = scmp.lt.s32.totalorder %s237, 31
        %s239 = scalar_select %p238, %s237, 31
        %s240 = smul.addr %s239, 8
        %s241 = scalar_lea.vmem %s0, %s240
        %s242 = smul.u32 16, %s23
        %s243 = smul.u32 32, %s24
        %p244 = scmp.lt.s32.totalorder %s243, 63
        %s245 = scalar_select %p244, %s243, 63
        %s246 = smul.addr %s245, 4
        %s247 = scalar_lea.vmem %s1, %s246
        %s248 = smul.u32 32, %s24
        %s249 = smul.u32 16, %s23
        %s250 = smul.u32 2, %s24
        %s251 = smul.u32 16, %s23
        %p252 = scmp.lt.s32.totalorder %s251, 31
        %s253 = scalar_select %p252, %s251, 31
        %s254 = smul.addr %s253, 8
        %s255 = scalar_lea.vmem %s3, %s254
        %s256 = smul.u32 16, %s23
        %s257 = smul.u32 16, %s23
        %p258 = scmp.lt.s32.totalorder %s257, 31
        %s259 = scalar_select %p258, %s257, 31
        %s260 = smul.addr %s259, 8
        %s261 = scalar_lea.vmem %s4, %s260
        %s262 = smul.u32 16, %s23
        %p263 = scmp.eq.s32.totalorder %s24, 0
        // Predicated region
        $region29: #{tpu_custom_call.1} parent=27 // pred_check
          %p264 = pneg %p263
        $region30: #{tpu_custom_call.1} parent=27 // pred_check_branch
          %266 = sbr.rel (%p264) target = $region32
        $region31: #{tpu_custom_call.1} parent=27 // pred_region
          %v267 = vld [vmem:[%s241] sm:$0xff]
          %v268 = vld [vmem:[%s241 + $0x8] sm:$0xff]
          %v269 = vld [vmem:[%s241 + $0x10] sm:$0xff]
          %v270 = vld [vmem:[%s241 + $0x18] sm:$0xff]
          %v271 = vld [vmem:[%s241 + $0x20] sm:$0xff]
          %v272 = vld [vmem:[%s241 + $0x28] sm:$0xff]
          %v273 = vld [vmem:[%s241 + $0x30] sm:$0xff]
          %v274 = vld [vmem:[%s241 + $0x38] sm:$0xff]
          %v275 = vld [vmem:[%s241 + $0x40] sm:$0xff]
          %v276 = vld [vmem:[%s241 + $0x48] sm:$0xff]
          %v277 = vld [vmem:[%s241 + $0x50] sm:$0xff]
          %v278 = vld [vmem:[%s241 + $0x58] sm:$0xff]
          %v279 = vld [vmem:[%s241 + $0x60] sm:$0xff]
          %v280 = vld [vmem:[%s241 + $0x68] sm:$0xff]
          %v281 = vld [vmem:[%s241 + $0x70] sm:$0xff]
          %v282 = vld [vmem:[%s241 + $0x78] sm:$0xff]
          %v283 = vmul.f32 %v267, %v267
          %v284 = vmul.f32 %v268, %v268
          %v285 = vmul.f32 %v269, %v269
          %v286 = vmul.f32 %v270, %v270
          %v287 = vmul.f32 %v271, %v271
          %v288 = vmul.f32 %v272, %v272
          %v289 = vmul.f32 %v273, %v273
          %v290 = vmul.f32 %v274, %v274
          %v291 = vmul.f32 %v275, %v275
          %v292 = vmul.f32 %v276, %v276
          %v293 = vmul.f32 %v277, %v277
          %v294 = vmul.f32 %v278, %v278
          %v295 = vmul.f32 %v279, %v279
          %v296 = vmul.f32 %v280, %v280
          %v297 = vmul.f32 %v281, %v281
          %v298 = vmul.f32 %v282, %v282
          %vm299 = vcmask 523264
          %v300 = vsel %vm299, %v283, 0.0
          %301 = vadd.xlane.f32.xlu0 %v300
          %v302 = vpop.xlane.xlu0 %301
          %v303 = vsel %vm299, %v284, 0.0
          %304 = vadd.xlane.f32.xlu0 %v303
          %v305 = vpop.xlane.xlu0 %304
          %v306 = vsel %vm299, %v285, 0.0
          %307 = vadd.xlane.f32.xlu0 %v306
          %v308 = vpop.xlane.xlu0 %307
          %v309 = vsel %vm299, %v286, 0.0
          %310 = vadd.xlane.f32.xlu0 %v309
          %v311 = vpop.xlane.xlu0 %310
          %v312 = vsel %vm299, %v287, 0.0
          %313 = vadd.xlane.f32.xlu0 %v312
          %v314 = vpop.xlane.xlu0 %313
          %v315 = vsel %vm299, %v288, 0.0
          %316 = vadd.xlane.f32.xlu0 %v315
          %v317 = vpop.xlane.xlu0 %316
          %v318 = vsel %vm299, %v289, 0.0
          %319 = vadd.xlane.f32.xlu0 %v318
          %v320 = vpop.xlane.xlu0 %319
          %v321 = vsel %vm299, %v290, 0.0
          %322 = vadd.xlane.f32.xlu0 %v321
          %v323 = vpop.xlane.xlu0 %322
          %v324 = vsel %vm299, %v291, 0.0
          %325 = vadd.xlane.f32.xlu0 %v324
          %v326 = vpop.xlane.xlu0 %325
          %v327 = vsel %vm299, %v292, 0.0
          %328 = vadd.xlane.f32.xlu0 %v327
          %v329 = vpop.xlane.xlu0 %328
          %v330 = vsel %vm299, %v293, 0.0
          %331 = vadd.xlane.f32.xlu0 %v330
          %v332 = vpop.xlane.xlu0 %331
          %v333 = vsel %vm299, %v294, 0.0
          %334 = vadd.xlane.f32.xlu0 %v333
          %v335 = vpop.xlane.xlu0 %334
          %v336 = vsel %vm299, %v295, 0.0
          %337 = vadd.xlane.f32.xlu0 %v336
          %v338 = vpop.xlane.xlu0 %337
          %v339 = vsel %vm299, %v296, 0.0
          %340 = vadd.xlane.f32.xlu0 %v339
          %v341 = vpop.xlane.xlu0 %340
          %v342 = vsel %vm299, %v297, 0.0
          %343 = vadd.xlane.f32.xlu0 %v342
          %v344 = vpop.xlane.xlu0 %343
          %v345 = vsel %vm299, %v298, 0.0
          %346 = vadd.xlane.f32.xlu0 %v345
          %v347 = vpop.xlane.xlu0 %346
          %v348 = vrsqrt.pop %v302
          %v349 = vmul.f32 %v348, %v302
          %v350 = vmul.f32 %v349, %v348
          %v351 = vmul.f32 0.5, %v350
          %v352 = vsub.f32 1.5, %v351
          %v353 = vmul.f32 %v348, %v352
          %vm354 = vweird.f32 %v302
          %vm355 = vweird.f32 %v348
          %vm356 = vmor %vm354, %vm355
          %v357 = vsel %vm356, %v348, %v353
          %v358 = vrsqrt.pop %v305
          %v359 = vmul.f32 %v358, %v305
          %v360 = vmul.f32 %v359, %v358
          %v361 = vmul.f32 0.5, %v360
          %v362 = vsub.f32 1.5, %v361
          %v363 = vmul.f32 %v358, %v362
          %vm364 = vweird.f32 %v305
          %vm365 = vweird.f32 %v358
          %vm366 = vmor %vm364, %vm365
          %v367 = vsel %vm366, %v358, %v363
          %v368 = vrsqrt.pop %v308
          %v369 = vmul.f32 %v368, %v308
          %v370 = vmul.f32 %v369, %v368
          %v371 = vmul.f32 0.5, %v370
          %v372 = vsub.f32 1.5, %v371
          %v373 = vmul.f32 %v368, %v372
          %vm374 = vweird.f32 %v308
          %vm375 = vweird.f32 %v368
          %vm376 = vmor %vm374, %vm375
          %v377 = vsel %vm376, %v368, %v373
          %v378 = vrsqrt.pop %v311
          %v379 = vmul.f32 %v378, %v311
          %v380 = vmul.f32 %v379, %v378
          %v381 = vmul.f32 0.5, %v380
          %v382 = vsub.f32 1.5, %v381
          %v383 = vmul.f32 %v378, %v382
          %vm384 = vweird.f32 %v311
          %vm385 = vweird.f32 %v378
          %vm386 = vmor %vm384, %vm385
          %v387 = vsel %vm386, %v378, %v383
          %v388 = vrsqrt.pop %v314
          %v389 = vmul.f32 %v388, %v314
          %v390 = vmul.f32 %v389, %v388
          %v391 = vmul.f32 0.5, %v390
          %v392 = vsub.f32 1.5, %v391
          %v393 = vmul.f32 %v388, %v392
          %vm394 = vweird.f32 %v314
          %vm395 = vweird.f32 %v388
          %vm396 = vmor %vm394, %vm395
          %v397 = vsel %vm396, %v388, %v393
          %v398 = vrsqrt.pop %v317
          %v399 = vmul.f32 %v398, %v317
          %v400 = vmul.f32 %v399, %v398
          %v401 = vmul.f32 0.5, %v400
          %v402 = vsub.f32 1.5, %v401
          %v403 = vmul.f32 %v398, %v402
          %vm404 = vweird.f32 %v317
          %vm405 = vweird.f32 %v398
          %vm406 = vmor %vm404, %vm405
          %v407 = vsel %vm406, %v398, %v403
          %v408 = vrsqrt.pop %v320
          %v409 = vmul.f32 %v408, %v320
          %v410 = vmul.f32 %v409, %v408
          %v411 = vmul.f32 0.5, %v410
          %v412 = vsub.f32 1.5, %v411
          %v413 = vmul.f32 %v408, %v412
          %vm414 = vweird.f32 %v320
          %vm415 = vweird.f32 %v408
          %vm416 = vmor %vm414, %vm415
          %v417 = vsel %vm416, %v408, %v413
          %v418 = vrsqrt.pop %v323
          %v419 = vmul.f32 %v418, %v323
          %v420 = vmul.f32 %v419, %v418
          %v421 = vmul.f32 0.5, %v420
          %v422 = vsub.f32 1.5, %v421
          %v423 = vmul.f32 %v418, %v422
          %vm424 = vweird.f32 %v323
          %vm425 = vweird.f32 %v418
          %vm426 = vmor %vm424, %vm425
          %v427 = vsel %vm426, %v418, %v423
          %v428 = vrsqrt.pop %v326
          %v429 = vmul.f32 %v428, %v326
          %v430 = vmul.f32 %v429, %v428
          %v431 = vmul.f32 0.5, %v430
          %v432 = vsub.f32 1.5, %v431
          %v433 = vmul.f32 %v428, %v432
          %vm434 = vweird.f32 %v326
          %vm435 = vweird.f32 %v428
          %vm436 = vmor %vm434, %vm435
          %v437 = vsel %vm436, %v428, %v433
          %v438 = vrsqrt.pop %v329
          %v439 = vmul.f32 %v438, %v329
          %v440 = vmul.f32 %v439, %v438
          %v441 = vmul.f32 0.5, %v440
          %v442 = vsub.f32 1.5, %v441
          %v443 = vmul.f32 %v438, %v442
          %vm444 = vweird.f32 %v329
          %vm445 = vweird.f32 %v438
          %vm446 = vmor %vm444, %vm445
          %v447 = vsel %vm446, %v438, %v443
          %v448 = vrsqrt.pop %v332
          %v449 = vmul.f32 %v448, %v332
          %v450 = vmul.f32 %v449, %v448
          %v451 = vmul.f32 0.5, %v450
          %v452 = vsub.f32 1.5, %v451
          %v453 = vmul.f32 %v448, %v452
          %vm454 = vweird.f32 %v332
          %vm455 = vweird.f32 %v448
          %vm456 = vmor %vm454, %vm455
          %v457 = vsel %vm456, %v448, %v453
          %v458 = vrsqrt.pop %v335
          %v459 = vmul.f32 %v458, %v335
          %v460 = vmul.f32 %v459, %v458
          %v461 = vmul.f32 0.5, %v460
          %v462 = vsub.f32 1.5, %v461
          %v463 = vmul.f32 %v458, %v462
          %vm464 = vweird.f32 %v335
          %vm465 = vweird.f32 %v458
          %vm466 = vmor %vm464, %vm465
          %v467 = vsel %vm466, %v458, %v463
          %v468 = vrsqrt.pop %v338
          %v469 = vmul.f32 %v468, %v338
          %v470 = vmul.f32 %v469, %v468
          %v471 = vmul.f32 0.5, %v470
          %v472 = vsub.f32 1.5, %v471
          %v473 = vmul.f32 %v468, %v472
          %vm474 = vweird.f32 %v338
          %vm475 = vweird.f32 %v468
          %vm476 = vmor %vm474, %vm475
          %v477 = vsel %vm476, %v468, %v473
          %v478 = vrsqrt.pop %v341
          %v479 = vmul.f32 %v478, %v341
          %v480 = vmul.f32 %v479, %v478
          %v481 = vmul.f32 0.5, %v480
          %v482 = vsub.f32 1.5, %v481
          %v483 = vmul.f32 %v478, %v482
          %vm484 = vweird.f32 %v341
          %vm485 = vweird.f32 %v478
          %vm486 = vmor %vm484, %vm485
          %v487 = vsel %vm486, %v478, %v483
          %v488 = vrsqrt.pop %v344
          %v489 = vmul.f32 %v488, %v344
          %v490 = vmul.f32 %v489, %v488
          %v491 = vmul.f32 0.5, %v490
          %v492 = vsub.f32 1.5, %v491
          %v493 = vmul.f32 %v488, %v492
          %vm494 = vweird.f32 %v344
          %vm495 = vweird.f32 %v488
          %vm496 = vmor %vm494, %vm495
          %v497 = vsel %vm496, %v488, %v493
          %v498 = vrsqrt.pop %v347
          %v499 = vmul.f32 %v498, %v347
          %v500 = vmul.f32 %v499, %v498
          %v501 = vmul.f32 0.5, %v500
          %v502 = vsub.f32 1.5, %v501
          %v503 = vmul.f32 %v498, %v502
          %vm504 = vweird.f32 %v347
          %vm505 = vweird.f32 %v498
          %vm506 = vmor %vm504, %vm505
          %v507 = vsel %vm506, %v498, %v503
          %v508 = vmul.f32 %v267, %v357
          %v509 = vmul.f32 %v268, %v367
          %v510 = vmul.f32 %v269, %v377
          %v511 = vmul.f32 %v270, %v387
          %v512 = vmul.f32 %v271, %v397
          %v513 = vmul.f32 %v272, %v407
          %v514 = vmul.f32 %v273, %v417
          %v515 = vmul.f32 %v274, %v427
          %v516 = vmul.f32 %v275, %v437
          %v517 = vmul.f32 %v276, %v447
          %v518 = vmul.f32 %v277, %v457
          %v519 = vmul.f32 %v278, %v467
          %v520 = vmul.f32 %v279, %v477
          %v521 = vmul.f32 %v280, %v487
          %v522 = vmul.f32 %v281, %v497
          %v523 = vmul.f32 %v282, %v507
          %v524 = vpack.c.bf16 %v508, %v508
          %v525 = vpack.c.bf16 %v509, %v509
          %v526 = vpack.c.bf16 %v510, %v510
          %v527 = vpack.c.bf16 %v511, %v511
          %v528 = vpack.c.bf16 %v512, %v512
          %v529 = vpack.c.bf16 %v513, %v513
          %v530 = vpack.c.bf16 %v514, %v514
          %v531 = vpack.c.bf16 %v515, %v515
          %v532 = vpack.c.bf16 %v516, %v516
          %v533 = vpack.c.bf16 %v517, %v517
          %v534 = vpack.c.bf16 %v518, %v518
          %v535 = vpack.c.bf16 %v519, %v519
          %v536 = vpack.c.bf16 %v520, %v520
          %v537 = vpack.c.bf16 %v521, %v521
          %v538 = vpack.c.bf16 %v522, %v522
          %v539 = vpack.c.bf16 %v523, %v523
          %vm540 = vcmask 519168
          %541 = vst.msk [vmem:[#allocation2] sm:$0xf] %vm540, %v524
          %542 = vst.msk [vmem:[#allocation2 + $0x4] sm:$0xf] %vm540, %v525
          %543 = vst.msk [vmem:[#allocation2 + $0x8] sm:$0xf] %vm540, %v526
          %544 = vst.msk [vmem:[#allocation2 + $0xc] sm:$0xf] %vm540, %v527
          %545 = vst.msk [vmem:[#allocation2 + $0x10] sm:$0xf] %vm540, %v528
          %546 = vst.msk [vmem:[#allocation2 + $0x14] sm:$0xf] %vm540, %v529
          %547 = vst.msk [vmem:[#allocation2 + $0x18] sm:$0xf] %vm540, %v530
          %548 = vst.msk [vmem:[#allocation2 + $0x1c] sm:$0xf] %vm540, %v531
          %549 = vst.msk [vmem:[#allocation2 + $0x20] sm:$0xf] %vm540, %v532
          %550 = vst.msk [vmem:[#allocation2 + $0x24] sm:$0xf] %vm540, %v533
          %551 = vst.msk [vmem:[#allocation2 + $0x28] sm:$0xf] %vm540, %v534
          %552 = vst.msk [vmem:[#allocation2 + $0x2c] sm:$0xf] %vm540, %v535
          %553 = vst.msk [vmem:[#allocation2 + $0x30] sm:$0xf] %vm540, %v536
          %554 = vst.msk [vmem:[#allocation2 + $0x34] sm:$0xf] %vm540, %v537
          %555 = vst.msk [vmem:[#allocation2 + $0x38] sm:$0xf] %vm540, %v538
          %556 = vst.msk [vmem:[#allocation2 + $0x3c] sm:$0xf] %vm540, %v539
          %vm557 = vcmask 64512
          %558 = vst.msk [vmem:[#allocation3] sm:$0xff] %vm557, -inf
          %559 = vst.msk [vmem:[#allocation3 + $0x8] sm:$0xff] %vm557, -inf
          %560 = vst.msk [vmem:[#allocation3 + $0x10] sm:$0xff] %vm557, -inf
          %561 = vst.msk [vmem:[#allocation3 + $0x18] sm:$0xff] %vm557, -inf
          %562 = vst.msk [vmem:[#allocation3 + $0x20] sm:$0xff] %vm557, -inf
          %563 = vst.msk [vmem:[#allocation3 + $0x28] sm:$0xff] %vm557, -inf
          %564 = vst.msk [vmem:[#allocation3 + $0x30] sm:$0xff] %vm557, -inf
          %565 = vst.msk [vmem:[#allocation3 + $0x38] sm:$0xff] %vm557, -inf
          %566 = vst.msk [vmem:[#allocation3 + $0x40] sm:$0xff] %vm557, -inf
          %567 = vst.msk [vmem:[#allocation3 + $0x48] sm:$0xff] %vm557, -inf
          %568 = vst.msk [vmem:[#allocation3 + $0x50] sm:$0xff] %vm557, -inf
          %569 = vst.msk [vmem:[#allocation3 + $0x58] sm:$0xff] %vm557, -inf
          %570 = vst.msk [vmem:[#allocation3 + $0x60] sm:$0xff] %vm557, -inf
          %571 = vst.msk [vmem:[#allocation3 + $0x68] sm:$0xff] %vm557, -inf
          %572 = vst.msk [vmem:[#allocation3 + $0x70] sm:$0xff] %vm557, -inf
          %573 = vst.msk [vmem:[#allocation3 + $0x78] sm:$0xff] %vm557, -inf
        $region32: #{tpu_custom_call.1} parent=27 // pred_fallthru
          _
        %v574 = vld [vmem:[%s247] sm:$0xf]
        %v575 = vld [vmem:[%s247 + $0x4] sm:$0xf]
        %v576 = vld [vmem:[%s247 + $0x8] sm:$0xf]
        %v577 = vld [vmem:[%s247 + $0xc] sm:$0xf]
        %v578 = vld [vmem:[%s247 + $0x10] sm:$0xf]
        %v579 = vld [vmem:[%s247 + $0x14] sm:$0xf]
        %v580 = vld [vmem:[%s247 + $0x18] sm:$0xf]
        %v581 = vld [vmem:[%s247 + $0x1c] sm:$0xf]
        %v582 = vld [vmem:[%s247 + $0x20] sm:$0xf]
        %v583 = vld [vmem:[%s247 + $0x24] sm:$0xf]
        %v584 = vld [vmem:[%s247 + $0x28] sm:$0xf]
        %v585 = vld [vmem:[%s247 + $0x2c] sm:$0xf]
        %v586 = vld [vmem:[%s247 + $0x30] sm:$0xf]
        %v587 = vld [vmem:[%s247 + $0x34] sm:$0xf]
        %v588 = vld [vmem:[%s247 + $0x38] sm:$0xf]
        %v589 = vld [vmem:[%s247 + $0x3c] sm:$0xf]
        %v590 = vld [vmem:[%s247 + $0x40] sm:$0xf]
        %v591 = vld [vmem:[%s247 + $0x44] sm:$0xf]
        %v592 = vld [vmem:[%s247 + $0x48] sm:$0xf]
        %v593 = vld [vmem:[%s247 + $0x4c] sm:$0xf]
        %v594 = vld [vmem:[%s247 + $0x50] sm:$0xf]
        %v595 = vld [vmem:[%s247 + $0x54] sm:$0xf]
        %v596 = vld [vmem:[%s247 + $0x58] sm:$0xf]
        %v597 = vld [vmem:[%s247 + $0x5c] sm:$0xf]
        %v598 = vld [vmem:[%s247 + $0x60] sm:$0xf]
        %v599 = vld [vmem:[%s247 + $0x64] sm:$0xf]
        %v600 = vld [vmem:[%s247 + $0x68] sm:$0xf]
        %v601 = vld [vmem:[%s247 + $0x6c] sm:$0xf]
        %v602 = vld [vmem:[%s247 + $0x70] sm:$0xf]
        %v603 = vld [vmem:[%s247 + $0x74] sm:$0xf]
        %v604 = vld [vmem:[%s247 + $0x78] sm:$0xf]
        %v605 = vld [vmem:[%s247 + $0x7c] sm:$0xf]
        %v606 = vld [vmem:[#allocation2] sm:$0xf]
        %v607 = vld [vmem:[#allocation2 + $0x4] sm:$0xf]
        %v608 = vld [vmem:[#allocation2 + $0x8] sm:$0xf]
        %v609 = vld [vmem:[#allocation2 + $0xc] sm:$0xf]
        %v610 = vld [vmem:[#allocation2 + $0x10] sm:$0xf]
        %v611 = vld [vmem:[#allocation2 + $0x14] sm:$0xf]
        %v612 = vld [vmem:[#allocation2 + $0x18] sm:$0xf]
        %v613 = vld [vmem:[#allocation2 + $0x1c] sm:$0xf]
        %v614 = vld [vmem:[#allocation2 + $0x20] sm:$0xf]
        %v615 = vld [vmem:[#allocation2 + $0x24] sm:$0xf]
        %v616 = vld [vmem:[#allocation2 + $0x28] sm:$0xf]
        %v617 = vld [vmem:[#allocation2 + $0x2c] sm:$0xf]
        %v618 = vld [vmem:[#allocation2 + $0x30] sm:$0xf]
        %v619 = vld [vmem:[#allocation2 + $0x34] sm:$0xf]
        %v620 = vld [vmem:[#allocation2 + $0x38] sm:$0xf]
        %v621 = vld [vmem:[#allocation2 + $0x3c] sm:$0xf]
        %v638 = vunpack.c.l.b16 %v606
        %v639 = vunpack.c.l.b16 %v607
        %v640 = vunpack.c.l.b16 %v608
        %v641 = vunpack.c.l.b16 %v609
        %v642 = vunpack.c.l.b16 %v610
        %v643 = vunpack.c.l.b16 %v611
        %v644 = vunpack.c.l.b16 %v612
        %v645 = vunpack.c.l.b16 %v613
        %v646 = vunpack.c.l.b16 %v614
        %v647 = vunpack.c.l.b16 %v615
        %v648 = vunpack.c.l.b16 %v616
        %v649 = vunpack.c.l.b16 %v617
        %v650 = vunpack.c.l.b16 %v618
        %v651 = vunpack.c.l.b16 %v619
        %v652 = vunpack.c.l.b16 %v620
        %v653 = vunpack.c.l.b16 %v621
        %v654 = vpack.c.b16 %v639, %v638
        %v655 = vpack.c.b16 %v641, %v640
        %v656 = vpack.c.b16 %v643, %v642
        %v657 = vpack.c.b16 %v645, %v644
        %v658 = vpack.c.b16 %v647, %v646
        %v659 = vpack.c.b16 %v649, %v648
        %v660 = vpack.c.b16 %v651, %v650
        %v661 = vpack.c.b16 %v653, %v652
        %v694 = vunpack.c.l.b16 %v574
        %v695 = vunpack.c.l.b16 %v575
        %v696 = vunpack.c.l.b16 %v576
        %v697 = vunpack.c.l.b16 %v577
        %v698 = vunpack.c.l.b16 %v578
        %v699 = vunpack.c.l.b16 %v579
        %v700 = vunpack.c.l.b16 %v580
        %v701 = vunpack.c.l.b16 %v581
        %v702 = vunpack.c.l.b16 %v582
        %v703 = vunpack.c.l.b16 %v583
        %v704 = vunpack.c.l.b16 %v584
        %v705 = vunpack.c.l.b16 %v585
        %v706 = vunpack.c.l.b16 %v586
        %v707 = vunpack.c.l.b16 %v587
        %v708 = vunpack.c.l.b16 %v588
        %v709 = vunpack.c.l.b16 %v589
        %v710 = vunpack.c.l.b16 %v590
        %v711 = vunpack.c.l.b16 %v591
        %v712 = vunpack.c.l.b16 %v592
        %v713 = vunpack.c.l.b16 %v593
        %v714 = vunpack.c.l.b16 %v594
        %v715 = vunpack.c.l.b16 %v595
        %v716 = vunpack.c.l.b16 %v596
        %v717 = vunpack.c.l.b16 %v597
        %v718 = vunpack.c.l.b16 %v598
        %v719 = vunpack.c.l.b16 %v599
        %v720 = vunpack.c.l.b16 %v600
        %v721 = vunpack.c.l.b16 %v601
        %v722 = vunpack.c.l.b16 %v602
        %v723 = vunpack.c.l.b16 %v603
        %v724 = vunpack.c.l.b16 %v604
        %v725 = vunpack.c.l.b16 %v605
        %v726 = vpack.c.b16 %v695, %v694
        %v727 = vpack.c.b16 %v697, %v696
        %v728 = vpack.c.b16 %v699, %v698
        %v729 = vpack.c.b16 %v701, %v700
        %v730 = vpack.c.b16 %v703, %v702
        %v731 = vpack.c.b16 %v705, %v704
        %v732 = vpack.c.b16 %v707, %v706
        %v733 = vpack.c.b16 %v709, %v708
        %v734 = vpack.c.b16 %v711, %v710
        %v735 = vpack.c.b16 %v713, %v712
        %v736 = vpack.c.b16 %v715, %v714
        %v737 = vpack.c.b16 %v717, %v716
        %v738 = vpack.c.b16 %v719, %v718
        %v739 = vpack.c.b16 %v721, %v720
        %v740 = vpack.c.b16 %v723, %v722
        %v741 = vpack.c.b16 %v725, %v724
        %vm742 = vcmask 523264
        %v744 = vsel %vm742, %v654, 0
        %v747 = vsel %vm742, %v655, 0
        %v750 = vsel %vm742, %v656, 0
        %v753 = vsel %vm742, %v657, 0
        %v756 = vsel %vm742, %v658, 0
        %v759 = vsel %vm742, %v659, 0
        %v762 = vsel %vm742, %v660, 0
        %v765 = vsel %vm742, %v661, 0
        %v768 = vsel %vm742, %v726, 0
        %v771 = vsel %vm742, %v727, 0
        %v774 = vsel %vm742, %v728, 0
        %v777 = vsel %vm742, %v729, 0
        %v780 = vsel %vm742, %v730, 0
        %v783 = vsel %vm742, %v731, 0
        %v786 = vsel %vm742, %v732, 0
        %v789 = vsel %vm742, %v733, 0
        %v792 = vsel %vm742, %v734, 0
        %v795 = vsel %vm742, %v735, 0
        %v798 = vsel %vm742, %v736, 0
        %v801 = vsel %vm742, %v737, 0
        %v804 = vsel %vm742, %v738, 0
        %v807 = vsel %vm742, %v739, 0
        %v810 = vsel %vm742, %v740, 0
        %v813 = vsel %vm742, %v741, 0
        %815 = vmatpush.bf16.xpose.msra.mxu0 %v789
        %816 = vmatpush.bf16.xpose.msra.mxu0 %v786
        %817 = vmatpush.bf16.xpose.msra.mxu0 %v783
        %818 = vmatpush.bf16.xpose.msra.mxu0 %v780
        %819 = vmatpush.bf16.xpose.msra.mxu0 %v777
        %820 = vmatpush.bf16.xpose.msra.mxu0 %v774
        %821 = vmatpush.bf16.xpose.msra.mxu0 %v771
        %822 = vmatpush.bf16.xpose.msra.mxu0 %v768
        %823 = vmatmul.bf16.gmra.mxu0 %v744
        %v824 = vpop.f32.mrf.mxu0
        %v825 = vadd.f32 0.0, %v824
        %v826 = vpop.f32.mrf.mxu0
        %v827 = vadd.f32 0.0, %v826
        %828 = vmatmul.bf16.gmra.mxu0 %v747
        %v829 = vpop.f32.mrf.mxu0
        %v830 = vadd.f32 0.0, %v829
        %v831 = vpop.f32.mrf.mxu0
        %v832 = vadd.f32 0.0, %v831
        %833 = vmatmul.bf16.gmra.mxu0 %v750
        %v834 = vpop.f32.mrf.mxu0
        %v835 = vadd.f32 0.0, %v834
        %v836 = vpop.f32.mrf.mxu0
        %v837 = vadd.f32 0.0, %v836
        %838 = vmatmul.bf16.gmra.mxu0 %v753
        %v839 = vpop.f32.mrf.mxu0
        %v840 = vadd.f32 0.0, %v839
        %v841 = vpop.f32.mrf.mxu0
        %v842 = vadd.f32 0.0, %v841
        %843 = vmatmul.bf16.gmra.mxu0 %v756
        %v844 = vpop.f32.mrf.mxu0
        %v845 = vadd.f32 0.0, %v844
        %v846 = vpop.f32.mrf.mxu0
        %v847 = vadd.f32 0.0, %v846
        %848 = vmatmul.bf16.gmra.mxu0 %v759
        %v849 = vpop.f32.mrf.mxu0
        %v850 = vadd.f32 0.0, %v849
        %v851 = vpop.f32.mrf.mxu0
        %v852 = vadd.f32 0.0, %v851
        %853 = vmatmul.bf16.gmra.mxu0 %v762
        %v854 = vpop.f32.mrf.mxu0
        %v855 = vadd.f32 0.0, %v854
        %v856 = vpop.f32.mrf.mxu0
        %v857 = vadd.f32 0.0, %v856
        %858 = vmatmul.bf16.gmra.mxu0 %v765
        %v859 = vpop.f32.mrf.mxu0
        %v860 = vadd.f32 0.0, %v859
        %v861 = vpop.f32.mrf.mxu0
        %v862 = vadd.f32 0.0, %v861
        %863 = vdwg.mxu0
        %864 = vmatpush.bf16.xpose.msra.mxu0 %v813
        %865 = vmatpush.bf16.xpose.msra.mxu0 %v810
        %866 = vmatpush.bf16.xpose.msra.mxu0 %v807
        %867 = vmatpush.bf16.xpose.msra.mxu0 %v804
        %868 = vmatpush.bf16.xpose.msra.mxu0 %v801
        %869 = vmatpush.bf16.xpose.msra.mxu0 %v798
        %870 = vmatpush.bf16.xpose.msra.mxu0 %v795
        %871 = vmatpush.bf16.xpose.msra.mxu0 %v792
        %872 = vmatmul.bf16.gmra.mxu0 %v744
        %v873 = vpop.f32.mrf.mxu0
        %v874 = vadd.f32 0.0, %v873
        %v875 = vpop.f32.mrf.mxu0
        %v876 = vadd.f32 0.0, %v875
        %877 = vmatmul.bf16.gmra.mxu0 %v747
        %v878 = vpop.f32.mrf.mxu0
        %v879 = vadd.f32 0.0, %v878
        %v880 = vpop.f32.mrf.mxu0
        %v881 = vadd.f32 0.0, %v880
        %882 = vmatmul.bf16.gmra.mxu0 %v750
        %v883 = vpop.f32.mrf.mxu0
        %v884 = vadd.f32 0.0, %v883
        %v885 = vpop.f32.mrf.mxu0
        %v886 = vadd.f32 0.0, %v885
        %887 = vmatmul.bf16.gmra.mxu0 %v753
        %v888 = vpop.f32.mrf.mxu0
        %v889 = vadd.f32 0.0, %v888
        %v890 = vpop.f32.mrf.mxu0
        %v891 = vadd.f32 0.0, %v890
        %892 = vmatmul.bf16.gmra.mxu0 %v756
        %v893 = vpop.f32.mrf.mxu0
        %v894 = vadd.f32 0.0, %v893
        %v895 = vpop.f32.mrf.mxu0
        %v896 = vadd.f32 0.0, %v895
        %897 = vmatmul.bf16.gmra.mxu0 %v759
        %v898 = vpop.f32.mrf.mxu0
        %v899 = vadd.f32 0.0, %v898
        %v900 = vpop.f32.mrf.mxu0
        %v901 = vadd.f32 0.0, %v900
        %902 = vmatmul.bf16.gmra.mxu0 %v762
        %v903 = vpop.f32.mrf.mxu0
        %v904 = vadd.f32 0.0, %v903
        %v905 = vpop.f32.mrf.mxu0
        %v906 = vadd.f32 0.0, %v905
        %907 = vmatmul.bf16.gmra.mxu0 %v765
        %v908 = vpop.f32.mrf.mxu0
        %v909 = vadd.f32 0.0, %v908
        %v910 = vpop.f32.mrf.mxu0
        %v911 = vadd.f32 0.0, %v910
        %912 = vdwg.mxu0
        %913 = vst [vmem:[%s222] sm:$0xff] %v825
        %914 = vst [vmem:[%s222 + $0x8] sm:$0xff] %v874
        %915 = vst [vmem:[%s222 + $0x10] sm:$0xff] %v827
        %916 = vst [vmem:[%s222 + $0x18] sm:$0xff] %v876
        %917 = vst [vmem:[%s222 + $0x20] sm:$0xff] %v830
        %918 = vst [vmem:[%s222 + $0x28] sm:$0xff] %v879
        %919 = vst [vmem:[%s222 + $0x30] sm:$0xff] %v832
        %920 = vst [vmem:[%s222 + $0x38] sm:$0xff] %v881
        %921 = vst [vmem:[%s222 + $0x40] sm:$0xff] %v835
        %922 = vst [vmem:[%s222 + $0x48] sm:$0xff] %v884
        %923 = vst [vmem:[%s222 + $0x50] sm:$0xff] %v837
        %924 = vst [vmem:[%s222 + $0x58] sm:$0xff] %v886
        %925 = vst [vmem:[%s222 + $0x60] sm:$0xff] %v840
        %926 = vst [vmem:[%s222 + $0x68] sm:$0xff] %v889
        %927 = vst [vmem:[%s222 + $0x70] sm:$0xff] %v842
        %928 = vst [vmem:[%s222 + $0x78] sm:$0xff] %v891
        %929 = vst [vmem:[%s222 + $0x80] sm:$0xff] %v845
        %930 = vst [vmem:[%s222 + $0x88] sm:$0xff] %v894
        %931 = vst [vmem:[%s222 + $0x90] sm:$0xff] %v847
        %932 = vst [vmem:[%s222 + $0x98] sm:$0xff] %v896
        %933 = vst [vmem:[%s222 + $0xa0] sm:$0xff] %v850
        %934 = vst [vmem:[%s222 + $0xa8] sm:$0xff] %v899
        %935 = vst [vmem:[%s222 + $0xb0] sm:$0xff] %v852
        %936 = vst [vmem:[%s222 + $0xb8] sm:$0xff] %v901
        %937 = vst [vmem:[%s222 + $0xc0] sm:$0xff] %v855
        %938 = vst [vmem:[%s222 + $0xc8] sm:$0xff] %v904
        %939 = vst [vmem:[%s222 + $0xd0] sm:$0xff] %v857
        %940 = vst [vmem:[%s222 + $0xd8] sm:$0xff] %v906
        %941 = vst [vmem:[%s222 + $0xe0] sm:$0xff] %v860
        %942 = vst [vmem:[%s222 + $0xe8] sm:$0xff] %v909
        %943 = vst [vmem:[%s222 + $0xf0] sm:$0xff] %v862
        %944 = vst [vmem:[%s222 + $0xf8] sm:$0xff] %v911
        %v945 = vld [vmem:[#allocation3] sm:$0xff]
        %v946 = vld [vmem:[#allocation3 + $0x8] sm:$0xff]
        %v947 = vld [vmem:[#allocation3 + $0x10] sm:$0xff]
        %v948 = vld [vmem:[#allocation3 + $0x18] sm:$0xff]
        %v949 = vld [vmem:[#allocation3 + $0x20] sm:$0xff]
        %v950 = vld [vmem:[#allocation3 + $0x28] sm:$0xff]
        %v951 = vld [vmem:[#allocation3 + $0x30] sm:$0xff]
        %v952 = vld [vmem:[#allocation3 + $0x38] sm:$0xff]
        %v953 = vld [vmem:[#allocation3 + $0x40] sm:$0xff]
        %v954 = vld [vmem:[#allocation3 + $0x48] sm:$0xff]
        %v955 = vld [vmem:[#allocation3 + $0x50] sm:$0xff]
        %v956 = vld [vmem:[#allocation3 + $0x58] sm:$0xff]
        %v957 = vld [vmem:[#allocation3 + $0x60] sm:$0xff]
        %v958 = vld [vmem:[#allocation3 + $0x68] sm:$0xff]
        %v959 = vld [vmem:[#allocation3 + $0x70] sm:$0xff]
        %v960 = vld [vmem:[#allocation3 + $0x78] sm:$0xff]
        %962 = vset.pattern.permute.xlu0 7
        %963 = vperm.xlu0 %962, %v945
        %v964 = vpop.permute.xlu0 %963
        %967 = vset.pattern.permute.xlu0 7
        %968 = vperm.xlu0 %967, %v946
        %v969 = vpop.permute.xlu0 %968
        %972 = vset.pattern.permute.xlu0 7
        %973 = vperm.xlu0 %972, %v947
        %v974 = vpop.permute.xlu0 %973
        %977 = vset.pattern.permute.xlu0 7
        %978 = vperm.xlu0 %977, %v948
        %v979 = vpop.permute.xlu0 %978
        %982 = vset.pattern.permute.xlu0 7
        %983 = vperm.xlu0 %982, %v949
        %v984 = vpop.permute.xlu0 %983
        %987 = vset.pattern.permute.xlu0 7
        %988 = vperm.xlu0 %987, %v950
        %v989 = vpop.permute.xlu0 %988
        %992 = vset.pattern.permute.xlu0 7
        %993 = vperm.xlu0 %992, %v951
        %v994 = vpop.permute.xlu0 %993
        %997 = vset.pattern.permute.xlu0 7
        %998 = vperm.xlu0 %997, %v952
        %v999 = vpop.permute.xlu0 %998
        %1002 = vset.pattern.permute.xlu0 7
        %1003 = vperm.xlu0 %1002, %v953
        %v1004 = vpop.permute.xlu0 %1003
        %1007 = vset.pattern.permute.xlu0 7
        %1008 = vperm.xlu0 %1007, %v954
        %v1009 = vpop.permute.xlu0 %1008
        %1012 = vset.pattern.permute.xlu0 7
        %1013 = vperm.xlu0 %1012, %v955
        %v1014 = vpop.permute.xlu0 %1013
        %1017 = vset.pattern.permute.xlu0 7
        %1018 = vperm.xlu0 %1017, %v956
        %v1019 = vpop.permute.xlu0 %1018
        %1022 = vset.pattern.permute.xlu0 7
        %1023 = vperm.xlu0 %1022, %v957
        %v1024 = vpop.permute.xlu0 %1023
        %1027 = vset.pattern.permute.xlu0 7
        %1028 = vperm.xlu0 %1027, %v958
        %v1029 = vpop.permute.xlu0 %1028
        %1032 = vset.pattern.permute.xlu0 7
        %1033 = vperm.xlu0 %1032, %v959
        %v1034 = vpop.permute.xlu0 %1033
        %1037 = vset.pattern.permute.xlu0 7
        %1038 = vperm.xlu0 %1037, %v960
        %v1039 = vpop.permute.xlu0 %1038
        %vm1041 = vcmp.gt.f32.partialorder %v825, %v964
        %vm1042 = vcmp.gt.f32.partialorder %v874, %v964
        %vm1043 = vcmp.gt.f32.partialorder %v827, %v969
        %vm1044 = vcmp.gt.f32.partialorder %v876, %v969
        %vm1045 = vcmp.gt.f32.partialorder %v830, %v974
        %vm1046 = vcmp.gt.f32.partialorder %v879, %v974
        %vm1047 = vcmp.gt.f32.partialorder %v832, %v979
        %vm1048 = vcmp.gt.f32.partialorder %v881, %v979
        %vm1049 = vcmp.gt.f32.partialorder %v835, %v984
        %vm1050 = vcmp.gt.f32.partialorder %v884, %v984
        %vm1051 = vcmp.gt.f32.partialorder %v837, %v989
        %vm1052 = vcmp.gt.f32.partialorder %v886, %v989
        %vm1053 = vcmp.gt.f32.partialorder %v840, %v994
        %vm1054 = vcmp.gt.f32.partialorder %v889, %v994
        %vm1055 = vcmp.gt.f32.partialorder %v842, %v999
        %vm1056 = vcmp.gt.f32.partialorder %v891, %v999
        %vm1057 = vcmp.gt.f32.partialorder %v845, %v1004
        %vm1058 = vcmp.gt.f32.partialorder %v894, %v1004
        %vm1059 = vcmp.gt.f32.partialorder %v847, %v1009
        %vm1060 = vcmp.gt.f32.partialorder %v896, %v1009
        %vm1061 = vcmp.gt.f32.partialorder %v850, %v1014
        %vm1062 = vcmp.gt.f32.partialorder %v899, %v1014
        %vm1063 = vcmp.gt.f32.partialorder %v852, %v1019
        %vm1064 = vcmp.gt.f32.partialorder %v901, %v1019
        %vm1065 = vcmp.gt.f32.partialorder %v855, %v1024
        %vm1066 = vcmp.gt.f32.partialorder %v904, %v1024
        %vm1067 = vcmp.gt.f32.partialorder %v857, %v1029
        %vm1068 = vcmp.gt.f32.partialorder %v906, %v1029
        %vm1069 = vcmp.gt.f32.partialorder %v860, %v1034
        %vm1070 = vcmp.gt.f32.partialorder %v909, %v1034
        %vm1071 = vcmp.gt.f32.partialorder %v862, %v1039
        %vm1072 = vcmp.gt.f32.partialorder %v911, %v1039
        %v1073 = vsel %vm1041, %v825, -inf
        %v1074 = vsel %vm1042, %v874, -inf
        %v1075 = vsel %vm1043, %v827, -inf
        %v1076 = vsel %vm1044, %v876, -inf
        %v1077 = vsel %vm1045, %v830, -inf
        %v1078 = vsel %vm1046, %v879, -inf
        %v1079 = vsel %vm1047, %v832, -inf
        %v1080 = vsel %vm1048, %v881, -inf
        %v1081 = vsel %vm1049, %v835, -inf
        %v1082 = vsel %vm1050, %v884, -inf
        %v1083 = vsel %vm1051, %v837, -inf
        %v1084 = vsel %vm1052, %v886, -inf
        %v1085 = vsel %vm1053, %v840, -inf
        %v1086 = vsel %vm1054, %v889, -inf
        %v1087 = vsel %vm1055, %v842, -inf
        %v1088 = vsel %vm1056, %v891, -inf
        %v1089 = vsel %vm1057, %v845, -inf
        %v1090 = vsel %vm1058, %v894, -inf
        %v1091 = vsel %vm1059, %v847, -inf
        %v1092 = vsel %vm1060, %v896, -inf
        %v1093 = vsel %vm1061, %v850, -inf
        %v1094 = vsel %vm1062, %v899, -inf
        %v1095 = vsel %vm1063, %v852, -inf
        %v1096 = vsel %vm1064, %v901, -inf
        %v1097 = vsel %vm1065, %v855, -inf
        %v1098 = vsel %vm1066, %v904, -inf
        %v1099 = vsel %vm1067, %v857, -inf
        %v1100 = vsel %vm1068, %v906, -inf
        %v1101 = vsel %vm1069, %v860, -inf
        %v1102 = vsel %vm1070, %v909, -inf
        %v1103 = vsel %vm1071, %v862, -inf
        %v1104 = vsel %vm1072, %v911, -inf
        %v1105 = vmax.f32 %v1073, %v1074
        %vm1106 = vcmask 64512
        %v1107 = vsel %vm1106, %v945, -inf
        %v1108 = vmax.f32 %v1105, %v1107
        %1109 = vmax.xlane.f32.xlu0 %v1108
        %v1110 = vpop.xlane.xlu0 %1109
        %v1111 = vmax.f32 %v1075, %v1076
        %v1112 = vsel %vm1106, %v946, -inf
        %v1113 = vmax.f32 %v1111, %v1112
        %1114 = vmax.xlane.f32.xlu0 %v1113
        %v1115 = vpop.xlane.xlu0 %1114
        %v1116 = vmax.f32 %v1077, %v1078
        %v1117 = vsel %vm1106, %v947, -inf
        %v1118 = vmax.f32 %v1116, %v1117
        %1119 = vmax.xlane.f32.xlu0 %v1118
        %v1120 = vpop.xlane.xlu0 %1119
        %v1121 = vmax.f32 %v1079, %v1080
        %v1122 = vsel %vm1106, %v948, -inf
        %v1123 = vmax.f32 %v1121, %v1122
        %1124 = vmax.xlane.f32.xlu0 %v1123
        %v1125 = vpop.xlane.xlu0 %1124
        %v1126 = vmax.f32 %v1081, %v1082
        %v1127 = vsel %vm1106, %v949, -inf
        %v1128 = vmax.f32 %v1126, %v1127
        %1129 = vmax.xlane.f32.xlu0 %v1128
        %v1130 = vpop.xlane.xlu0 %1129
        %v1131 = vmax.f32 %v1083, %v1084
        %v1132 = vsel %vm1106, %v950, -inf
        %v1133 = vmax.f32 %v1131, %v1132
        %1134 = vmax.xlane.f32.xlu0 %v1133
        %v1135 = vpop.xlane.xlu0 %1134
        %v1136 = vmax.f32 %v1085, %v1086
        %v1137 = vsel %vm1106, %v951, -inf
        %v1138 = vmax.f32 %v1136, %v1137
        %1139 = vmax.xlane.f32.xlu0 %v1138
        %v1140 = vpop.xlane.xlu0 %1139
        %v1141 = vmax.f32 %v1087, %v1088
        %v1142 = vsel %vm1106, %v952, -inf
        %v1143 = vmax.f32 %v1141, %v1142
        %1144 = vmax.xlane.f32.xlu0 %v1143
        %v1145 = vpop.xlane.xlu0 %1144
        %v1146 = vmax.f32 %v1089, %v1090
        %v1147 = vsel %vm1106, %v953, -inf
        %v1148 = vmax.f32 %v1146, %v1147
        %1149 = vmax.xlane.f32.xlu0 %v1148
        %v1150 = vpop.xlane.xlu0 %1149
        %v1151 = vmax.f32 %v1091, %v1092
        %v1152 = vsel %vm1106, %v954, -inf
        %v1153 = vmax.f32 %v1151, %v1152
        %1154 = vmax.xlane.f32.xlu0 %v1153
        %v1155 = vpop.xlane.xlu0 %1154
        %v1156 = vmax.f32 %v1093, %v1094
        %v1157 = vsel %vm1106, %v955, -inf
        %v1158 = vmax.f32 %v1156, %v1157
        %1159 = vmax.xlane.f32.xlu0 %v1158
        %v1160 = vpop.xlane.xlu0 %1159
        %v1161 = vmax.f32 %v1095, %v1096
        %v1162 = vsel %vm1106, %v956, -inf
        %v1163 = vmax.f32 %v1161, %v1162
        %1164 = vmax.xlane.f32.xlu0 %v1163
        %v1165 = vpop.xlane.xlu0 %1164
        %v1166 = vmax.f32 %v1097, %v1098
        %v1167 = vsel %vm1106, %v957, -inf
        %v1168 = vmax.f32 %v1166, %v1167
        %1169 = vmax.xlane.f32.xlu0 %v1168
        %v1170 = vpop.xlane.xlu0 %1169
        %v1171 = vmax.f32 %v1099, %v1100
        %v1172 = vsel %vm1106, %v958, -inf
        %v1173 = vmax.f32 %v1171, %v1172
        %1174 = vmax.xlane.f32.xlu0 %v1173
        %v1175 = vpop.xlane.xlu0 %1174
        %v1176 = vmax.f32 %v1101, %v1102
        %v1177 = vsel %vm1106, %v959, -inf
        %v1178 = vmax.f32 %v1176, %v1177
        %1179 = vmax.xlane.f32.xlu0 %v1178
        %v1180 = vpop.xlane.xlu0 %1179
        %v1181 = vmax.f32 %v1103, %v1104
        %v1182 = vsel %vm1106, %v960, -inf
        %v1183 = vmax.f32 %v1181, %v1182
        %1184 = vmax.xlane.f32.xlu0 %v1183
        %v1185 = vpop.xlane.xlu0 %1184
        %vm1186 = vcmp.eq.f32.partialorder %v1073, %v1110
        %vm1187 = vcmp.eq.f32.partialorder %v1074, %v1110
        %vm1188 = vcmp.eq.f32.partialorder %v945, %v1110
        %vm1189 = vcmp.eq.f32.partialorder %v1075, %v1115
        %vm1190 = vcmp.eq.f32.partialorder %v1076, %v1115
        %vm1191 = vcmp.eq.f32.partialorder %v946, %v1115
        %vm1192 = vcmp.eq.f32.partialorder %v1077, %v1120
        %vm1193 = vcmp.eq.f32.partialorder %v1078, %v1120
        %vm1194 = vcmp.eq.f32.partialorder %v947, %v1120
        %vm1195 = vcmp.eq.f32.partialorder %v1079, %v1125
        %vm1196 = vcmp.eq.f32.partialorder %v1080, %v1125
        %vm1197 = vcmp.eq.f32.partialorder %v948, %v1125
        %vm1198 = vcmp.eq.f32.partialorder %v1081, %v1130
        %vm1199 = vcmp.eq.f32.partialorder %v1082, %v1130
        %vm1200 = vcmp.eq.f32.partialorder %v949, %v1130
        %vm1201 = vcmp.eq.f32.partialorder %v1083, %v1135
        %vm1202 = vcmp.eq.f32.partialorder %v1084, %v1135
        %vm1203 = vcmp.eq.f32.partialorder %v950, %v1135
        %vm1204 = vcmp.eq.f32.partialorder %v1085, %v1140
        %vm1205 = vcmp.eq.f32.partialorder %v1086, %v1140
        %vm1206 = vcmp.eq.f32.partialorder %v951, %v1140
        %vm1207 = vcmp.eq.f32.partialorder %v1087, %v1145
        %vm1208 = vcmp.eq.f32.partialorder %v1088, %v1145
        %vm1209 = vcmp.eq.f32.partialorder %v952, %v1145
        %vm1210 = vcmp.eq.f32.partialorder %v1089, %v1150
        %vm1211 = vcmp.eq.f32.partialorder %v1090, %v1150
        %vm1212 = vcmp.eq.f32.partialorder %v953, %v1150
        %vm1213 = vcmp.eq.f32.partialorder %v1091, %v1155
        %vm1214 = vcmp.eq.f32.partialorder %v1092, %v1155
        %vm1215 = vcmp.eq.f32.partialorder %v954, %v1155
        %vm1216 = vcmp.eq.f32.partialorder %v1093, %v1160
        %vm1217 = vcmp.eq.f32.partialorder %v1094, %v1160
        %vm1218 = vcmp.eq.f32.partialorder %v955, %v1160
        %vm1219 = vcmp.eq.f32.partialorder %v1095, %v1165
        %vm1220 = vcmp.eq.f32.partialorder %v1096, %v1165
        %vm1221 = vcmp.eq.f32.partialorder %v956, %v1165
        %vm1222 = vcmp.eq.f32.partialorder %v1097, %v1170
        %vm1223 = vcmp.eq.f32.partialorder %v1098, %v1170
        %vm1224 = vcmp.eq.f32.partialorder %v957, %v1170
        %vm1225 = vcmp.eq.f32.partialorder %v1099, %v1175
        %vm1226 = vcmp.eq.f32.partialorder %v1100, %v1175
        %vm1227 = vcmp.eq.f32.partialorder %v958, %v1175
        %vm1228 = vcmp.eq.f32.partialorder %v1101, %v1180
        %vm1229 = vcmp.eq.f32.partialorder %v1102, %v1180
        %vm1230 = vcmp.eq.f32.partialorder %v959, %v1180
        %vm1231 = vcmp.eq.f32.partialorder %v1103, %v1185
        %vm1232 = vcmp.eq.f32.partialorder %v1104, %v1185
        %vm1233 = vcmp.eq.f32.partialorder %v960, %v1185
        %v1234 = vsel %vm1186, -inf, %v1073
        %v1235 = vsel %vm1187, -inf, %v1074
        %v1236 = vsel %vm1188, -inf, %v945
        %v1237 = vsel %vm1189, -inf, %v1075
        %v1238 = vsel %vm1190, -inf, %v1076
        %v1239 = vsel %vm1191, -inf, %v946
        %v1240 = vsel %vm1192, -inf, %v1077
        %v1241 = vsel %vm1193, -inf, %v1078
        %v1242 = vsel %vm1194, -inf, %v947
        %v1243 = vsel %vm1195, -inf, %v1079
        %v1244 = vsel %vm1196, -inf, %v1080
        %v1245 = vsel %vm1197, -inf, %v948
        %v1246 = vsel %vm1198, -inf, %v1081
        %v1247 = vsel %vm1199, -inf, %v1082
        %v1248 = vsel %vm1200, -inf, %v949
        %v1249 = vsel %vm1201, -inf, %v1083
        %v1250 = vsel %vm1202, -inf, %v1084
        %v1251 = vsel %vm1203, -inf, %v950
        %v1252 = vsel %vm1204, -inf, %v1085
        %v1253 = vsel %vm1205, -inf, %v1086
        %v1254 = vsel %vm1206, -inf, %v951
        %v1255 = vsel %vm1207, -inf, %v1087
        %v1256 = vsel %vm1208, -inf, %v1088
        %v1257 = vsel %vm1209, -inf, %v952
        %v1258 = vsel %vm1210, -inf, %v1089
        %v1259 = vsel %vm1211, -inf, %v1090
        %v1260 = vsel %vm1212, -inf, %v953
        %v1261 = vsel %vm1213, -inf, %v1091
        %v1262 = vsel %vm1214, -inf, %v1092
        %v1263 = vsel %vm1215, -inf, %v954
        %v1264 = vsel %vm1216, -inf, %v1093
        %v1265 = vsel %vm1217, -inf, %v1094
        %v1266 = vsel %vm1218, -inf, %v955
        %v1267 = vsel %vm1219, -inf, %v1095
        %v1268 = vsel %vm1220, -inf, %v1096
        %v1269 = vsel %vm1221, -inf, %v956
        %v1270 = vsel %vm1222, -inf, %v1097
        %v1271 = vsel %vm1223, -inf, %v1098
        %v1272 = vsel %vm1224, -inf, %v957
        %v1273 = vsel %vm1225, -inf, %v1099
        %v1274 = vsel %vm1226, -inf, %v1100
        %v1275 = vsel %vm1227, -inf, %v958
        %v1276 = vsel %vm1228, -inf, %v1101
        %v1277 = vsel %vm1229, -inf, %v1102
        %v1278 = vsel %vm1230, -inf, %v959
        %v1279 = vsel %vm1231, -inf, %v1103
        %v1280 = vsel %vm1232, -inf, %v1104
        %v1281 = vsel %vm1233, -inf, %v960
        %v1282 = vmax.f32 %v1234, %v1235
        %v1283 = vsel %vm1106, %v1236, -inf
        %v1284 = vmax.f32 %v1282, %v1283
        %1285 = vmax.xlane.f32.xlu0 %v1284
        %v1286 = vpop.xlane.xlu0 %1285
        %v1287 = vmax.f32 %v1237, %v1238
        %v1288 = vsel %vm1106, %v1239, -inf
        %v1289 = vmax.f32 %v1287, %v1288
        %1290 = vmax.xlane.f32.xlu0 %v1289
        %v1291 = vpop.xlane.xlu0 %1290
        %v1292 = vmax.f32 %v1240, %v1241
        %v1293 = vsel %vm1106, %v1242, -inf
        %v1294 = vmax.f32 %v1292, %v1293
        %1295 = vmax.xlane.f32.xlu0 %v1294
        %v1296 = vpop.xlane.xlu0 %1295
        %v1297 = vmax.f32 %v1243, %v1244
        %v1298 = vsel %vm1106, %v1245, -inf
        %v1299 = vmax.f32 %v1297, %v1298
        %1300 = vmax.xlane.f32.xlu0 %v1299
        %v1301 = vpop.xlane.xlu0 %1300
        %v1302 = vmax.f32 %v1246, %v1247
        %v1303 = vsel %vm1106, %v1248, -inf
        %v1304 = vmax.f32 %v1302, %v1303
        %1305 = vmax.xlane.f32.xlu0 %v1304
        %v1306 = vpop.xlane.xlu0 %1305
        %v1307 = vmax.f32 %v1249, %v1250
        %v1308 = vsel %vm1106, %v1251, -inf
        %v1309 = vmax.f32 %v1307, %v1308
        %1310 = vmax.xlane.f32.xlu0 %v1309
        %v1311 = vpop.xlane.xlu0 %1310
        %v1312 = vmax.f32 %v1252, %v1253
        %v1313 = vsel %vm1106, %v1254, -inf
        %v1314 = vmax.f32 %v1312, %v1313
        %1315 = vmax.xlane.f32.xlu0 %v1314
        %v1316 = vpop.xlane.xlu0 %1315
        %v1317 = vmax.f32 %v1255, %v1256
        %v1318 = vsel %vm1106, %v1257, -inf
        %v1319 = vmax.f32 %v1317, %v1318
        %1320 = vmax.xlane.f32.xlu0 %v1319
        %v1321 = vpop.xlane.xlu0 %1320
        %v1322 = vmax.f32 %v1258, %v1259
        %v1323 = vsel %vm1106, %v1260, -inf
        %v1324 = vmax.f32 %v1322, %v1323
        %1325 = vmax.xlane.f32.xlu0 %v1324
        %v1326 = vpop.xlane.xlu0 %1325
        %v1327 = vmax.f32 %v1261, %v1262
        %v1328 = vsel %vm1106, %v1263, -inf
        %v1329 = vmax.f32 %v1327, %v1328
        %1330 = vmax.xlane.f32.xlu0 %v1329
        %v1331 = vpop.xlane.xlu0 %1330
        %v1332 = vmax.f32 %v1264, %v1265
        %v1333 = vsel %vm1106, %v1266, -inf
        %v1334 = vmax.f32 %v1332, %v1333
        %1335 = vmax.xlane.f32.xlu0 %v1334
        %v1336 = vpop.xlane.xlu0 %1335
        %v1337 = vmax.f32 %v1267, %v1268
        %v1338 = vsel %vm1106, %v1269, -inf
        %v1339 = vmax.f32 %v1337, %v1338
        %1340 = vmax.xlane.f32.xlu0 %v1339
        %v1341 = vpop.xlane.xlu0 %1340
        %v1342 = vmax.f32 %v1270, %v1271
        %v1343 = vsel %vm1106, %v1272, -inf
        %v1344 = vmax.f32 %v1342, %v1343
        %1345 = vmax.xlane.f32.xlu0 %v1344
        %v1346 = vpop.xlane.xlu0 %1345
        %v1347 = vmax.f32 %v1273, %v1274
        %v1348 = vsel %vm1106, %v1275, -inf
        %v1349 = vmax.f32 %v1347, %v1348
        %1350 = vmax.xlane.f32.xlu0 %v1349
        %v1351 = vpop.xlane.xlu0 %1350
        %v1352 = vmax.f32 %v1276, %v1277
        %v1353 = vsel %vm1106, %v1278, -inf
        %v1354 = vmax.f32 %v1352, %v1353
        %1355 = vmax.xlane.f32.xlu0 %v1354
        %v1356 = vpop.xlane.xlu0 %1355
        %v1357 = vmax.f32 %v1279, %v1280
        %v1358 = vsel %vm1106, %v1281, -inf
        %v1359 = vmax.f32 %v1357, %v1358
        %1360 = vmax.xlane.f32.xlu0 %v1359
        %v1361 = vpop.xlane.xlu0 %1360
        %vm1362 = vcmp.eq.f32.partialorder %v1234, %v1286
        %vm1363 = vcmp.eq.f32.partialorder %v1235, %v1286
        %vm1364 = vcmp.eq.f32.partialorder %v1236, %v1286
        %vm1365 = vcmp.eq.f32.partialorder %v1237, %v1291
        %vm1366 = vcmp.eq.f32.partialorder %v1238, %v1291
        %vm1367 = vcmp.eq.f32.partialorder %v1239, %v1291
        %vm1368 = vcmp.eq.f32.partialorder %v1240, %v1296
        %vm1369 = vcmp.eq.f32.partialorder %v1241, %v1296
        %vm1370 = vcmp.eq.f32.partialorder %v1242, %v1296
        %vm1371 = vcmp.eq.f32.partialorder %v1243, %v1301
        %vm1372 = vcmp.eq.f32.partialorder %v1244, %v1301
        %vm1373 = vcmp.eq.f32.partialorder %v1245, %v1301
        %vm1374 = vcmp.eq.f32.partialorder %v1246, %v1306
        %vm1375 = vcmp.eq.f32.partialorder %v1247, %v1306
        %vm1376 = vcmp.eq.f32.partialorder %v1248, %v1306
        %vm1377 = vcmp.eq.f32.partialorder %v1249, %v1311
        %vm1378 = vcmp.eq.f32.partialorder %v1250, %v1311
        %vm1379 = vcmp.eq.f32.partialorder %v1251, %v1311
        %vm1380 = vcmp.eq.f32.partialorder %v1252, %v1316
        %vm1381 = vcmp.eq.f32.partialorder %v1253, %v1316
        %vm1382 = vcmp.eq.f32.partialorder %v1254, %v1316
        %vm1383 = vcmp.eq.f32.partialorder %v1255, %v1321
        %vm1384 = vcmp.eq.f32.partialorder %v1256, %v1321
        %vm1385 = vcmp.eq.f32.partialorder %v1257, %v1321
        %vm1386 = vcmp.eq.f32.partialorder %v1258, %v1326
        %vm1387 = vcmp.eq.f32.partialorder %v1259, %v1326
        %vm1388 = vcmp.eq.f32.partialorder %v1260, %v1326
        %vm1389 = vcmp.eq.f32.partialorder %v1261, %v1331
        %vm1390 = vcmp.eq.f32.partialorder %v1262, %v1331
        %vm1391 = vcmp.eq.f32.partialorder %v1263, %v1331
        %vm1392 = vcmp.eq.f32.partialorder %v1264, %v1336
        %vm1393 = vcmp.eq.f32.partialorder %v1265, %v1336
        %vm1394 = vcmp.eq.f32.partialorder %v1266, %v1336
        %vm1395 = vcmp.eq.f32.partialorder %v1267, %v1341
        %vm1396 = vcmp.eq.f32.partialorder %v1268, %v1341
        %vm1397 = vcmp.eq.f32.partialorder %v1269, %v1341
        %vm1398 = vcmp.eq.f32.partialorder %v1270, %v1346
        %vm1399 = vcmp.eq.f32.partialorder %v1271, %v1346
        %vm1400 = vcmp.eq.f32.partialorder %v1272, %v1346
        %vm1401 = vcmp.eq.f32.partialorder %v1273, %v1351
        %vm1402 = vcmp.eq.f32.partialorder %v1274, %v1351
        %vm1403 = vcmp.eq.f32.partialorder %v1275, %v1351
        %vm1404 = vcmp.eq.f32.partialorder %v1276, %v1356
        %vm1405 = vcmp.eq.f32.partialorder %v1277, %v1356
        %vm1406 = vcmp.eq.f32.partialorder %v1278, %v1356
        %vm1407 = vcmp.eq.f32.partialorder %v1279, %v1361
        %vm1408 = vcmp.eq.f32.partialorder %v1280, %v1361
        %vm1409 = vcmp.eq.f32.partialorder %v1281, %v1361
        %v1410 = vsel %vm1362, -inf, %v1234
        %v1411 = vsel %vm1363, -inf, %v1235
        %v1412 = vsel %vm1364, -inf, %v1236
        %v1413 = vsel %vm1365, -inf, %v1237
        %v1414 = vsel %vm1366, -inf, %v1238
        %v1415 = vsel %vm1367, -inf, %v1239
        %v1416 = vsel %vm1368, -inf, %v1240
        %v1417 = vsel %vm1369, -inf, %v1241
        %v1418 = vsel %vm1370, -inf, %v1242
        %v1419 = vsel %vm1371, -inf, %v1243
        %v1420 = vsel %vm1372, -inf, %v1244
        %v1421 = vsel %vm1373, -inf, %v1245
        %v1422 = vsel %vm1374, -inf, %v1246
        %v1423 = vsel %vm1375, -inf, %v1247
        %v1424 = vsel %vm1376, -inf, %v1248
        %v1425 = vsel %vm1377, -inf, %v1249
        %v1426 = vsel %vm1378, -inf, %v1250
        %v1427 = vsel %vm1379, -inf, %v1251
        %v1428 = vsel %vm1380, -inf, %v1252
        %v1429 = vsel %vm1381, -inf, %v1253
        %v1430 = vsel %vm1382, -inf, %v1254
        %v1431 = vsel %vm1383, -inf, %v1255
        %v1432 = vsel %vm1384, -inf, %v1256
        %v1433 = vsel %vm1385, -inf, %v1257
        %v1434 = vsel %vm1386, -inf, %v1258
        %v1435 = vsel %vm1387, -inf, %v1259
        %v1436 = vsel %vm1388, -inf, %v1260
        %v1437 = vsel %vm1389, -inf, %v1261
        %v1438 = vsel %vm1390, -inf, %v1262
        %v1439 = vsel %vm1391, -inf, %v1263
        %v1440 = vsel %vm1392, -inf, %v1264
        %v1441 = vsel %vm1393, -inf, %v1265
        %v1442 = vsel %vm1394, -inf, %v1266
        %v1443 = vsel %vm1395, -inf, %v1267
        %v1444 = vsel %vm1396, -inf, %v1268
        %v1445 = vsel %vm1397, -inf, %v1269
        %v1446 = vsel %vm1398, -inf, %v1270
        %v1447 = vsel %vm1399, -inf, %v1271
        %v1448 = vsel %vm1400, -inf, %v1272
        %v1449 = vsel %vm1401, -inf, %v1273
        %v1450 = vsel %vm1402, -inf, %v1274
        %v1451 = vsel %vm1403, -inf, %v1275
        %v1452 = vsel %vm1404, -inf, %v1276
        %v1453 = vsel %vm1405, -inf, %v1277
        %v1454 = vsel %vm1406, -inf, %v1278
        %v1455 = vsel %vm1407, -inf, %v1279
        %v1456 = vsel %vm1408, -inf, %v1280
        %v1457 = vsel %vm1409, -inf, %v1281
        %v1458 = vmax.f32 %v1410, %v1411
        %v1459 = vsel %vm1106, %v1412, -inf
        %v1460 = vmax.f32 %v1458, %v1459
        %1461 = vmax.xlane.f32.xlu0 %v1460
        %v1462 = vpop.xlane.xlu0 %1461
        %v1463 = vmax.f32 %v1413, %v1414
        %v1464 = vsel %vm1106, %v1415, -inf
        %v1465 = vmax.f32 %v1463, %v1464
        %1466 = vmax.xlane.f32.xlu0 %v1465
        %v1467 = vpop.xlane.xlu0 %1466
        %v1468 = vmax.f32 %v1416, %v1417
        %v1469 = vsel %vm1106, %v1418, -inf
        %v1470 = vmax.f32 %v1468, %v1469
        %1471 = vmax.xlane.f32.xlu0 %v1470
        %v1472 = vpop.xlane.xlu0 %1471
        %v1473 = vmax.f32 %v1419, %v1420
        %v1474 = vsel %vm1106, %v1421, -inf
        %v1475 = vmax.f32 %v1473, %v1474
        %1476 = vmax.xlane.f32.xlu0 %v1475
        %v1477 = vpop.xlane.xlu0 %1476
        %v1478 = vmax.f32 %v1422, %v1423
        %v1479 = vsel %vm1106, %v1424, -inf
        %v1480 = vmax.f32 %v1478, %v1479
        %1481 = vmax.xlane.f32.xlu0 %v1480
        %v1482 = vpop.xlane.xlu0 %1481
        %v1483 = vmax.f32 %v1425, %v1426
        %v1484 = vsel %vm1106, %v1427, -inf
        %v1485 = vmax.f32 %v1483, %v1484
        %1486 = vmax.xlane.f32.xlu0 %v1485
        %v1487 = vpop.xlane.xlu0 %1486
        %v1488 = vmax.f32 %v1428, %v1429
        %v1489 = vsel %vm1106, %v1430, -inf
        %v1490 = vmax.f32 %v1488, %v1489
        %1491 = vmax.xlane.f32.xlu0 %v1490
        %v1492 = vpop.xlane.xlu0 %1491
        %v1493 = vmax.f32 %v1431, %v1432
        %v1494 = vsel %vm1106, %v1433, -inf
        %v1495 = vmax.f32 %v1493, %v1494
        %1496 = vmax.xlane.f32.xlu0 %v1495
        %v1497 = vpop.xlane.xlu0 %1496
        %v1498 = vmax.f32 %v1434, %v1435
        %v1499 = vsel %vm1106, %v1436, -inf
        %v1500 = vmax.f32 %v1498, %v1499
        %1501 = vmax.xlane.f32.xlu0 %v1500
        %v1502 = vpop.xlane.xlu0 %1501
        %v1503 = vmax.f32 %v1437, %v1438
        %v1504 = vsel %vm1106, %v1439, -inf
        %v1505 = vmax.f32 %v1503, %v1504
        %1506 = vmax.xlane.f32.xlu0 %v1505
        %v1507 = vpop.xlane.xlu0 %1506
        %v1508 = vmax.f32 %v1440, %v1441
        %v1509 = vsel %vm1106, %v1442, -inf
        %v1510 = vmax.f32 %v1508, %v1509
        %1511 = vmax.xlane.f32.xlu0 %v1510
        %v1512 = vpop.xlane.xlu0 %1511
        %v1513 = vmax.f32 %v1443, %v1444
        %v1514 = vsel %vm1106, %v1445, -inf
        %v1515 = vmax.f32 %v1513, %v1514
        %1516 = vmax.xlane.f32.xlu0 %v1515
        %v1517 = vpop.xlane.xlu0 %1516
        %v1518 = vmax.f32 %v1446, %v1447
        %v1519 = vsel %vm1106, %v1448, -inf
        %v1520 = vmax.f32 %v1518, %v1519
        %1521 = vmax.xlane.f32.xlu0 %v1520
        %v1522 = vpop.xlane.xlu0 %1521
        %v1523 = vmax.f32 %v1449, %v1450
        %v1524 = vsel %vm1106, %v1451, -inf
        %v1525 = vmax.f32 %v1523, %v1524
        %1526 = vmax.xlane.f32.xlu0 %v1525
        %v1527 = vpop.xlane.xlu0 %1526
        %v1528 = vmax.f32 %v1452, %v1453
        %v1529 = vsel %vm1106, %v1454, -inf
        %v1530 = vmax.f32 %v1528, %v1529
        %1531 = vmax.xlane.f32.xlu0 %v1530
        %v1532 = vpop.xlane.xlu0 %1531
        %v1533 = vmax.f32 %v1455, %v1456
        %v1534 = vsel %vm1106, %v1457, -inf
        %v1535 = vmax.f32 %v1533, %v1534
        %1536 = vmax.xlane.f32.xlu0 %v1535
        %v1537 = vpop.xlane.xlu0 %1536
        %vm1538 = vcmp.eq.f32.partialorder %v1410, %v1462
        %vm1539 = vcmp.eq.f32.partialorder %v1411, %v1462
        %vm1540 = vcmp.eq.f32.partialorder %v1412, %v1462
        %vm1541 = vcmp.eq.f32.partialorder %v1413, %v1467
        %vm1542 = vcmp.eq.f32.partialorder %v1414, %v1467
        %vm1543 = vcmp.eq.f32.partialorder %v1415, %v1467
        %vm1544 = vcmp.eq.f32.partialorder %v1416, %v1472
        %vm1545 = vcmp.eq.f32.partialorder %v1417, %v1472
        %vm1546 = vcmp.eq.f32.partialorder %v1418, %v1472
        %vm1547 = vcmp.eq.f32.partialorder %v1419, %v1477
        %vm1548 = vcmp.eq.f32.partialorder %v1420, %v1477
        %vm1549 = vcmp.eq.f32.partialorder %v1421, %v1477
        %vm1550 = vcmp.eq.f32.partialorder %v1422, %v1482
        %vm1551 = vcmp.eq.f32.partialorder %v1423, %v1482
        %vm1552 = vcmp.eq.f32.partialorder %v1424, %v1482
        %vm1553 = vcmp.eq.f32.partialorder %v1425, %v1487
        %vm1554 = vcmp.eq.f32.partialorder %v1426, %v1487
        %vm1555 = vcmp.eq.f32.partialorder %v1427, %v1487
        %vm1556 = vcmp.eq.f32.partialorder %v1428, %v1492
        %vm1557 = vcmp.eq.f32.partialorder %v1429, %v1492
        %vm1558 = vcmp.eq.f32.partialorder %v1430, %v1492
        %vm1559 = vcmp.eq.f32.partialorder %v1431, %v1497
        %vm1560 = vcmp.eq.f32.partialorder %v1432, %v1497
        %vm1561 = vcmp.eq.f32.partialorder %v1433, %v1497
        %vm1562 = vcmp.eq.f32.partialorder %v1434, %v1502
        %vm1563 = vcmp.eq.f32.partialorder %v1435, %v1502
        %vm1564 = vcmp.eq.f32.partialorder %v1436, %v1502
        %vm1565 = vcmp.eq.f32.partialorder %v1437, %v1507
        %vm1566 = vcmp.eq.f32.partialorder %v1438, %v1507
        %vm1567 = vcmp.eq.f32.partialorder %v1439, %v1507
        %vm1568 = vcmp.eq.f32.partialorder %v1440, %v1512
        %vm1569 = vcmp.eq.f32.partialorder %v1441, %v1512
        %vm1570 = vcmp.eq.f32.partialorder %v1442, %v1512
        %vm1571 = vcmp.eq.f32.partialorder %v1443, %v1517
        %vm1572 = vcmp.eq.f32.partialorder %v1444, %v1517
        %vm1573 = vcmp.eq.f32.partialorder %v1445, %v1517
        %vm1574 = vcmp.eq.f32.partialorder %v1446, %v1522
        %vm1575 = vcmp.eq.f32.partialorder %v1447, %v1522
        %vm1576 = vcmp.eq.f32.partialorder %v1448, %v1522
        %vm1577 = vcmp.eq.f32.partialorder %v1449, %v1527
        %vm1578 = vcmp.eq.f32.partialorder %v1450, %v1527
        %vm1579 = vcmp.eq.f32.partialorder %v1451, %v1527
        %vm1580 = vcmp.eq.f32.partialorder %v1452, %v1532
        %vm1581 = vcmp.eq.f32.partialorder %v1453, %v1532
        %vm1582 = vcmp.eq.f32.partialorder %v1454, %v1532
        %vm1583 = vcmp.eq.f32.partialorder %v1455, %v1537
        %vm1584 = vcmp.eq.f32.partialorder %v1456, %v1537
        %vm1585 = vcmp.eq.f32.partialorder %v1457, %v1537
        %v1586 = vsel %vm1538, -inf, %v1410
        %v1587 = vsel %vm1539, -inf, %v1411
        %v1588 = vsel %vm1540, -inf, %v1412
        %v1589 = vsel %vm1541, -inf, %v1413
        %v1590 = vsel %vm1542, -inf, %v1414
        %v1591 = vsel %vm1543, -inf, %v1415
        %v1592 = vsel %vm1544, -inf, %v1416
        %v1593 = vsel %vm1545, -inf, %v1417
        %v1594 = vsel %vm1546, -inf, %v1418
        %v1595 = vsel %vm1547, -inf, %v1419
        %v1596 = vsel %vm1548, -inf, %v1420
        %v1597 = vsel %vm1549, -inf, %v1421
        %v1598 = vsel %vm1550, -inf, %v1422
        %v1599 = vsel %vm1551, -inf, %v1423
        %v1600 = vsel %vm1552, -inf, %v1424
        %v1601 = vsel %vm1553, -inf, %v1425
        %v1602 = vsel %vm1554, -inf, %v1426
        %v1603 = vsel %vm1555, -inf, %v1427
        %v1604 = vsel %vm1556, -inf, %v1428
        %v1605 = vsel %vm1557, -inf, %v1429
        %v1606 = vsel %vm1558, -inf, %v1430
        %v1607 = vsel %vm1559, -inf, %v1431
        %v1608 = vsel %vm1560, -inf, %v1432
        %v1609 = vsel %vm1561, -inf, %v1433
        %v1610 = vsel %vm1562, -inf, %v1434
        %v1611 = vsel %vm1563, -inf, %v1435
        %v1612 = vsel %vm1564, -inf, %v1436
        %v1613 = vsel %vm1565, -inf, %v1437
        %v1614 = vsel %vm1566, -inf, %v1438
        %v1615 = vsel %vm1567, -inf, %v1439
        %v1616 = vsel %vm1568, -inf, %v1440
        %v1617 = vsel %vm1569, -inf, %v1441
        %v1618 = vsel %vm1570, -inf, %v1442
        %v1619 = vsel %vm1571, -inf, %v1443
        %v1620 = vsel %vm1572, -inf, %v1444
        %v1621 = vsel %vm1573, -inf, %v1445
        %v1622 = vsel %vm1574, -inf, %v1446
        %v1623 = vsel %vm1575, -inf, %v1447
        %v1624 = vsel %vm1576, -inf, %v1448
        %v1625 = vsel %vm1577, -inf, %v1449
        %v1626 = vsel %vm1578, -inf, %v1450
        %v1627 = vsel %vm1579, -inf, %v1451
        %v1628 = vsel %vm1580, -inf, %v1452
        %v1629 = vsel %vm1581, -inf, %v1453
        %v1630 = vsel %vm1582, -inf, %v1454
        %v1631 = vsel %vm1583, -inf, %v1455
        %v1632 = vsel %vm1584, -inf, %v1456
        %v1633 = vsel %vm1585, -inf, %v1457
        %v1634 = vmax.f32 %v1586, %v1587
        %v1635 = vsel %vm1106, %v1588, -inf
        %v1636 = vmax.f32 %v1634, %v1635
        %1637 = vmax.xlane.f32.xlu0 %v1636
        %v1638 = vpop.xlane.xlu0 %1637
        %v1639 = vmax.f32 %v1589, %v1590
        %v1640 = vsel %vm1106, %v1591, -inf
        %v1641 = vmax.f32 %v1639, %v1640
        %1642 = vmax.xlane.f32.xlu0 %v1641
        %v1643 = vpop.xlane.xlu0 %1642
        %v1644 = vmax.f32 %v1592, %v1593
        %v1645 = vsel %vm1106, %v1594, -inf
        %v1646 = vmax.f32 %v1644, %v1645
        %1647 = vmax.xlane.f32.xlu0 %v1646
        %v1648 = vpop.xlane.xlu0 %1647
        %v1649 = vmax.f32 %v1595, %v1596
        %v1650 = vsel %vm1106, %v1597, -inf
        %v1651 = vmax.f32 %v1649, %v1650
        %1652 = vmax.xlane.f32.xlu0 %v1651
        %v1653 = vpop.xlane.xlu0 %1652
        %v1654 = vmax.f32 %v1598, %v1599
        %v1655 = vsel %vm1106, %v1600, -inf
        %v1656 = vmax.f32 %v1654, %v1655
        %1657 = vmax.xlane.f32.xlu0 %v1656
        %v1658 = vpop.xlane.xlu0 %1657
        %v1659 = vmax.f32 %v1601, %v1602
        %v1660 = vsel %vm1106, %v1603, -inf
        %v1661 = vmax.f32 %v1659, %v1660
        %1662 = vmax.xlane.f32.xlu0 %v1661
        %v1663 = vpop.xlane.xlu0 %1662
        %v1664 = vmax.f32 %v1604, %v1605
        %v1665 = vsel %vm1106, %v1606, -inf
        %v1666 = vmax.f32 %v1664, %v1665
        %1667 = vmax.xlane.f32.xlu0 %v1666
        %v1668 = vpop.xlane.xlu0 %1667
        %v1669 = vmax.f32 %v1607, %v1608
        %v1670 = vsel %vm1106, %v1609, -inf
        %v1671 = vmax.f32 %v1669, %v1670
        %1672 = vmax.xlane.f32.xlu0 %v1671
        %v1673 = vpop.xlane.xlu0 %1672
        %v1674 = vmax.f32 %v1610, %v1611
        %v1675 = vsel %vm1106, %v1612, -inf
        %v1676 = vmax.f32 %v1674, %v1675
        %1677 = vmax.xlane.f32.xlu0 %v1676
        %v1678 = vpop.xlane.xlu0 %1677
        %v1679 = vmax.f32 %v1613, %v1614
        %v1680 = vsel %vm1106, %v1615, -inf
        %v1681 = vmax.f32 %v1679, %v1680
        %1682 = vmax.xlane.f32.xlu0 %v1681
        %v1683 = vpop.xlane.xlu0 %1682
        %v1684 = vmax.f32 %v1616, %v1617
        %v1685 = vsel %vm1106, %v1618, -inf
        %v1686 = vmax.f32 %v1684, %v1685
        %1687 = vmax.xlane.f32.xlu0 %v1686
        %v1688 = vpop.xlane.xlu0 %1687
        %v1689 = vmax.f32 %v1619, %v1620
        %v1690 = vsel %vm1106, %v1621, -inf
        %v1691 = vmax.f32 %v1689, %v1690
        %1692 = vmax.xlane.f32.xlu0 %v1691
        %v1693 = vpop.xlane.xlu0 %1692
        %v1694 = vmax.f32 %v1622, %v1623
        %v1695 = vsel %vm1106, %v1624, -inf
        %v1696 = vmax.f32 %v1694, %v1695
        %1697 = vmax.xlane.f32.xlu0 %v1696
        %v1698 = vpop.xlane.xlu0 %1697
        %v1699 = vmax.f32 %v1625, %v1626
        %v1700 = vsel %vm1106, %v1627, -inf
        %v1701 = vmax.f32 %v1699, %v1700
        %1702 = vmax.xlane.f32.xlu0 %v1701
        %v1703 = vpop.xlane.xlu0 %1702
        %v1704 = vmax.f32 %v1628, %v1629
        %v1705 = vsel %vm1106, %v1630, -inf
        %v1706 = vmax.f32 %v1704, %v1705
        %1707 = vmax.xlane.f32.xlu0 %v1706
        %v1708 = vpop.xlane.xlu0 %1707
        %v1709 = vmax.f32 %v1631, %v1632
        %v1710 = vsel %vm1106, %v1633, -inf
        %v1711 = vmax.f32 %v1709, %v1710
        %1712 = vmax.xlane.f32.xlu0 %v1711
        %v1713 = vpop.xlane.xlu0 %1712
        %vm1714 = vcmp.eq.f32.partialorder %v1586, %v1638
        %vm1715 = vcmp.eq.f32.partialorder %v1587, %v1638
        %vm1716 = vcmp.eq.f32.partialorder %v1588, %v1638
        %vm1717 = vcmp.eq.f32.partialorder %v1589, %v1643
        %vm1718 = vcmp.eq.f32.partialorder %v1590, %v1643
        %vm1719 = vcmp.eq.f32.partialorder %v1591, %v1643
        %vm1720 = vcmp.eq.f32.partialorder %v1592, %v1648
        %vm1721 = vcmp.eq.f32.partialorder %v1593, %v1648
        %vm1722 = vcmp.eq.f32.partialorder %v1594, %v1648
        %vm1723 = vcmp.eq.f32.partialorder %v1595, %v1653
        %vm1724 = vcmp.eq.f32.partialorder %v1596, %v1653
        %vm1725 = vcmp.eq.f32.partialorder %v1597, %v1653
        %vm1726 = vcmp.eq.f32.partialorder %v1598, %v1658
        %vm1727 = vcmp.eq.f32.partialorder %v1599, %v1658
        %vm1728 = vcmp.eq.f32.partialorder %v1600, %v1658
        %vm1729 = vcmp.eq.f32.partialorder %v1601, %v1663
        %vm1730 = vcmp.eq.f32.partialorder %v1602, %v1663
        %vm1731 = vcmp.eq.f32.partialorder %v1603, %v1663
        %vm1732 = vcmp.eq.f32.partialorder %v1604, %v1668
        %vm1733 = vcmp.eq.f32.partialorder %v1605, %v1668
        %vm1734 = vcmp.eq.f32.partialorder %v1606, %v1668
        %vm1735 = vcmp.eq.f32.partialorder %v1607, %v1673
        %vm1736 = vcmp.eq.f32.partialorder %v1608, %v1673
        %vm1737 = vcmp.eq.f32.partialorder %v1609, %v1673
        %vm1738 = vcmp.eq.f32.partialorder %v1610, %v1678
        %vm1739 = vcmp.eq.f32.partialorder %v1611, %v1678
        %vm1740 = vcmp.eq.f32.partialorder %v1612, %v1678
        %vm1741 = vcmp.eq.f32.partialorder %v1613, %v1683
        %vm1742 = vcmp.eq.f32.partialorder %v1614, %v1683
        %vm1743 = vcmp.eq.f32.partialorder %v1615, %v1683
        %vm1744 = vcmp.eq.f32.partialorder %v1616, %v1688
        %vm1745 = vcmp.eq.f32.partialorder %v1617, %v1688
        %vm1746 = vcmp.eq.f32.partialorder %v1618, %v1688
        %vm1747 = vcmp.eq.f32.partialorder %v1619, %v1693
        %vm1748 = vcmp.eq.f32.partialorder %v1620, %v1693
        %vm1749 = vcmp.eq.f32.partialorder %v1621, %v1693
        %vm1750 = vcmp.eq.f32.partialorder %v1622, %v1698
        %vm1751 = vcmp.eq.f32.partialorder %v1623, %v1698
        %vm1752 = vcmp.eq.f32.partialorder %v1624, %v1698
        %vm1753 = vcmp.eq.f32.partialorder %v1625, %v1703
        %vm1754 = vcmp.eq.f32.partialorder %v1626, %v1703
        %vm1755 = vcmp.eq.f32.partialorder %v1627, %v1703
        %vm1756 = vcmp.eq.f32.partialorder %v1628, %v1708
        %vm1757 = vcmp.eq.f32.partialorder %v1629, %v1708
        %vm1758 = vcmp.eq.f32.partialorder %v1630, %v1708
        %vm1759 = vcmp.eq.f32.partialorder %v1631, %v1713
        %vm1760 = vcmp.eq.f32.partialorder %v1632, %v1713
        %vm1761 = vcmp.eq.f32.partialorder %v1633, %v1713
        %v1762 = vsel %vm1714, -inf, %v1586
        %v1763 = vsel %vm1715, -inf, %v1587
        %v1764 = vsel %vm1716, -inf, %v1588
        %v1765 = vsel %vm1717, -inf, %v1589
        %v1766 = vsel %vm1718, -inf, %v1590
        %v1767 = vsel %vm1719, -inf, %v1591
        %v1768 = vsel %vm1720, -inf, %v1592
        %v1769 = vsel %vm1721, -inf, %v1593
        %v1770 = vsel %vm1722, -inf, %v1594
        %v1771 = vsel %vm1723, -inf, %v1595
        %v1772 = vsel %vm1724, -inf, %v1596
        %v1773 = vsel %vm1725, -inf, %v1597
        %v1774 = vsel %vm1726, -inf, %v1598
        %v1775 = vsel %vm1727, -inf, %v1599
        %v1776 = vsel %vm1728, -inf, %v1600
        %v1777 = vsel %vm1729, -inf, %v1601
        %v1778 = vsel %vm1730, -inf, %v1602
        %v1779 = vsel %vm1731, -inf, %v1603
        %v1780 = vsel %vm1732, -inf, %v1604
        %v1781 = vsel %vm1733, -inf, %v1605
        %v1782 = vsel %vm1734, -inf, %v1606
        %v1783 = vsel %vm1735, -inf, %v1607
        %v1784 = vsel %vm1736, -inf, %v1608
        %v1785 = vsel %vm1737, -inf, %v1609
        %v1786 = vsel %vm1738, -inf, %v1610
        %v1787 = vsel %vm1739, -inf, %v1611
        %v1788 = vsel %vm1740, -inf, %v1612
        %v1789 = vsel %vm1741, -inf, %v1613
        %v1790 = vsel %vm1742, -inf, %v1614
        %v1791 = vsel %vm1743, -inf, %v1615
        %v1792 = vsel %vm1744, -inf, %v1616
        %v1793 = vsel %vm1745, -inf, %v1617
        %v1794 = vsel %vm1746, -inf, %v1618
        %v1795 = vsel %vm1747, -inf, %v1619
        %v1796 = vsel %vm1748, -inf, %v1620
        %v1797 = vsel %vm1749, -inf, %v1621
        %v1798 = vsel %vm1750, -inf, %v1622
        %v1799 = vsel %vm1751, -inf, %v1623
        %v1800 = vsel %vm1752, -inf, %v1624
        %v1801 = vsel %vm1753, -inf, %v1625
        %v1802 = vsel %vm1754, -inf, %v1626
        %v1803 = vsel %vm1755, -inf, %v1627
        %v1804 = vsel %vm1756, -inf, %v1628
        %v1805 = vsel %vm1757, -inf, %v1629
        %v1806 = vsel %vm1758, -inf, %v1630
        %v1807 = vsel %vm1759, -inf, %v1631
        %v1808 = vsel %vm1760, -inf, %v1632
        %v1809 = vsel %vm1761, -inf, %v1633
        %v1810 = vmax.f32 %v1762, %v1763
        %v1811 = vsel %vm1106, %v1764, -inf
        %v1812 = vmax.f32 %v1810, %v1811
        %1813 = vmax.xlane.f32.xlu0 %v1812
        %v1814 = vpop.xlane.xlu0 %1813
        %v1815 = vmax.f32 %v1765, %v1766
        %v1816 = vsel %vm1106, %v1767, -inf
        %v1817 = vmax.f32 %v1815, %v1816
        %1818 = vmax.xlane.f32.xlu0 %v1817
        %v1819 = vpop.xlane.xlu0 %1818
        %v1820 = vmax.f32 %v1768, %v1769
        %v1821 = vsel %vm1106, %v1770, -inf
        %v1822 = vmax.f32 %v1820, %v1821
        %1823 = vmax.xlane.f32.xlu0 %v1822
        %v1824 = vpop.xlane.xlu0 %1823
        %v1825 = vmax.f32 %v1771, %v1772
        %v1826 = vsel %vm1106, %v1773, -inf
        %v1827 = vmax.f32 %v1825, %v1826
        %1828 = vmax.xlane.f32.xlu0 %v1827
        %v1829 = vpop.xlane.xlu0 %1828
        %v1830 = vmax.f32 %v1774, %v1775
        %v1831 = vsel %vm1106, %v1776, -inf
        %v1832 = vmax.f32 %v1830, %v1831
        %1833 = vmax.xlane.f32.xlu0 %v1832
        %v1834 = vpop.xlane.xlu0 %1833
        %v1835 = vmax.f32 %v1777, %v1778
        %v1836 = vsel %vm1106, %v1779, -inf
        %v1837 = vmax.f32 %v1835, %v1836
        %1838 = vmax.xlane.f32.xlu0 %v1837
        %v1839 = vpop.xlane.xlu0 %1838
        %v1840 = vmax.f32 %v1780, %v1781
        %v1841 = vsel %vm1106, %v1782, -inf
        %v1842 = vmax.f32 %v1840, %v1841
        %1843 = vmax.xlane.f32.xlu0 %v1842
        %v1844 = vpop.xlane.xlu0 %1843
        %v1845 = vmax.f32 %v1783, %v1784
        %v1846 = vsel %vm1106, %v1785, -inf
        %v1847 = vmax.f32 %v1845, %v1846
        %1848 = vmax.xlane.f32.xlu0 %v1847
        %v1849 = vpop.xlane.xlu0 %1848
        %v1850 = vmax.f32 %v1786, %v1787
        %v1851 = vsel %vm1106, %v1788, -inf
        %v1852 = vmax.f32 %v1850, %v1851
        %1853 = vmax.xlane.f32.xlu0 %v1852
        %v1854 = vpop.xlane.xlu0 %1853
        %v1855 = vmax.f32 %v1789, %v1790
        %v1856 = vsel %vm1106, %v1791, -inf
        %v1857 = vmax.f32 %v1855, %v1856
        %1858 = vmax.xlane.f32.xlu0 %v1857
        %v1859 = vpop.xlane.xlu0 %1858
        %v1860 = vmax.f32 %v1792, %v1793
        %v1861 = vsel %vm1106, %v1794, -inf
        %v1862 = vmax.f32 %v1860, %v1861
        %1863 = vmax.xlane.f32.xlu0 %v1862
        %v1864 = vpop.xlane.xlu0 %1863
        %v1865 = vmax.f32 %v1795, %v1796
        %v1866 = vsel %vm1106, %v1797, -inf
        %v1867 = vmax.f32 %v1865, %v1866
        %1868 = vmax.xlane.f32.xlu0 %v1867
        %v1869 = vpop.xlane.xlu0 %1868
        %v1870 = vmax.f32 %v1798, %v1799
        %v1871 = vsel %vm1106, %v1800, -inf
        %v1872 = vmax.f32 %v1870, %v1871
        %1873 = vmax.xlane.f32.xlu0 %v1872
        %v1874 = vpop.xlane.xlu0 %1873
        %v1875 = vmax.f32 %v1801, %v1802
        %v1876 = vsel %vm1106, %v1803, -inf
        %v1877 = vmax.f32 %v1875, %v1876
        %1878 = vmax.xlane.f32.xlu0 %v1877
        %v1879 = vpop.xlane.xlu0 %1878
        %v1880 = vmax.f32 %v1804, %v1805
        %v1881 = vsel %vm1106, %v1806, -inf
        %v1882 = vmax.f32 %v1880, %v1881
        %1883 = vmax.xlane.f32.xlu0 %v1882
        %v1884 = vpop.xlane.xlu0 %1883
        %v1885 = vmax.f32 %v1807, %v1808
        %v1886 = vsel %vm1106, %v1809, -inf
        %v1887 = vmax.f32 %v1885, %v1886
        %1888 = vmax.xlane.f32.xlu0 %v1887
        %v1889 = vpop.xlane.xlu0 %1888
        %vm1890 = vcmp.eq.f32.partialorder %v1762, %v1814
        %vm1891 = vcmp.eq.f32.partialorder %v1763, %v1814
        %vm1892 = vcmp.eq.f32.partialorder %v1764, %v1814
        %vm1893 = vcmp.eq.f32.partialorder %v1765, %v1819
        %vm1894 = vcmp.eq.f32.partialorder %v1766, %v1819
        %vm1895 = vcmp.eq.f32.partialorder %v1767, %v1819
        %vm1896 = vcmp.eq.f32.partialorder %v1768, %v1824
        %vm1897 = vcmp.eq.f32.partialorder %v1769, %v1824
        %vm1898 = vcmp.eq.f32.partialorder %v1770, %v1824
        %vm1899 = vcmp.eq.f32.partialorder %v1771, %v1829
        %vm1900 = vcmp.eq.f32.partialorder %v1772, %v1829
        %vm1901 = vcmp.eq.f32.partialorder %v1773, %v1829
        %vm1902 = vcmp.eq.f32.partialorder %v1774, %v1834
        %vm1903 = vcmp.eq.f32.partialorder %v1775, %v1834
        %vm1904 = vcmp.eq.f32.partialorder %v1776, %v1834
        %vm1905 = vcmp.eq.f32.partialorder %v1777, %v1839
        %vm1906 = vcmp.eq.f32.partialorder %v1778, %v1839
        %vm1907 = vcmp.eq.f32.partialorder %v1779, %v1839
        %vm1908 = vcmp.eq.f32.partialorder %v1780, %v1844
        %vm1909 = vcmp.eq.f32.partialorder %v1781, %v1844
        %vm1910 = vcmp.eq.f32.partialorder %v1782, %v1844
        %vm1911 = vcmp.eq.f32.partialorder %v1783, %v1849
        %vm1912 = vcmp.eq.f32.partialorder %v1784, %v1849
        %vm1913 = vcmp.eq.f32.partialorder %v1785, %v1849
        %vm1914 = vcmp.eq.f32.partialorder %v1786, %v1854
        %vm1915 = vcmp.eq.f32.partialorder %v1787, %v1854
        %vm1916 = vcmp.eq.f32.partialorder %v1788, %v1854
        %vm1917 = vcmp.eq.f32.partialorder %v1789, %v1859
        %vm1918 = vcmp.eq.f32.partialorder %v1790, %v1859
        %vm1919 = vcmp.eq.f32.partialorder %v1791, %v1859
        %vm1920 = vcmp.eq.f32.partialorder %v1792, %v1864
        %vm1921 = vcmp.eq.f32.partialorder %v1793, %v1864
        %vm1922 = vcmp.eq.f32.partialorder %v1794, %v1864
        %vm1923 = vcmp.eq.f32.partialorder %v1795, %v1869
        %vm1924 = vcmp.eq.f32.partialorder %v1796, %v1869
        %vm1925 = vcmp.eq.f32.partialorder %v1797, %v1869
        %vm1926 = vcmp.eq.f32.partialorder %v1798, %v1874
        %vm1927 = vcmp.eq.f32.partialorder %v1799, %v1874
        %vm1928 = vcmp.eq.f32.partialorder %v1800, %v1874
        %vm1929 = vcmp.eq.f32.partialorder %v1801, %v1879
        %vm1930 = vcmp.eq.f32.partialorder %v1802, %v1879
        %vm1931 = vcmp.eq.f32.partialorder %v1803, %v1879
        %vm1932 = vcmp.eq.f32.partialorder %v1804, %v1884
        %vm1933 = vcmp.eq.f32.partialorder %v1805, %v1884
        %vm1934 = vcmp.eq.f32.partialorder %v1806, %v1884
        %vm1935 = vcmp.eq.f32.partialorder %v1807, %v1889
        %vm1936 = vcmp.eq.f32.partialorder %v1808, %v1889
        %vm1937 = vcmp.eq.f32.partialorder %v1809, %v1889
        %v1938 = vsel %vm1890, -inf, %v1762
        %v1939 = vsel %vm1891, -inf, %v1763
        %v1940 = vsel %vm1892, -inf, %v1764
        %v1941 = vsel %vm1893, -inf, %v1765
        %v1942 = vsel %vm1894, -inf, %v1766
        %v1943 = vsel %vm1895, -inf, %v1767
        %v1944 = vsel %vm1896, -inf, %v1768
        %v1945 = vsel %vm1897, -inf, %v1769
        %v1946 = vsel %vm1898, -inf, %v1770
        %v1947 = vsel %vm1899, -inf, %v1771
        %v1948 = vsel %vm1900, -inf, %v1772
        %v1949 = vsel %vm1901, -inf, %v1773
        %v1950 = vsel %vm1902, -inf, %v1774
        %v1951 = vsel %vm1903, -inf, %v1775
        %v1952 = vsel %vm1904, -inf, %v1776
        %v1953 = vsel %vm1905, -inf, %v1777
        %v1954 = vsel %vm1906, -inf, %v1778
        %v1955 = vsel %vm1907, -inf, %v1779
        %v1956 = vsel %vm1908, -inf, %v1780
        %v1957 = vsel %vm1909, -inf, %v1781
        %v1958 = vsel %vm1910, -inf, %v1782
        %v1959 = vsel %vm1911, -inf, %v1783
        %v1960 = vsel %vm1912, -inf, %v1784
        %v1961 = vsel %vm1913, -inf, %v1785
        %v1962 = vsel %vm1914, -inf, %v1786
        %v1963 = vsel %vm1915, -inf, %v1787
        %v1964 = vsel %vm1916, -inf, %v1788
        %v1965 = vsel %vm1917, -inf, %v1789
        %v1966 = vsel %vm1918, -inf, %v1790
        %v1967 = vsel %vm1919, -inf, %v1791
        %v1968 = vsel %vm1920, -inf, %v1792
        %v1969 = vsel %vm1921, -inf, %v1793
        %v1970 = vsel %vm1922, -inf, %v1794
        %v1971 = vsel %vm1923, -inf, %v1795
        %v1972 = vsel %vm1924, -inf, %v1796
        %v1973 = vsel %vm1925, -inf, %v1797
        %v1974 = vsel %vm1926, -inf, %v1798
        %v1975 = vsel %vm1927, -inf, %v1799
        %v1976 = vsel %vm1928, -inf, %v1800
        %v1977 = vsel %vm1929, -inf, %v1801
        %v1978 = vsel %vm1930, -inf, %v1802
        %v1979 = vsel %vm1931, -inf, %v1803
        %v1980 = vsel %vm1932, -inf, %v1804
        %v1981 = vsel %vm1933, -inf, %v1805
        %v1982 = vsel %vm1934, -inf, %v1806
        %v1983 = vsel %vm1935, -inf, %v1807
        %v1984 = vsel %vm1936, -inf, %v1808
        %v1985 = vsel %vm1937, -inf, %v1809
        %v1986 = vmax.f32 %v1938, %v1939
        %v1987 = vsel %vm1106, %v1940, -inf
        %v1988 = vmax.f32 %v1986, %v1987
        %1989 = vmax.xlane.f32.xlu0 %v1988
        %v1990 = vpop.xlane.xlu0 %1989
        %v1991 = vmax.f32 %v1941, %v1942
        %v1992 = vsel %vm1106, %v1943, -inf
        %v1993 = vmax.f32 %v1991, %v1992
        %1994 = vmax.xlane.f32.xlu0 %v1993
        %v1995 = vpop.xlane.xlu0 %1994
        %v1996 = vmax.f32 %v1944, %v1945
        %v1997 = vsel %vm1106, %v1946, -inf
        %v1998 = vmax.f32 %v1996, %v1997
        %1999 = vmax.xlane.f32.xlu0 %v1998
        %v2000 = vpop.xlane.xlu0 %1999
        %v2001 = vmax.f32 %v1947, %v1948
        %v2002 = vsel %vm1106, %v1949, -inf
        %v2003 = vmax.f32 %v2001, %v2002
        %2004 = vmax.xlane.f32.xlu0 %v2003
        %v2005 = vpop.xlane.xlu0 %2004
        %v2006 = vmax.f32 %v1950, %v1951
        %v2007 = vsel %vm1106, %v1952, -inf
        %v2008 = vmax.f32 %v2006, %v2007
        %2009 = vmax.xlane.f32.xlu0 %v2008
        %v2010 = vpop.xlane.xlu0 %2009
        %v2011 = vmax.f32 %v1953, %v1954
        %v2012 = vsel %vm1106, %v1955, -inf
        %v2013 = vmax.f32 %v2011, %v2012
        %2014 = vmax.xlane.f32.xlu0 %v2013
        %v2015 = vpop.xlane.xlu0 %2014
        %v2016 = vmax.f32 %v1956, %v1957
        %v2017 = vsel %vm1106, %v1958, -inf
        %v2018 = vmax.f32 %v2016, %v2017
        %2019 = vmax.xlane.f32.xlu0 %v2018
        %v2020 = vpop.xlane.xlu0 %2019
        %v2021 = vmax.f32 %v1959, %v1960
        %v2022 = vsel %vm1106, %v1961, -inf
        %v2023 = vmax.f32 %v2021, %v2022
        %2024 = vmax.xlane.f32.xlu0 %v2023
        %v2025 = vpop.xlane.xlu0 %2024
        %v2026 = vmax.f32 %v1962, %v1963
        %v2027 = vsel %vm1106, %v1964, -inf
        %v2028 = vmax.f32 %v2026, %v2027
        %2029 = vmax.xlane.f32.xlu0 %v2028
        %v2030 = vpop.xlane.xlu0 %2029
        %v2031 = vmax.f32 %v1965, %v1966
        %v2032 = vsel %vm1106, %v1967, -inf
        %v2033 = vmax.f32 %v2031, %v2032
        %2034 = vmax.xlane.f32.xlu0 %v2033
        %v2035 = vpop.xlane.xlu0 %2034
        %v2036 = vmax.f32 %v1968, %v1969
        %v2037 = vsel %vm1106, %v1970, -inf
        %v2038 = vmax.f32 %v2036, %v2037
        %2039 = vmax.xlane.f32.xlu0 %v2038
        %v2040 = vpop.xlane.xlu0 %2039
        %v2041 = vmax.f32 %v1971, %v1972
        %v2042 = vsel %vm1106, %v1973, -inf
        %v2043 = vmax.f32 %v2041, %v2042
        %2044 = vmax.xlane.f32.xlu0 %v2043
        %v2045 = vpop.xlane.xlu0 %2044
        %v2046 = vmax.f32 %v1974, %v1975
        %v2047 = vsel %vm1106, %v1976, -inf
        %v2048 = vmax.f32 %v2046, %v2047
        %2049 = vmax.xlane.f32.xlu0 %v2048
        %v2050 = vpop.xlane.xlu0 %2049
        %v2051 = vmax.f32 %v1977, %v1978
        %v2052 = vsel %vm1106, %v1979, -inf
        %v2053 = vmax.f32 %v2051, %v2052
        %2054 = vmax.xlane.f32.xlu0 %v2053
        %v2055 = vpop.xlane.xlu0 %2054
        %v2056 = vmax.f32 %v1980, %v1981
        %v2057 = vsel %vm1106, %v1982, -inf
        %v2058 = vmax.f32 %v2056, %v2057
        %2059 = vmax.xlane.f32.xlu0 %v2058
        %v2060 = vpop.xlane.xlu0 %2059
        %v2061 = vmax.f32 %v1983, %v1984
        %v2062 = vsel %vm1106, %v1985, -inf
        %v2063 = vmax.f32 %v2061, %v2062
        %2064 = vmax.xlane.f32.xlu0 %v2063
        %v2065 = vpop.xlane.xlu0 %2064
        %vm2066 = vcmp.eq.f32.partialorder %v1938, %v1990
        %vm2067 = vcmp.eq.f32.partialorder %v1939, %v1990
        %vm2068 = vcmp.eq.f32.partialorder %v1940, %v1990
        %vm2069 = vcmp.eq.f32.partialorder %v1941, %v1995
        %vm2070 = vcmp.eq.f32.partialorder %v1942, %v1995
        %vm2071 = vcmp.eq.f32.partialorder %v1943, %v1995
        %vm2072 = vcmp.eq.f32.partialorder %v1944, %v2000
        %vm2073 = vcmp.eq.f32.partialorder %v1945, %v2000
        %vm2074 = vcmp.eq.f32.partialorder %v1946, %v2000
        %vm2075 = vcmp.eq.f32.partialorder %v1947, %v2005
        %vm2076 = vcmp.eq.f32.partialorder %v1948, %v2005
        %vm2077 = vcmp.eq.f32.partialorder %v1949, %v2005
        %vm2078 = vcmp.eq.f32.partialorder %v1950, %v2010
        %vm2079 = vcmp.eq.f32.partialorder %v1951, %v2010
        %vm2080 = vcmp.eq.f32.partialorder %v1952, %v2010
        %vm2081 = vcmp.eq.f32.partialorder %v1953, %v2015
        %vm2082 = vcmp.eq.f32.partialorder %v1954, %v2015
        %vm2083 = vcmp.eq.f32.partialorder %v1955, %v2015
        %vm2084 = vcmp.eq.f32.partialorder %v1956, %v2020
        %vm2085 = vcmp.eq.f32.partialorder %v1957, %v2020
        %vm2086 = vcmp.eq.f32.partialorder %v1958, %v2020
        %vm2087 = vcmp.eq.f32.partialorder %v1959, %v2025
        %vm2088 = vcmp.eq.f32.partialorder %v1960, %v2025
        %vm2089 = vcmp.eq.f32.partialorder %v1961, %v2025
        %vm2090 = vcmp.eq.f32.partialorder %v1962, %v2030
        %vm2091 = vcmp.eq.f32.partialorder %v1963, %v2030
        %vm2092 = vcmp.eq.f32.partialorder %v1964, %v2030
        %vm2093 = vcmp.eq.f32.partialorder %v1965, %v2035
        %vm2094 = vcmp.eq.f32.partialorder %v1966, %v2035
        %vm2095 = vcmp.eq.f32.partialorder %v1967, %v2035
        %vm2096 = vcmp.eq.f32.partialorder %v1968, %v2040
        %vm2097 = vcmp.eq.f32.partialorder %v1969, %v2040
        %vm2098 = vcmp.eq.f32.partialorder %v1970, %v2040
        %vm2099 = vcmp.eq.f32.partialorder %v1971, %v2045
        %vm2100 = vcmp.eq.f32.partialorder %v1972, %v2045
        %vm2101 = vcmp.eq.f32.partialorder %v1973, %v2045
        %vm2102 = vcmp.eq.f32.partialorder %v1974, %v2050
        %vm2103 = vcmp.eq.f32.partialorder %v1975, %v2050
        %vm2104 = vcmp.eq.f32.partialorder %v1976, %v2050
        %vm2105 = vcmp.eq.f32.partialorder %v1977, %v2055
        %vm2106 = vcmp.eq.f32.partialorder %v1978, %v2055
        %vm2107 = vcmp.eq.f32.partialorder %v1979, %v2055
        %vm2108 = vcmp.eq.f32.partialorder %v1980, %v2060
        %vm2109 = vcmp.eq.f32.partialorder %v1981, %v2060
        %vm2110 = vcmp.eq.f32.partialorder %v1982, %v2060
        %vm2111 = vcmp.eq.f32.partialorder %v1983, %v2065
        %vm2112 = vcmp.eq.f32.partialorder %v1984, %v2065
        %vm2113 = vcmp.eq.f32.partialorder %v1985, %v2065
        %v2114 = vsel %vm2066, -inf, %v1938
        %v2115 = vsel %vm2067, -inf, %v1939
        %v2116 = vsel %vm2068, -inf, %v1940
        %v2117 = vsel %vm2069, -inf, %v1941
        %v2118 = vsel %vm2070, -inf, %v1942
        %v2119 = vsel %vm2071, -inf, %v1943
        %v2120 = vsel %vm2072, -inf, %v1944
        %v2121 = vsel %vm2073, -inf, %v1945
        %v2122 = vsel %vm2074, -inf, %v1946
        %v2123 = vsel %vm2075, -inf, %v1947
        %v2124 = vsel %vm2076, -inf, %v1948
        %v2125 = vsel %vm2077, -inf, %v1949
        %v2126 = vsel %vm2078, -inf, %v1950
        %v2127 = vsel %vm2079, -inf, %v1951
        %v2128 = vsel %vm2080, -inf, %v1952
        %v2129 = vsel %vm2081, -inf, %v1953
        %v2130 = vsel %vm2082, -inf, %v1954
        %v2131 = vsel %vm2083, -inf, %v1955
        %v2132 = vsel %vm2084, -inf, %v1956
        %v2133 = vsel %vm2085, -inf, %v1957
        %v2134 = vsel %vm2086, -inf, %v1958
        %v2135 = vsel %vm2087, -inf, %v1959
        %v2136 = vsel %vm2088, -inf, %v1960
        %v2137 = vsel %vm2089, -inf, %v1961
        %v2138 = vsel %vm2090, -inf, %v1962
        %v2139 = vsel %vm2091, -inf, %v1963
        %v2140 = vsel %vm2092, -inf, %v1964
        %v2141 = vsel %vm2093, -inf, %v1965
        %v2142 = vsel %vm2094, -inf, %v1966
        %v2143 = vsel %vm2095, -inf, %v1967
        %v2144 = vsel %vm2096, -inf, %v1968
        %v2145 = vsel %vm2097, -inf, %v1969
        %v2146 = vsel %vm2098, -inf, %v1970
        %v2147 = vsel %vm2099, -inf, %v1971
        %v2148 = vsel %vm2100, -inf, %v1972
        %v2149 = vsel %vm2101, -inf, %v1973
        %v2150 = vsel %vm2102, -inf, %v1974
        %v2151 = vsel %vm2103, -inf, %v1975
        %v2152 = vsel %vm2104, -inf, %v1976
        %v2153 = vsel %vm2105, -inf, %v1977
        %v2154 = vsel %vm2106, -inf, %v1978
        %v2155 = vsel %vm2107, -inf, %v1979
        %v2156 = vsel %vm2108, -inf, %v1980
        %v2157 = vsel %vm2109, -inf, %v1981
        %v2158 = vsel %vm2110, -inf, %v1982
        %v2159 = vsel %vm2111, -inf, %v1983
        %v2160 = vsel %vm2112, -inf, %v1984
        %v2161 = vsel %vm2113, -inf, %v1985
        %v2162 = vmax.f32 %v2114, %v2115
        %v2163 = vsel %vm1106, %v2116, -inf
        %v2164 = vmax.f32 %v2162, %v2163
        %2165 = vmax.xlane.f32.xlu0 %v2164
        %v2166 = vpop.xlane.xlu0 %2165
        %v2167 = vmax.f32 %v2117, %v2118
        %v2168 = vsel %vm1106, %v2119, -inf
        %v2169 = vmax.f32 %v2167, %v2168
        %2170 = vmax.xlane.f32.xlu0 %v2169
        %v2171 = vpop.xlane.xlu0 %2170
        %v2172 = vmax.f32 %v2120, %v2121
        %v2173 = vsel %vm1106, %v2122, -inf
        %v2174 = vmax.f32 %v2172, %v2173
        %2175 = vmax.xlane.f32.xlu0 %v2174
        %v2176 = vpop.xlane.xlu0 %2175
        %v2177 = vmax.f32 %v2123, %v2124
        %v2178 = vsel %vm1106, %v2125, -inf
        %v2179 = vmax.f32 %v2177, %v2178
        %2180 = vmax.xlane.f32.xlu0 %v2179
        %v2181 = vpop.xlane.xlu0 %2180
        %v2182 = vmax.f32 %v2126, %v2127
        %v2183 = vsel %vm1106, %v2128, -inf
        %v2184 = vmax.f32 %v2182, %v2183
        %2185 = vmax.xlane.f32.xlu0 %v2184
        %v2186 = vpop.xlane.xlu0 %2185
        %v2187 = vmax.f32 %v2129, %v2130
        %v2188 = vsel %vm1106, %v2131, -inf
        %v2189 = vmax.f32 %v2187, %v2188
        %2190 = vmax.xlane.f32.xlu0 %v2189
        %v2191 = vpop.xlane.xlu0 %2190
        %v2192 = vmax.f32 %v2132, %v2133
        %v2193 = vsel %vm1106, %v2134, -inf
        %v2194 = vmax.f32 %v2192, %v2193
        %2195 = vmax.xlane.f32.xlu0 %v2194
        %v2196 = vpop.xlane.xlu0 %2195
        %v2197 = vmax.f32 %v2135, %v2136
        %v2198 = vsel %vm1106, %v2137, -inf
        %v2199 = vmax.f32 %v2197, %v2198
        %2200 = vmax.xlane.f32.xlu0 %v2199
        %v2201 = vpop.xlane.xlu0 %2200
        %v2202 = vmax.f32 %v2138, %v2139
        %v2203 = vsel %vm1106, %v2140, -inf
        %v2204 = vmax.f32 %v2202, %v2203
        %2205 = vmax.xlane.f32.xlu0 %v2204
        %v2206 = vpop.xlane.xlu0 %2205
        %v2207 = vmax.f32 %v2141, %v2142
        %v2208 = vsel %vm1106, %v2143, -inf
        %v2209 = vmax.f32 %v2207, %v2208
        %2210 = vmax.xlane.f32.xlu0 %v2209
        %v2211 = vpop.xlane.xlu0 %2210
        %v2212 = vmax.f32 %v2144, %v2145
        %v2213 = vsel %vm1106, %v2146, -inf
        %v2214 = vmax.f32 %v2212, %v2213
        %2215 = vmax.xlane.f32.xlu0 %v2214
        %v2216 = vpop.xlane.xlu0 %2215
        %v2217 = vmax.f32 %v2147, %v2148
        %v2218 = vsel %vm1106, %v2149, -inf
        %v2219 = vmax.f32 %v2217, %v2218
        %2220 = vmax.xlane.f32.xlu0 %v2219
        %v2221 = vpop.xlane.xlu0 %2220
        %v2222 = vmax.f32 %v2150, %v2151
        %v2223 = vsel %vm1106, %v2152, -inf
        %v2224 = vmax.f32 %v2222, %v2223
        %2225 = vmax.xlane.f32.xlu0 %v2224
        %v2226 = vpop.xlane.xlu0 %2225
        %v2227 = vmax.f32 %v2153, %v2154
        %v2228 = vsel %vm1106, %v2155, -inf
        %v2229 = vmax.f32 %v2227, %v2228
        %2230 = vmax.xlane.f32.xlu0 %v2229
        %v2231 = vpop.xlane.xlu0 %2230
        %v2232 = vmax.f32 %v2156, %v2157
        %v2233 = vsel %vm1106, %v2158, -inf
        %v2234 = vmax.f32 %v2232, %v2233
        %2235 = vmax.xlane.f32.xlu0 %v2234
        %v2236 = vpop.xlane.xlu0 %2235
        %v2237 = vmax.f32 %v2159, %v2160
        %v2238 = vsel %vm1106, %v2161, -inf
        %v2239 = vmax.f32 %v2237, %v2238
        %2240 = vmax.xlane.f32.xlu0 %v2239
        %v2241 = vpop.xlane.xlu0 %2240
        %vm2242 = vcmp.eq.f32.partialorder %v2114, %v2166
        %vm2243 = vcmp.eq.f32.partialorder %v2115, %v2166
        %vm2244 = vcmp.eq.f32.partialorder %v2116, %v2166
        %vm2245 = vcmp.eq.f32.partialorder %v2117, %v2171
        %vm2246 = vcmp.eq.f32.partialorder %v2118, %v2171
        %vm2247 = vcmp.eq.f32.partialorder %v2119, %v2171
        %vm2248 = vcmp.eq.f32.partialorder %v2120, %v2176
        %vm2249 = vcmp.eq.f32.partialorder %v2121, %v2176
        %vm2250 = vcmp.eq.f32.partialorder %v2122, %v2176
        %vm2251 = vcmp.eq.f32.partialorder %v2123, %v2181
        %vm2252 = vcmp.eq.f32.partialorder %v2124, %v2181
        %vm2253 = vcmp.eq.f32.partialorder %v2125, %v2181
        %vm2254 = vcmp.eq.f32.partialorder %v2126, %v2186
        %vm2255 = vcmp.eq.f32.partialorder %v2127, %v2186
        %vm2256 = vcmp.eq.f32.partialorder %v2128, %v2186
        %vm2257 = vcmp.eq.f32.partialorder %v2129, %v2191
        %vm2258 = vcmp.eq.f32.partialorder %v2130, %v2191
        %vm2259 = vcmp.eq.f32.partialorder %v2131, %v2191
        %vm2260 = vcmp.eq.f32.partialorder %v2132, %v2196
        %vm2261 = vcmp.eq.f32.partialorder %v2133, %v2196
        %vm2262 = vcmp.eq.f32.partialorder %v2134, %v2196
        %vm2263 = vcmp.eq.f32.partialorder %v2135, %v2201
        %vm2264 = vcmp.eq.f32.partialorder %v2136, %v2201
        %vm2265 = vcmp.eq.f32.partialorder %v2137, %v2201
        %vm2266 = vcmp.eq.f32.partialorder %v2138, %v2206
        %vm2267 = vcmp.eq.f32.partialorder %v2139, %v2206
        %vm2268 = vcmp.eq.f32.partialorder %v2140, %v2206
        %vm2269 = vcmp.eq.f32.partialorder %v2141, %v2211
        %vm2270 = vcmp.eq.f32.partialorder %v2142, %v2211
        %vm2271 = vcmp.eq.f32.partialorder %v2143, %v2211
        %vm2272 = vcmp.eq.f32.partialorder %v2144, %v2216
        %vm2273 = vcmp.eq.f32.partialorder %v2145, %v2216
        %vm2274 = vcmp.eq.f32.partialorder %v2146, %v2216
        %vm2275 = vcmp.eq.f32.partialorder %v2147, %v2221
        %vm2276 = vcmp.eq.f32.partialorder %v2148, %v2221
        %vm2277 = vcmp.eq.f32.partialorder %v2149, %v2221
        %vm2278 = vcmp.eq.f32.partialorder %v2150, %v2226
        %vm2279 = vcmp.eq.f32.partialorder %v2151, %v2226
        %vm2280 = vcmp.eq.f32.partialorder %v2152, %v2226
        %vm2281 = vcmp.eq.f32.partialorder %v2153, %v2231
        %vm2282 = vcmp.eq.f32.partialorder %v2154, %v2231
        %vm2283 = vcmp.eq.f32.partialorder %v2155, %v2231
        %vm2284 = vcmp.eq.f32.partialorder %v2156, %v2236
        %vm2285 = vcmp.eq.f32.partialorder %v2157, %v2236
        %vm2286 = vcmp.eq.f32.partialorder %v2158, %v2236
        %vm2287 = vcmp.eq.f32.partialorder %v2159, %v2241
        %vm2288 = vcmp.eq.f32.partialorder %v2160, %v2241
        %vm2289 = vcmp.eq.f32.partialorder %v2161, %v2241
        %v2290 = vsel %vm2242, -inf, %v2114
        %v2291 = vsel %vm2243, -inf, %v2115
        %v2292 = vsel %vm2244, -inf, %v2116
        %v2293 = vsel %vm2245, -inf, %v2117
        %v2294 = vsel %vm2246, -inf, %v2118
        %v2295 = vsel %vm2247, -inf, %v2119
        %v2296 = vsel %vm2248, -inf, %v2120
        %v2297 = vsel %vm2249, -inf, %v2121
        %v2298 = vsel %vm2250, -inf, %v2122
        %v2299 = vsel %vm2251, -inf, %v2123
        %v2300 = vsel %vm2252, -inf, %v2124
        %v2301 = vsel %vm2253, -inf, %v2125
        %v2302 = vsel %vm2254, -inf, %v2126
        %v2303 = vsel %vm2255, -inf, %v2127
        %v2304 = vsel %vm2256, -inf, %v2128
        %v2305 = vsel %vm2257, -inf, %v2129
        %v2306 = vsel %vm2258, -inf, %v2130
        %v2307 = vsel %vm2259, -inf, %v2131
        %v2308 = vsel %vm2260, -inf, %v2132
        %v2309 = vsel %vm2261, -inf, %v2133
        %v2310 = vsel %vm2262, -inf, %v2134
        %v2311 = vsel %vm2263, -inf, %v2135
        %v2312 = vsel %vm2264, -inf, %v2136
        %v2313 = vsel %vm2265, -inf, %v2137
        %v2314 = vsel %vm2266, -inf, %v2138
        %v2315 = vsel %vm2267, -inf, %v2139
        %v2316 = vsel %vm2268, -inf, %v2140
        %v2317 = vsel %vm2269, -inf, %v2141
        %v2318 = vsel %vm2270, -inf, %v2142
        %v2319 = vsel %vm2271, -inf, %v2143
        %v2320 = vsel %vm2272, -inf, %v2144
        %v2321 = vsel %vm2273, -inf, %v2145
        %v2322 = vsel %vm2274, -inf, %v2146
        %v2323 = vsel %vm2275, -inf, %v2147
        %v2324 = vsel %vm2276, -inf, %v2148
        %v2325 = vsel %vm2277, -inf, %v2149
        %v2326 = vsel %vm2278, -inf, %v2150
        %v2327 = vsel %vm2279, -inf, %v2151
        %v2328 = vsel %vm2280, -inf, %v2152
        %v2329 = vsel %vm2281, -inf, %v2153
        %v2330 = vsel %vm2282, -inf, %v2154
        %v2331 = vsel %vm2283, -inf, %v2155
        %v2332 = vsel %vm2284, -inf, %v2156
        %v2333 = vsel %vm2285, -inf, %v2157
        %v2334 = vsel %vm2286, -inf, %v2158
        %v2335 = vsel %vm2287, -inf, %v2159
        %v2336 = vsel %vm2288, -inf, %v2160
        %v2337 = vsel %vm2289, -inf, %v2161
        %v2338 = vmax.f32 %v2290, %v2291
        %v2339 = vsel %vm1106, %v2292, -inf
        %v2340 = vmax.f32 %v2338, %v2339
        %2341 = vmax.xlane.f32.xlu0 %v2340
        %v2342 = vpop.xlane.xlu0 %2341
        %v2343 = vmax.f32 %v2293, %v2294
        %v2344 = vsel %vm1106, %v2295, -inf
        %v2345 = vmax.f32 %v2343, %v2344
        %2346 = vmax.xlane.f32.xlu0 %v2345
        %v2347 = vpop.xlane.xlu0 %2346
        %v2348 = vmax.f32 %v2296, %v2297
        %v2349 = vsel %vm1106, %v2298, -inf
        %v2350 = vmax.f32 %v2348, %v2349
        %2351 = vmax.xlane.f32.xlu0 %v2350
        %v2352 = vpop.xlane.xlu0 %2351
        %v2353 = vmax.f32 %v2299, %v2300
        %v2354 = vsel %vm1106, %v2301, -inf
        %v2355 = vmax.f32 %v2353, %v2354
        %2356 = vmax.xlane.f32.xlu0 %v2355
        %v2357 = vpop.xlane.xlu0 %2356
        %v2358 = vmax.f32 %v2302, %v2303
        %v2359 = vsel %vm1106, %v2304, -inf
        %v2360 = vmax.f32 %v2358, %v2359
        %2361 = vmax.xlane.f32.xlu0 %v2360
        %v2362 = vpop.xlane.xlu0 %2361
        %v2363 = vmax.f32 %v2305, %v2306
        %v2364 = vsel %vm1106, %v2307, -inf
        %v2365 = vmax.f32 %v2363, %v2364
        %2366 = vmax.xlane.f32.xlu0 %v2365
        %v2367 = vpop.xlane.xlu0 %2366
        %v2368 = vmax.f32 %v2308, %v2309
        %v2369 = vsel %vm1106, %v2310, -inf
        %v2370 = vmax.f32 %v2368, %v2369
        %2371 = vmax.xlane.f32.xlu0 %v2370
        %v2372 = vpop.xlane.xlu0 %2371
        %v2373 = vmax.f32 %v2311, %v2312
        %v2374 = vsel %vm1106, %v2313, -inf
        %v2375 = vmax.f32 %v2373, %v2374
        %2376 = vmax.xlane.f32.xlu0 %v2375
        %v2377 = vpop.xlane.xlu0 %2376
        %v2378 = vmax.f32 %v2314, %v2315
        %v2379 = vsel %vm1106, %v2316, -inf
        %v2380 = vmax.f32 %v2378, %v2379
        %2381 = vmax.xlane.f32.xlu0 %v2380
        %v2382 = vpop.xlane.xlu0 %2381
        %v2383 = vmax.f32 %v2317, %v2318
        %v2384 = vsel %vm1106, %v2319, -inf
        %v2385 = vmax.f32 %v2383, %v2384
        %2386 = vmax.xlane.f32.xlu0 %v2385
        %v2387 = vpop.xlane.xlu0 %2386
        %v2388 = vmax.f32 %v2320, %v2321
        %v2389 = vsel %vm1106, %v2322, -inf
        %v2390 = vmax.f32 %v2388, %v2389
        %2391 = vmax.xlane.f32.xlu0 %v2390
        %v2392 = vpop.xlane.xlu0 %2391
        %v2393 = vmax.f32 %v2323, %v2324
        %v2394 = vsel %vm1106, %v2325, -inf
        %v2395 = vmax.f32 %v2393, %v2394
        %2396 = vmax.xlane.f32.xlu0 %v2395
        %v2397 = vpop.xlane.xlu0 %2396
        %v2398 = vmax.f32 %v2326, %v2327
        %v2399 = vsel %vm1106, %v2328, -inf
        %v2400 = vmax.f32 %v2398, %v2399
        %2401 = vmax.xlane.f32.xlu0 %v2400
        %v2402 = vpop.xlane.xlu0 %2401
        %v2403 = vmax.f32 %v2329, %v2330
        %v2404 = vsel %vm1106, %v2331, -inf
        %v2405 = vmax.f32 %v2403, %v2404
        %2406 = vmax.xlane.f32.xlu0 %v2405
        %v2407 = vpop.xlane.xlu0 %2406
        %v2408 = vmax.f32 %v2332, %v2333
        %v2409 = vsel %vm1106, %v2334, -inf
        %v2410 = vmax.f32 %v2408, %v2409
        %2411 = vmax.xlane.f32.xlu0 %v2410
        %v2412 = vpop.xlane.xlu0 %2411
        %v2413 = vmax.f32 %v2335, %v2336
        %v2414 = vsel %vm1106, %v2337, -inf
        %v2415 = vmax.f32 %v2413, %v2414
        %2416 = vmax.xlane.f32.xlu0 %v2415
        %v2417 = vpop.xlane.xlu0 %2416
        %v2418 = vlaneseq
        %v2419 = vand.u32 %v2418, 127
        %vm2420 = vcmp.eq.s32.totalorder %v2419, 0
        %v2421 = vsel %vm2420, %v1110, -inf
        %v2422 = vsel %vm2420, %v1115, -inf
        %v2423 = vsel %vm2420, %v1120, -inf
        %v2424 = vsel %vm2420, %v1125, -inf
        %v2425 = vsel %vm2420, %v1130, -inf
        %v2426 = vsel %vm2420, %v1135, -inf
        %v2427 = vsel %vm2420, %v1140, -inf
        %v2428 = vsel %vm2420, %v1145, -inf
        %v2429 = vsel %vm2420, %v1150, -inf
        %v2430 = vsel %vm2420, %v1155, -inf
        %v2431 = vsel %vm2420, %v1160, -inf
        %v2432 = vsel %vm2420, %v1165, -inf
        %v2433 = vsel %vm2420, %v1170, -inf
        %v2434 = vsel %vm2420, %v1175, -inf
        %v2435 = vsel %vm2420, %v1180, -inf
        %v2436 = vsel %vm2420, %v1185, -inf
        %vm2437 = vcmp.eq.s32.totalorder %v2419, 1
        %v2438 = vsel %vm2437, %v1286, %v2421
        %v2439 = vsel %vm2437, %v1291, %v2422
        %v2440 = vsel %vm2437, %v1296, %v2423
        %v2441 = vsel %vm2437, %v1301, %v2424
        %v2442 = vsel %vm2437, %v1306, %v2425
        %v2443 = vsel %vm2437, %v1311, %v2426
        %v2444 = vsel %vm2437, %v1316, %v2427
        %v2445 = vsel %vm2437, %v1321, %v2428
        %v2446 = vsel %vm2437, %v1326, %v2429
        %v2447 = vsel %vm2437, %v1331, %v2430
        %v2448 = vsel %vm2437, %v1336, %v2431
        %v2449 = vsel %vm2437, %v1341, %v2432
        %v2450 = vsel %vm2437, %v1346, %v2433
        %v2451 = vsel %vm2437, %v1351, %v2434
        %v2452 = vsel %vm2437, %v1356, %v2435
        %v2453 = vsel %vm2437, %v1361, %v2436
        %vm2454 = vcmp.eq.s32.totalorder %v2419, 2
        %v2455 = vsel %vm2454, %v1462, %v2438
        %v2456 = vsel %vm2454, %v1467, %v2439
        %v2457 = vsel %vm2454, %v1472, %v2440
        %v2458 = vsel %vm2454, %v1477, %v2441
        %v2459 = vsel %vm2454, %v1482, %v2442
        %v2460 = vsel %vm2454, %v1487, %v2443
        %v2461 = vsel %vm2454, %v1492, %v2444
        %v2462 = vsel %vm2454, %v1497, %v2445
        %v2463 = vsel %vm2454, %v1502, %v2446
        %v2464 = vsel %vm2454, %v1507, %v2447
        %v2465 = vsel %vm2454, %v1512, %v2448
        %v2466 = vsel %vm2454, %v1517, %v2449
        %v2467 = vsel %vm2454, %v1522, %v2450
        %v2468 = vsel %vm2454, %v1527, %v2451
        %v2469 = vsel %vm2454, %v1532, %v2452
        %v2470 = vsel %vm2454, %v1537, %v2453
        %vm2471 = vcmp.eq.s32.totalorder %v2419, 3
        %v2472 = vsel %vm2471, %v1638, %v2455
        %v2473 = vsel %vm2471, %v1643, %v2456
        %v2474 = vsel %vm2471, %v1648, %v2457
        %v2475 = vsel %vm2471, %v1653, %v2458
        %v2476 = vsel %vm2471, %v1658, %v2459
        %v2477 = vsel %vm2471, %v1663, %v2460
        %v2478 = vsel %vm2471, %v1668, %v2461
        %v2479 = vsel %vm2471, %v1673, %v2462
        %v2480 = vsel %vm2471, %v1678, %v2463
        %v2481 = vsel %vm2471, %v1683, %v2464
        %v2482 = vsel %vm2471, %v1688, %v2465
        %v2483 = vsel %vm2471, %v1693, %v2466
        %v2484 = vsel %vm2471, %v1698, %v2467
        %v2485 = vsel %vm2471, %v1703, %v2468
        %v2486 = vsel %vm2471, %v1708, %v2469
        %v2487 = vsel %vm2471, %v1713, %v2470
        %vm2488 = vcmp.eq.s32.totalorder %v2419, 4
        %v2489 = vsel %vm2488, %v1814, %v2472
        %v2490 = vsel %vm2488, %v1819, %v2473
        %v2491 = vsel %vm2488, %v1824, %v2474
        %v2492 = vsel %vm2488, %v1829, %v2475
        %v2493 = vsel %vm2488, %v1834, %v2476
        %v2494 = vsel %vm2488, %v1839, %v2477
        %v2495 = vsel %vm2488, %v1844, %v2478
        %v2496 = vsel %vm2488, %v1849, %v2479
        %v2497 = vsel %vm2488, %v1854, %v2480
        %v2498 = vsel %vm2488, %v1859, %v2481
        %v2499 = vsel %vm2488, %v1864, %v2482
        %v2500 = vsel %vm2488, %v1869, %v2483
        %v2501 = vsel %vm2488, %v1874, %v2484
        %v2502 = vsel %vm2488, %v1879, %v2485
        %v2503 = vsel %vm2488, %v1884, %v2486
        %v2504 = vsel %vm2488, %v1889, %v2487
        %vm2505 = vcmp.eq.s32.totalorder %v2419, 5
        %v2506 = vsel %vm2505, %v1990, %v2489
        %v2507 = vsel %vm2505, %v1995, %v2490
        %v2508 = vsel %vm2505, %v2000, %v2491
        %v2509 = vsel %vm2505, %v2005, %v2492
        %v2510 = vsel %vm2505, %v2010, %v2493
        %v2511 = vsel %vm2505, %v2015, %v2494
        %v2512 = vsel %vm2505, %v2020, %v2495
        %v2513 = vsel %vm2505, %v2025, %v2496
        %v2514 = vsel %vm2505, %v2030, %v2497
        %v2515 = vsel %vm2505, %v2035, %v2498
        %v2516 = vsel %vm2505, %v2040, %v2499
        %v2517 = vsel %vm2505, %v2045, %v2500
        %v2518 = vsel %vm2505, %v2050, %v2501
        %v2519 = vsel %vm2505, %v2055, %v2502
        %v2520 = vsel %vm2505, %v2060, %v2503
        %v2521 = vsel %vm2505, %v2065, %v2504
        %vm2522 = vcmp.eq.s32.totalorder %v2419, 6
        %v2523 = vsel %vm2522, %v2166, %v2506
        %v2524 = vsel %vm2522, %v2171, %v2507
        %v2525 = vsel %vm2522, %v2176, %v2508
        %v2526 = vsel %vm2522, %v2181, %v2509
        %v2527 = vsel %vm2522, %v2186, %v2510
        %v2528 = vsel %vm2522, %v2191, %v2511
        %v2529 = vsel %vm2522, %v2196, %v2512
        %v2530 = vsel %vm2522, %v2201, %v2513
        %v2531 = vsel %vm2522, %v2206, %v2514
        %v2532 = vsel %vm2522, %v2211, %v2515
        %v2533 = vsel %vm2522, %v2216, %v2516
        %v2534 = vsel %vm2522, %v2221, %v2517
        %v2535 = vsel %vm2522, %v2226, %v2518
        %v2536 = vsel %vm2522, %v2231, %v2519
        %v2537 = vsel %vm2522, %v2236, %v2520
        %v2538 = vsel %vm2522, %v2241, %v2521
        %vm2539 = vcmp.eq.s32.totalorder %v2419, 7
        %v2540 = vsel %vm2539, %v2342, %v2523
        %v2541 = vsel %vm2539, %v2347, %v2524
        %v2542 = vsel %vm2539, %v2352, %v2525
        %v2543 = vsel %vm2539, %v2357, %v2526
        %v2544 = vsel %vm2539, %v2362, %v2527
        %v2545 = vsel %vm2539, %v2367, %v2528
        %v2546 = vsel %vm2539, %v2372, %v2529
        %v2547 = vsel %vm2539, %v2377, %v2530
        %v2548 = vsel %vm2539, %v2382, %v2531
        %v2549 = vsel %vm2539, %v2387, %v2532
        %v2550 = vsel %vm2539, %v2392, %v2533
        %v2551 = vsel %vm2539, %v2397, %v2534
        %v2552 = vsel %vm2539, %v2402, %v2535
        %v2553 = vsel %vm2539, %v2407, %v2536
        %v2554 = vsel %vm2539, %v2412, %v2537
        %v2555 = vsel %vm2539, %v2417, %v2538
        %2556 = vst.msk [vmem:[#allocation3] sm:$0xff] %vm1106, %v2540
        %2557 = vst.msk [vmem:[#allocation3 + $0x8] sm:$0xff] %vm1106, %v2541
        %2558 = vst.msk [vmem:[#allocation3 + $0x10] sm:$0xff] %vm1106, %v2542
        %2559 = vst.msk [vmem:[#allocation3 + $0x18] sm:$0xff] %vm1106, %v2543
        %2560 = vst.msk [vmem:[#allocation3 + $0x20] sm:$0xff] %vm1106, %v2544
        %2561 = vst.msk [vmem:[#allocation3 + $0x28] sm:$0xff] %vm1106, %v2545
        %2562 = vst.msk [vmem:[#allocation3 + $0x30] sm:$0xff] %vm1106, %v2546
        %2563 = vst.msk [vmem:[#allocation3 + $0x38] sm:$0xff] %vm1106, %v2547
        %2564 = vst.msk [vmem:[#allocation3 + $0x40] sm:$0xff] %vm1106, %v2548
        %2565 = vst.msk [vmem:[#allocation3 + $0x48] sm:$0xff] %vm1106, %v2549
        %2566 = vst.msk [vmem:[#allocation3 + $0x50] sm:$0xff] %vm1106, %v2550
        %2567 = vst.msk [vmem:[#allocation3 + $0x58] sm:$0xff] %vm1106, %v2551
        %2568 = vst.msk [vmem:[#allocation3 + $0x60] sm:$0xff] %vm1106, %v2552
        %2569 = vst.msk [vmem:[#allocation3 + $0x68] sm:$0xff] %vm1106, %v2553
        %2570 = vst.msk [vmem:[#allocation3 + $0x70] sm:$0xff] %vm1106, %v2554
        %2571 = vst.msk [vmem:[#allocation3 + $0x78] sm:$0xff] %vm1106, %v2555
        %p2572 = scmp.eq.s32.totalorder %s24, 1
        // Predicated region
        $region33: #{tpu_custom_call.1} parent=27 // pred_check
          %p2573 = pneg %p2572
        $region34: #{tpu_custom_call.1} parent=27 // pred_check_branch
          %2575 = sbr.rel (%p2573) target = $region36
        $region35: #{tpu_custom_call.1} parent=27 // pred_region
          %v2576 = vld [vmem:[#allocation3] sm:$0xff]
          %v2577 = vld [vmem:[#allocation3 + $0x8] sm:$0xff]
          %v2578 = vld [vmem:[#allocation3 + $0x10] sm:$0xff]
          %v2579 = vld [vmem:[#allocation3 + $0x18] sm:$0xff]
          %v2580 = vld [vmem:[#allocation3 + $0x20] sm:$0xff]
          %v2581 = vld [vmem:[#allocation3 + $0x28] sm:$0xff]
          %v2582 = vld [vmem:[#allocation3 + $0x30] sm:$0xff]
          %v2583 = vld [vmem:[#allocation3 + $0x38] sm:$0xff]
          %v2584 = vld [vmem:[#allocation3 + $0x40] sm:$0xff]
          %v2585 = vld [vmem:[#allocation3 + $0x48] sm:$0xff]
          %v2586 = vld [vmem:[#allocation3 + $0x50] sm:$0xff]
          %v2587 = vld [vmem:[#allocation3 + $0x58] sm:$0xff]
          %v2588 = vld [vmem:[#allocation3 + $0x60] sm:$0xff]
          %v2589 = vld [vmem:[#allocation3 + $0x68] sm:$0xff]
          %v2590 = vld [vmem:[#allocation3 + $0x70] sm:$0xff]
          %v2591 = vld [vmem:[#allocation3 + $0x78] sm:$0xff]
          %2593 = vset.pattern.permute.xlu0 0
          %2594 = vperm.xlu0 %2593, %v2576
          %v2595 = vpop.permute.xlu0 %2594
          %2598 = vset.pattern.permute.xlu0 0
          %2599 = vperm.xlu0 %2598, %v2577
          %v2600 = vpop.permute.xlu0 %2599
          %2603 = vset.pattern.permute.xlu0 0
          %2604 = vperm.xlu0 %2603, %v2578
          %v2605 = vpop.permute.xlu0 %2604
          %2608 = vset.pattern.permute.xlu0 0
          %2609 = vperm.xlu0 %2608, %v2579
          %v2610 = vpop.permute.xlu0 %2609
          %2613 = vset.pattern.permute.xlu0 0
          %2614 = vperm.xlu0 %2613, %v2580
          %v2615 = vpop.permute.xlu0 %2614
          %2618 = vset.pattern.permute.xlu0 0
          %2619 = vperm.xlu0 %2618, %v2581
          %v2620 = vpop.permute.xlu0 %2619
          %2623 = vset.pattern.permute.xlu0 0
          %2624 = vperm.xlu0 %2623, %v2582
          %v2625 = vpop.permute.xlu0 %2624
          %2628 = vset.pattern.permute.xlu0 0
          %2629 = vperm.xlu0 %2628, %v2583
          %v2630 = vpop.permute.xlu0 %2629
          %2633 = vset.pattern.permute.xlu0 0
          %2634 = vperm.xlu0 %2633, %v2584
          %v2635 = vpop.permute.xlu0 %2634
          %2638 = vset.pattern.permute.xlu0 0
          %2639 = vperm.xlu0 %2638, %v2585
          %v2640 = vpop.permute.xlu0 %2639
          %2643 = vset.pattern.permute.xlu0 0
          %2644 = vperm.xlu0 %2643, %v2586
          %v2645 = vpop.permute.xlu0 %2644
          %2648 = vset.pattern.permute.xlu0 0
          %2649 = vperm.xlu0 %2648, %v2587
          %v2650 = vpop.permute.xlu0 %2649
          %2653 = vset.pattern.permute.xlu0 0
          %2654 = vperm.xlu0 %2653, %v2588
          %v2655 = vpop.permute.xlu0 %2654
          %2658 = vset.pattern.permute.xlu0 0
          %2659 = vperm.xlu0 %2658, %v2589
          %v2660 = vpop.permute.xlu0 %2659
          %2663 = vset.pattern.permute.xlu0 0
          %2664 = vperm.xlu0 %2663, %v2590
          %v2665 = vpop.permute.xlu0 %2664
          %2668 = vset.pattern.permute.xlu0 0
          %2669 = vperm.xlu0 %2668, %v2591
          %v2670 = vpop.permute.xlu0 %2669
          %v2672 = vsub.f32 %v2576, %v2595
          %v2673 = vsub.f32 %v2577, %v2600
          %v2674 = vsub.f32 %v2578, %v2605
          %v2675 = vsub.f32 %v2579, %v2610
          %v2676 = vsub.f32 %v2580, %v2615
          %v2677 = vsub.f32 %v2581, %v2620
          %v2678 = vsub.f32 %v2582, %v2625
          %v2679 = vsub.f32 %v2583, %v2630
          %v2680 = vsub.f32 %v2584, %v2635
          %v2681 = vsub.f32 %v2585, %v2640
          %v2682 = vsub.f32 %v2586, %v2645
          %v2683 = vsub.f32 %v2587, %v2650
          %v2684 = vsub.f32 %v2588, %v2655
          %v2685 = vsub.f32 %v2589, %v2660
          %v2686 = vsub.f32 %v2590, %v2665
          %v2687 = vsub.f32 %v2591, %v2670
          %v2688 = vmul.f32 %v2672, 14.285714
          %v2689 = vmul.f32 %v2673, 14.285714
          %v2690 = vmul.f32 %v2674, 14.285714
          %v2691 = vmul.f32 %v2675, 14.285714
          %v2692 = vmul.f32 %v2676, 14.285714
          %v2693 = vmul.f32 %v2677, 14.285714
          %v2694 = vmul.f32 %v2678, 14.285714
          %v2695 = vmul.f32 %v2679, 14.285714
          %v2696 = vmul.f32 %v2680, 14.285714
          %v2697 = vmul.f32 %v2681, 14.285714
          %v2698 = vmul.f32 %v2682, 14.285714
          %v2699 = vmul.f32 %v2683, 14.285714
          %v2700 = vmul.f32 %v2684, 14.285714
          %v2701 = vmul.f32 %v2685, 14.285714
          %v2702 = vmul.f32 %v2686, 14.285714
          %v2703 = vmul.f32 %v2687, 14.285714
          %v2704 = vmul.f32 %v2688, 1.442695
          %v2705 = vpow.pop %v2704
          %v2706 = vmul.f32 %v2689, 1.442695
          %v2707 = vpow.pop %v2706
          %v2708 = vmul.f32 %v2690, 1.442695
          %v2709 = vpow.pop %v2708
          %v2710 = vmul.f32 %v2691, 1.442695
          %v2711 = vpow.pop %v2710
          %v2712 = vmul.f32 %v2692, 1.442695
          %v2713 = vpow.pop %v2712
          %v2714 = vmul.f32 %v2693, 1.442695
          %v2715 = vpow.pop %v2714
          %v2716 = vmul.f32 %v2694, 1.442695
          %v2717 = vpow.pop %v2716
          %v2718 = vmul.f32 %v2695, 1.442695
          %v2719 = vpow.pop %v2718
          %v2720 = vmul.f32 %v2696, 1.442695
          %v2721 = vpow.pop %v2720
          %v2722 = vmul.f32 %v2697, 1.442695
          %v2723 = vpow.pop %v2722
          %v2724 = vmul.f32 %v2698, 1.442695
          %v2725 = vpow.pop %v2724
          %v2726 = vmul.f32 %v2699, 1.442695
          %v2727 = vpow.pop %v2726
          %v2728 = vmul.f32 %v2700, 1.442695
          %v2729 = vpow.pop %v2728
          %v2730 = vmul.f32 %v2701, 1.442695
          %v2731 = vpow.pop %v2730
          %v2732 = vmul.f32 %v2702, 1.442695
          %v2733 = vpow.pop %v2732
          %v2734 = vmul.f32 %v2703, 1.442695
          %v2735 = vpow.pop %v2734
          %v2736 = vsel %vm1106, %v2705, 0.0
          %2737 = vadd.xlane.f32.xlu0 %v2736
          %v2738 = vpop.xlane.xlu0 %2737
          %v2739 = vsel %vm1106, %v2707, 0.0
          %2740 = vadd.xlane.f32.xlu0 %v2739
          %v2741 = vpop.xlane.xlu0 %2740
          %v2742 = vsel %vm1106, %v2709, 0.0
          %2743 = vadd.xlane.f32.xlu0 %v2742
          %v2744 = vpop.xlane.xlu0 %2743
          %v2745 = vsel %vm1106, %v2711, 0.0
          %2746 = vadd.xlane.f32.xlu0 %v2745
          %v2747 = vpop.xlane.xlu0 %2746
          %v2748 = vsel %vm1106, %v2713, 0.0
          %2749 = vadd.xlane.f32.xlu0 %v2748
          %v2750 = vpop.xlane.xlu0 %2749
          %v2751 = vsel %vm1106, %v2715, 0.0
          %2752 = vadd.xlane.f32.xlu0 %v2751
          %v2753 = vpop.xlane.xlu0 %2752
          %v2754 = vsel %vm1106, %v2717, 0.0
          %2755 = vadd.xlane.f32.xlu0 %v2754
          %v2756 = vpop.xlane.xlu0 %2755
          %v2757 = vsel %vm1106, %v2719, 0.0
          %2758 = vadd.xlane.f32.xlu0 %v2757
          %v2759 = vpop.xlane.xlu0 %2758
          %v2760 = vsel %vm1106, %v2721, 0.0
          %2761 = vadd.xlane.f32.xlu0 %v2760
          %v2762 = vpop.xlane.xlu0 %2761
          %v2763 = vsel %vm1106, %v2723, 0.0
          %2764 = vadd.xlane.f32.xlu0 %v2763
          %v2765 = vpop.xlane.xlu0 %2764
          %v2766 = vsel %vm1106, %v2725, 0.0
          %2767 = vadd.xlane.f32.xlu0 %v2766
          %v2768 = vpop.xlane.xlu0 %2767
          %v2769 = vsel %vm1106, %v2727, 0.0
          %2770 = vadd.xlane.f32.xlu0 %v2769
          %v2771 = vpop.xlane.xlu0 %2770
          %v2772 = vsel %vm1106, %v2729, 0.0
          %2773 = vadd.xlane.f32.xlu0 %v2772
          %v2774 = vpop.xlane.xlu0 %2773
          %v2775 = vsel %vm1106, %v2731, 0.0
          %2776 = vadd.xlane.f32.xlu0 %v2775
          %v2777 = vpop.xlane.xlu0 %2776
          %v2778 = vsel %vm1106, %v2733, 0.0
          %2779 = vadd.xlane.f32.xlu0 %v2778
          %v2780 = vpop.xlane.xlu0 %2779
          %v2781 = vsel %vm1106, %v2735, 0.0
          %2782 = vadd.xlane.f32.xlu0 %v2781
          %v2783 = vpop.xlane.xlu0 %2782
          %vm2784 = vcmask 7168
          %2785 = vst.msk [vmem:[%s255] sm:$0xff] %vm2784, %v2738
          %2786 = vst.msk [vmem:[%s255 + $0x8] sm:$0xff] %vm2784, %v2741
          %2787 = vst.msk [vmem:[%s255 + $0x10] sm:$0xff] %vm2784, %v2744
          %2788 = vst.msk [vmem:[%s255 + $0x18] sm:$0xff] %vm2784, %v2747
          %2789 = vst.msk [vmem:[%s255 + $0x20] sm:$0xff] %vm2784, %v2750
          %2790 = vst.msk [vmem:[%s255 + $0x28] sm:$0xff] %vm2784, %v2753
          %2791 = vst.msk [vmem:[%s255 + $0x30] sm:$0xff] %vm2784, %v2756
          %2792 = vst.msk [vmem:[%s255 + $0x38] sm:$0xff] %vm2784, %v2759
          %2793 = vst.msk [vmem:[%s255 + $0x40] sm:$0xff] %vm2784, %v2762
          %2794 = vst.msk [vmem:[%s255 + $0x48] sm:$0xff] %vm2784, %v2765
          %2795 = vst.msk [vmem:[%s255 + $0x50] sm:$0xff] %vm2784, %v2768
          %2796 = vst.msk [vmem:[%s255 + $0x58] sm:$0xff] %vm2784, %v2771
          %2797 = vst.msk [vmem:[%s255 + $0x60] sm:$0xff] %vm2784, %v2774
          %2798 = vst.msk [vmem:[%s255 + $0x68] sm:$0xff] %vm2784, %v2777
          %2799 = vst.msk [vmem:[%s255 + $0x70] sm:$0xff] %vm2784, %v2780
          %2800 = vst.msk [vmem:[%s255 + $0x78] sm:$0xff] %vm2784, %v2783
          %2801 = vst.msk [vmem:[%s261] sm:$0xff] %vm2784, %v2576
          %2802 = vst.msk [vmem:[%s261 + $0x8] sm:$0xff] %vm2784, %v2577
          %2803 = vst.msk [vmem:[%s261 + $0x10] sm:$0xff] %vm2784, %v2578
          %2804 = vst.msk [vmem:[%s261 + $0x18] sm:$0xff] %vm2784, %v2579
          %2805 = vst.msk [vmem:[%s261 + $0x20] sm:$0xff] %vm2784, %v2580
          %2806 = vst.msk [vmem:[%s261 + $0x28] sm:$0xff] %vm2784, %v2581
          %2807 = vst.msk [vmem:[%s261 + $0x30] sm:$0xff] %vm2784, %v2582
          %2808 = vst.msk [vmem:[%s261 + $0x38] sm:$0xff] %vm2784, %v2583
          %2809 = vst.msk [vmem:[%s261 + $0x40] sm:$0xff] %vm2784, %v2584
          %2810 = vst.msk [vmem:[%s261 + $0x48] sm:$0xff] %vm2784, %v2585
          %2811 = vst.msk [vmem:[%s261 + $0x50] sm:$0xff] %vm2784, %v2586
          %2812 = vst.msk [vmem:[%s261 + $0x58] sm:$0xff] %vm2784, %v2587
          %2813 = vst.msk [vmem:[%s261 + $0x60] sm:$0xff] %vm2784, %v2588
          %2814 = vst.msk [vmem:[%s261 + $0x68] sm:$0xff] %vm2784, %v2589
          %2815 = vst.msk [vmem:[%s261 + $0x70] sm:$0xff] %vm2784, %v2590
          %2816 = vst.msk [vmem:[%s261 + $0x78] sm:$0xff] %vm2784, %v2591
        $region36: #{tpu_custom_call.1} parent=27 // pred_fallthru
          _
        %s2817 = sand.u32 %s93, 1
        %s2818 = scalar_lea.sflag [#allocation5], %s2817
        %s2819 = sand.u32 %s93, 1
        %s2820 = smul.addr %s2819, 256
        %s2821 = scalar_lea.vmem [#allocation4], %s2820
        %s2822 = smul.u32 16, %s23
        %p2823 = scmp.lt.s32.totalorder %s2822, 31
        %s2824 = scalar_select %p2823, %s2822, 31
        %s2825 = smul.addr %s2824, 8
        %s2826 = scalar_lea.vmem %s3, %s2825
        %s2827 = smul.u32 16, %s23
        %p2828 = scmp.lt.s32.totalorder %s2827, 31
        %s2829 = scalar_select %p2828, %s2827, 31
        %s2830 = smul.addr %s2829, 8
        %s2831 = scalar_lea.vmem %s4, %s2830
        // Predicated region
        $region37: #{tpu_custom_call.1} parent=27 // pred_check
          %p2832 = pneg %p103
        $region38: #{tpu_custom_call.1} parent=27 // pred_check_branch
          %2834 = sbr.rel (%p2832) target = $region40
        $region39: #{tpu_custom_call.1} parent=27 // pred_region
          %s2835 = smul.u32 16, %s23
          %s2836 = smul.u32 2, %s24
          %2838 = vsyncadd %s2818, 0
          %s2839 = smul.addr %s2835, 4
          %s2840 = sadd.s32 %s2836, %s2839
          %s2841 = smul.addr %s2840, 8
          %s2842 = scalar_lea.hbm %s2, %s2841
          %s2843 = sshll.u32 %s2821, 4
          %s2844 = int_to_ptr.vmem [resolvable:$true] %s2843
          %s2845 = sshll.u32 %s2842, 4
          %s2846 = int_to_ptr.hbm [resolvable:$true] %s2845
          %2851 = dma.vmem_to_hbm [thread:$0]  %s2844, 4096, %s2846, %s2818, 256, 512, 16
        $region40: #{tpu_custom_call.1} parent=27 // pred_fallthru
          _
        // Predicated region
        $region41: #{tpu_custom_call.1} parent=27 // pred_check
          %p2852 = pneg %p129
        $region42: #{tpu_custom_call.1} parent=27 // pred_check_branch
          %2854 = sbr.rel (%p2852) target = $region44
        $region43: #{tpu_custom_call.1} parent=27 // pred_region
          %s2855 = smul.u32 16, %s23
        $region44: #{tpu_custom_call.1} parent=27 // pred_fallthru
          _
        // Predicated region
        $region45: #{tpu_custom_call.1} parent=27 // pred_check
          %p2856 = pneg %p155
        $region46: #{tpu_custom_call.1} parent=27 // pred_check_branch
          %2858 = sbr.rel (%p2856) target = $region48
        $region47: #{tpu_custom_call.1} parent=27 // pred_region
          %s2859 = smul.u32 16, %s23
        $region48: #{tpu_custom_call.1} parent=27 // pred_fallthru
          _
      $region28: #{tpu_custom_call.1} parent=5 // pred_fallthru
        _
      %p2860 = scmp.le.s32.totalorder 2, %s14
      // Predicated region
      $region49: #{tpu_custom_call.1} parent=5 // pred_check
        %p2861 = pneg %p2860
      $region50: #{tpu_custom_call.1} parent=5 // pred_check_branch
        %2863 = sbr.rel (%p2861) target = $region52
      $region51: #{tpu_custom_call.1} parent=5 // pred_region
        %s2864 = ssub.s32 %s14, 2
        // Predicated region
        $region53: #{tpu_custom_call.1} parent=51 // pred_check
          %p2865 = pneg %p109
        $region54: #{tpu_custom_call.1} parent=51 // pred_check_branch
          %2867 = sbr.rel (%p2865) target = $region56
        $region55: #{tpu_custom_call.1} parent=51 // pred_region
          %s2868 = sand.u32 %s94, 1
          %s2869 = scalar_lea.sflag [#allocation5], %s2868
          %s2870 = sand.u32 %s94, 1
          %s2871 = smul.addr %s2870, 256
          %s2872 = scalar_lea.vmem [#allocation4], %s2871
          %2874 = dma.done %s2869, 4096
        $region56: #{tpu_custom_call.1} parent=51 // pred_fallthru
          _
        // Predicated region
        $region57: #{tpu_custom_call.1} parent=51 // pred_check
          %p2875 = pneg %p135
        $region58: #{tpu_custom_call.1} parent=51 // pred_check_branch
          %2877 = sbr.rel (%p2875) target = $region60
        $region59: #{tpu_custom_call.1} parent=51 // pred_region
          %s2878 = smul.u32 16, %s25
          %p2879 = scmp.lt.s32.totalorder %s2878, 31
          %s2880 = scalar_select %p2879, %s2878, 31
          %s2881 = smul.addr %s2880, 8
          %s2882 = scalar_lea.vmem %s3, %s2881
        $region60: #{tpu_custom_call.1} parent=51 // pred_fallthru
          _
        // Predicated region
        $region61: #{tpu_custom_call.1} parent=51 // pred_check
          %p2883 = pneg %p161
        $region62: #{tpu_custom_call.1} parent=51 // pred_check_branch
          %2885 = sbr.rel (%p2883) target = $region64
        $region63: #{tpu_custom_call.1} parent=51 // pred_region
          %s2886 = smul.u32 16, %s25
          %p2887 = scmp.lt.s32.totalorder %s2886, 31
          %s2888 = scalar_select %p2887, %s2886, 31
          %s2889 = smul.addr %s2888, 8
          %s2890 = scalar_lea.vmem %s4, %s2889
        $region64: #{tpu_custom_call.1} parent=51 // pred_fallthru
          _
      $region52: #{tpu_custom_call.1} parent=5 // pred_fallthru
        _
    $region6: #{tpu_custom_call.1} parent=1 // loop_footer
      %s18 = sadd.s32 1, %s14
    $region7: #{tpu_custom_call.1} parent=1 // loop_footer_branch
      %13 = sbr.rel target = $region3
    $region8: #{tpu_custom_call.1} parent=1 // loop_exit
      _
    %2891 = vsyncpa [#allocation5], 1
    %s2892 = scalar_lea.sflag [#allocation5], 1
    %2893 = vsyncpa %s2892, 1

</llo_original>
